<compile_context>
chip_gen: v5e
topology: v5e:2x2
jax: 0.10.0
libtpu: 0.0.40
codegen_flags: <defaults>
</compile_context>

<pallas_src>
import jax
import jax.numpy as jnp
from jax.experimental import pallas as pl
from jax.experimental.pallas import tpu as pltpu

# The fixed 3x3 integer corner window used for the bilinear gather is exact
# only while |offset| <= 1 (module default offset_clamp=(-1, 1)).
_OFFSET_CLAMP = 1.0
assert _OFFSET_CLAMP <= 1.0, "corner-window rewrite requires |offset| <= 1"


def _make_kernel(H, W, C, Cout):
    WC = W * C

    def kernel(x_ref, wdw_ref, moff_ref, wdcn_ref, ppw_ref, o_ref, xpad_ref):
        """Fused DWConv2d_BN forward for one image (lane-dense layout).

        x_ref   : (1, H, W*C)        input slab
        wdw_ref : (9, W*C)           offset_generator[0] depthwise weights, tiled over W
        moff_ref: (W*C, 18*W*C)      block-diagonal 1x1 offset conv (channel-broadcast output)
        wdcn_ref: (9, W*C)           deformable depthwise weights, tiled over W
        ppw_ref : (W*C, W*Cout)      block-diagonal pointwise 1x1 conv
        o_ref   : (1, H, W*Cout)     output slab (final layout, lane-dense)
        xpad_ref: (H+4, (W+4)*C)     VMEM scratch: zero-padded input (pad=2)
        """
        # ---- in-kernel zero padding (pad=2 covers the 3x3-conv halo and the
        # deformable sampling halo); no padded copy in HBM.  Re-zeroed every
        # step (see header note) -- scratch is ~6 KiB, cost is negligible.
        xpad_ref[...] = jnp.zeros_like(xpad_ref)
        xpad_ref[2:2 + H, 2 * C:2 * C + WC] = x_ref[0].astype(xpad_ref.dtype)

        wdw = wdw_ref[...]      # (9, W*C) f32
        wdcn = wdcn_ref[...]    # (9, W*C) f32

        # ---- offset generator: depthwise 3x3 (pad 1) as 9 lane-dense FMAs.
        t = jnp.zeros((H, WC), jnp.float32)
        for i in range(3):
            for j in range(3):
                t = t + (xpad_ref[1 + i:1 + i + H, (1 + j) * C:(1 + j) * C + WC]
                         * wdw[3 * i + j][None, :])

        # ---- 1x1 conv -> 18 offset planes, each already broadcast across the
        # C channel lanes (block-diagonal matmul built in the wrapper); clamp.
        offb = jnp.dot(t, moff_ref[...], preferred_element_type=jnp.float32)   # (H, 18*W*C)
        offb = jnp.clip(offb, -_OFFSET_CLAMP, _OFFSET_CLAMP)

        # ---- depthwise deformable 3x3 (torchvision DeformConv2d semantics,
        # offset_groups=1, per-tap (dy, dx) pairs in row-major tap order).
        # Because |dy|, |dx| <= 1, the bilinear sample for tap (i, j) always
        # lies inside the fixed 3x3 integer window {h+i-2..h+i} x {w+j-2..w+j};
        # the gather becomes a separable 3-corner interpolation with weights
        #   k0 = relu(-d), k2 = relu(d), k1 = 1 - k0 - k2.
        acc = jnp.zeros((H, WC), jnp.float32)
        for i in range(3):
            for j in range(3):
                k = 3 * i + j
                dy = offb[:, (2 * k) * WC:(2 * k + 1) * WC]        # (H, W*C), channel-broadcast
                dx = offb[:, (2 * k + 1) * WC:(2 * k + 2) * WC]
                ky0 = jnp.maximum(-dy, 0.0)
                ky2 = jnp.maximum(dy, 0.0)
                ky1 = 1.0 - ky0 - ky2
                kx0 = jnp.maximum(-dx, 0.0)
                kx2 = jnp.maximum(dx, 0.0)
                kx1 = 1.0 - kx0 - kx2
                samp = jnp.zeros((H, WC), jnp.float32)
                for ax, kx in ((0, kx0), (1, kx1), (2, kx2)):
                    col = (j + ax) * C
                    ri = (ky0 * xpad_ref[i:i + H, col:col + WC]
                          + ky1 * xpad_ref[i + 1:i + 1 + H, col:col + WC]
                          + ky2 * xpad_ref[i + 2:i + 2 + H, col:col + WC])
                    samp = samp + kx * ri
                acc = acc + samp * wdcn[k][None, :]

        # ---- pointwise 1x1 conv as a block-diagonal matmul that emits the
        # result directly in the final lane-dense (H, W*Cout) layout (no
        # in-kernel reshape before the store), then Hardswish.
        y = jnp.dot(acc, ppw_ref[...], preferred_element_type=jnp.float32)     # (H, W*Cout)
        y = y * jnp.clip(y + 3.0, 0.0, 6.0) * (1.0 / 6.0)
        o_ref[0] = y.astype(o_ref.dtype)

    return kernel


def dwconv2d_bn_forward(x_nchw, w_dw, w_off, w_dcn, w_pw):
    """DWConv2d_BN forward.

    x_nchw: (N, C, H, W)
    w_dw:   (C, 1, 3, 3)     offset_generator[0] depthwise conv weight
    w_off:  (18, C, 1, 1)    offset_generator[1] 1x1 conv weight
    w_dcn:  (C, 1, 3, 3)     deformable depthwise conv weight
    w_pw:   (Cout, C, 1, 1)  pointwise conv weight
    returns (N, Cout, H, W)
    """
    N, C, H, W = x_nchw.shape
    Cout = w_pw.shape[0]
    WC = W * C

    # ---- layout glue (cheap, fused by XLA): channel flattened into lanes.
    x_flat = jnp.transpose(x_nchw, (0, 2, 3, 1)).reshape(N, H, WC)      # (N, H, W*C)

    # Depthwise weights tiled across W so per-tap multiplies stay lane-aligned.
    wdw_tiled = jnp.tile(jnp.transpose(w_dw[:, 0], (1, 2, 0)).reshape(9, C), (1, W))
    wdcn_tiled = jnp.tile(jnp.transpose(w_dcn[:, 0], (1, 2, 0)).reshape(9, C), (1, W))

    eye_w = jnp.eye(W, dtype=jnp.float32)

    # Block-diagonal matrix for the offset 1x1 conv, with each offset plane
    # replicated across the C channel lanes:
    #   M[w*C + c', k*W*C + w*C + c] = w_off[k, c']   (same value for every c).
    woff_ck = jnp.transpose(w_off[:, :, 0, 0], (1, 0))                  # (C, 18)
    m_off = (eye_w[:, None, None, :, None]
             * woff_ck[None, :, :, None, None]
             * jnp.ones((1, 1, 1, 1, C), jnp.float32)).reshape(WC, 18 * WC)

    # Block-diagonal matrix for the pointwise 1x1 conv:
    #   P[w*C + c, w*Cout + co] = w_pw[co, c].
    wpw_cco = jnp.transpose(w_pw[:, :, 0, 0], (1, 0))                   # (C, Cout)
    p_pw = (eye_w[:, None, :, None] * wpw_cco[None, :, None, :]).reshape(WC, W * Cout)

    kernel = _make_kernel(H, W, C, Cout)

    # Advisory cost estimate so XLA can overlap this call with neighbours.
    flops = 2 * N * H * (9 * WC + WC * 18 * WC + 9 * 19 * WC + WC * W * Cout)
    bytes_accessed = 4 * (x_flat.size + N * H * W * Cout + wdw_tiled.size
                          + wdcn_tiled.size + m_off.size + p_pw.size)
    cost = pl.CostEstimate(flops=flops, transcendentals=0, bytes_accessed=bytes_accessed)

    out = pl.pallas_call(
        kernel,
        out_shape=jax.ShapeDtypeStruct((N, H, W * Cout), x_nchw.dtype),
        grid_spec=pltpu.PrefetchScalarGridSpec(
            num_scalar_prefetch=0,
            grid=(N,),  # one grid step per image
            in_specs=[
                pl.BlockSpec((1, H, WC), lambda n: (n, 0, 0)),
                pl.BlockSpec((9, WC), lambda n: (0, 0)),
                pl.BlockSpec((WC, 18 * WC), lambda n: (0, 0)),
                pl.BlockSpec((9, WC), lambda n: (0, 0)),
                pl.BlockSpec((WC, W * Cout), lambda n: (0, 0)),
            ],
            out_specs=pl.BlockSpec((1, H, W * Cout), lambda n: (n, 0, 0)),
            scratch_shapes=[pltpu.VMEM((H + 4, (W + 4) * C), jnp.float32)],
        ),
        compiler_params=pltpu.CompilerParams(
            dimension_semantics=("parallel",)),
        cost_estimate=cost,
    )(x_flat, wdw_tiled, m_off, wdcn_tiled, p_pw)

    # TODO(synk): for large H*W add spatial row tiling (grid=(N, H//th)) with a
    # 2-row halo; re-derive the row tile for v7x's 64 MiB VMEM separately and
    # set vmem_limit_bytes explicitly (v5e scoped default is only 16 MiB).
    return jnp.transpose(out.reshape(N, H, W, Cout), (0, 3, 1, 2))


def _ref_forward(x, w_dw, w_off, w_dcn, w_pw):
    """Independent pure-JAX reference for DWConv2d_BN.forward (floor-based bilinear)."""
    N, C, H, W = x.shape
    hi = jax.lax.Precision.HIGHEST

    t = jax.lax.conv_general_dilated(
        x, w_dw, (1, 1), ((1, 1), (1, 1)),
        dimension_numbers=("NCHW", "OIHW", "NCHW"),
        feature_group_count=C, precision=hi)
    off = jnp.einsum("nchw,oc->nohw", t, w_off[:, :, 0, 0], precision=hi)
    off = jnp.clip(off, -1.0, 1.0)

    ys = jnp.arange(H, dtype=jnp.float32)[:, None]
    xs = jnp.arange(W, dtype=jnp.float32)[None, :]

    def one_image(xi, offi):                    # xi: (C, H, W)  offi: (18, H, W)
        xp = jnp.pad(xi, ((0, 0), (3, 3), (3, 3)))
        out = jnp.zeros_like(xi)
        for i in range(3):
            for j in range(3):
                k = 3 * i + j
                py = ys - 1.0 + i + offi[2 * k]
                px = xs - 1.0 + j + offi[2 * k + 1]
                y0 = jnp.floor(py)
                x0 = jnp.floor(px)
                fy = py - y0
                fx = px - x0
                y0i = y0.astype(jnp.int32) + 3
                x0i = x0.astype(jnp.int32) + 3
                for yy, wy in ((y0i, 1.0 - fy), (y0i + 1, fy)):
                    for xx, wx in ((x0i, 1.0 - fx), (x0i + 1, fx)):
                        val = xp[:, yy, xx]     # (C, H, W) gather (zeros in the pad band)
                        out = out + w_dcn[:, 0, i, j][:, None, None] * (wy * wx)[None] * val
        return out

    d = jax.vmap(one_image)(x, off)
    y = jnp.einsum("nchw,oc->nohw", d, w_pw[:, :, 0, 0], precision=hi)
    return y * jnp.clip(y + 3.0, 0.0, 6.0) / 6.0


if __name__ == "__main__":
    key = jax.random.PRNGKey(0)
    k_x, k1, k2, k3, k4 = jax.random.split(key, 5)

    N, C, H, W = 2, 4, 16, 16   # in_ch = 4
    Cout = 8                    # out_ch = 8

    x = jax.random.normal(k_x, (N, C, H, W), dtype=jnp.float32)

    # Module init style: normal(0, sqrt(2 / (kh * kw * out_channels))).
    def conv_init(k, shape):
        oc, kh, kw = shape[0], shape[2], shape[3]
        std = (2.0 / (kh * kw * oc)) ** 0.5
        return std * jax.random.normal(k, shape, dtype=jnp.float32)

    w_dw = conv_init(k1, (C, 1, 3, 3))        # offset_generator[0] (depthwise 3x3)
    w_off = conv_init(k2, (18, C, 1, 1))      # offset_generator[1] (1x1 -> 18 offsets)
    w_dcn = conv_init(k3, (C, 1, 3, 3))       # deformable depthwise 3x3 (dcn)
    w_pw = conv_init(k4, (Cout, C, 1, 1))     # pointwise 1x1

    out = jax.jit(dwconv2d_bn_forward)(x, w_dw, w_off, w_dcn, w_pw)
    out = jax.block_until_ready(out)
    assert out.shape == (N, Cout, H, W), out.shape

    ref = _ref_forward(x, w_dw, w_off, w_dcn, w_pw)
    max_err = float(jnp.max(jnp.abs(out - ref)))
    assert jnp.allclose(out, ref, atol=1e-3, rtol=1e-3), f"mismatch vs reference: {max_err}"

    print("KERNEL_OK")
</pallas_src>

<mosaic_0001>
module attributes {stable_mosaic.version = 11 : i64} {
  func.func @kernel(%arg0: i32, %arg1: memref<1x16x64xf32, #tpu.memory_space<vmem>>, %arg2: memref<9x64xf32, #tpu.memory_space<vmem>>, %arg3: memref<64x1152xf32, #tpu.memory_space<vmem>>, %arg4: memref<9x64xf32, #tpu.memory_space<vmem>>, %arg5: memref<64x128xf32, #tpu.memory_space<vmem>>, %arg6: memref<1x16x128xf32, #tpu.memory_space<vmem>>, %arg7: memref<20x80xf32, #tpu.memory_space<vmem>>) attributes {dimension_semantics = [#tpu.dimension_semantics<parallel>], iteration_bounds = array<i64: 2>, scalar_prefetch = 0 : i64, scratch_operands = 1 : i64, tpu.core_type = #tpu.core_type<tc>, window_params = [{transform_indices = @transform_0, window_bounds = array<i64: 1, 16, 64>}, {pipeline_mode = #tpu.pipeline_mode<synchronous>, transform_indices = @transform_1, window_bounds = array<i64: 9, 64>}, {pipeline_mode = #tpu.pipeline_mode<synchronous>, transform_indices = @transform_2, window_bounds = array<i64: 64, 1152>}, {pipeline_mode = #tpu.pipeline_mode<synchronous>, transform_indices = @transform_3, window_bounds = array<i64: 9, 64>}, {pipeline_mode = #tpu.pipeline_mode<synchronous>, transform_indices = @transform_4, window_bounds = array<i64: 64, 128>}, {transform_indices = @transform_5, window_bounds = array<i64: 1, 16, 128>}]} {
    %cst = arith.constant 0.000000e+00 : f32
    %0 = vector.broadcast %cst : f32 to vector<20x80xf32>
    %c0 = arith.constant 0 : index
    %c0_0 = arith.constant 0 : index
    %1 = vector.load %arg7[%c0, %c0_0] : memref<20x80xf32, #tpu.memory_space<vmem>>, vector<20x80xf32>
    tpu.vector_store %arg7[%c0, %c0_0], %0 {strides = array<i32>} : memref<20x80xf32, #tpu.memory_space<vmem>>, vector<20x80xf32>,
    %c0_1 = arith.constant 0 : index
    %c0_2 = arith.constant 0 : index
    %c0_3 = arith.constant 0 : index
    %2 = vector.load %arg1[%c0_1, %c0_2, %c0_3] : memref<1x16x64xf32, #tpu.memory_space<vmem>>, vector<1x16x64xf32>
    %3 = vector.shape_cast %2 : vector<1x16x64xf32> to vector<16x64xf32>
    %c2 = arith.constant 2 : index
    %c8 = arith.constant 8 : index
    %4 = vector.load %arg7[%c2, %c8] : memref<20x80xf32, #tpu.memory_space<vmem>>, vector<16x64xf32>
    tpu.vector_store %arg7[%c2, %c8], %3 {strides = array<i32>} : memref<20x80xf32, #tpu.memory_space<vmem>>, vector<16x64xf32>,
    %c0_4 = arith.constant 0 : index
    %c0_5 = arith.constant 0 : index
    %5 = vector.load %arg2[%c0_4, %c0_5] : memref<9x64xf32, #tpu.memory_space<vmem>>, vector<9x64xf32>
    %c0_6 = arith.constant 0 : index
    %c0_7 = arith.constant 0 : index
    %6 = vector.load %arg4[%c0_6, %c0_7] : memref<9x64xf32, #tpu.memory_space<vmem>>, vector<9x64xf32>
    %cst_8 = arith.constant 0.000000e+00 : f32
    %7 = vector.broadcast %cst_8 : f32 to vector<16x64xf32>
    %c1 = arith.constant 1 : index
    %c4 = arith.constant 4 : index
    %8 = vector.load %arg7[%c1, %c4] : memref<20x80xf32, #tpu.memory_space<vmem>>, vector<16x64xf32>
    %9 = vector.extract_strided_slice %5 {offsets = [0, 0], sizes = [1, 64], strides = [1, 1]} : vector<9x64xf32> to vector<1x64xf32>
    %10 = vector.shape_cast %9 : vector<1x64xf32> to vector<64xf32>
    %11 = vector.shape_cast %10 : vector<64xf32> to vector<1x64xf32>
    %12 = vector.broadcast %11 : vector<1x64xf32> to vector<16x64xf32>
    %13 = arith.mulf %8, %12 : vector<16x64xf32>
    %14 = arith.addf %7, %13 : vector<16x64xf32>
    %c1_9 = arith.constant 1 : index
    %c8_10 = arith.constant 8 : index
    %15 = vector.load %arg7[%c1_9, %c8_10] : memref<20x80xf32, #tpu.memory_space<vmem>>, vector<16x64xf32>
    %16 = vector.extract_strided_slice %5 {offsets = [1, 0], sizes = [1, 64], strides = [1, 1]} : vector<9x64xf32> to vector<1x64xf32>
    %17 = vector.shape_cast %16 : vector<1x64xf32> to vector<64xf32>
    %18 = vector.shape_cast %17 : vector<64xf32> to vector<1x64xf32>
    %19 = vector.broadcast %18 : vector<1x64xf32> to vector<16x64xf32>
    %20 = arith.mulf %15, %19 : vector<16x64xf32>
    %21 = arith.addf %14, %20 : vector<16x64xf32>
    %c1_11 = arith.constant 1 : index
    %c12 = arith.constant 12 : index
    %22 = vector.load %arg7[%c1_11, %c12] : memref<20x80xf32, #tpu.memory_space<vmem>>, vector<16x64xf32>
    %23 = vector.extract_strided_slice %5 {offsets = [2, 0], sizes = [1, 64], strides = [1, 1]} : vector<9x64xf32> to vector<1x64xf32>
    %24 = vector.shape_cast %23 : vector<1x64xf32> to vector<64xf32>
    %25 = vector.shape_cast %24 : vector<64xf32> to vector<1x64xf32>
    %26 = vector.broadcast %25 : vector<1x64xf32> to vector<16x64xf32>
    %27 = arith.mulf %22, %26 : vector<16x64xf32>
    %28 = arith.addf %21, %27 : vector<16x64xf32>
    %c2_12 = arith.constant 2 : index
    %c4_13 = arith.constant 4 : index
    %29 = vector.load %arg7[%c2_12, %c4_13] : memref<20x80xf32, #tpu.memory_space<vmem>>, vector<16x64xf32>
    %30 = vector.extract_strided_slice %5 {offsets = [3, 0], sizes = [1, 64], strides = [1, 1]} : vector<9x64xf32> to vector<1x64xf32>
    %31 = vector.shape_cast %30 : vector<1x64xf32> to vector<64xf32>
    %32 = vector.shape_cast %31 : vector<64xf32> to vector<1x64xf32>
    %33 = vector.broadcast %32 : vector<1x64xf32> to vector<16x64xf32>
    %34 = arith.mulf %29, %33 : vector<16x64xf32>
    %35 = arith.addf %28, %34 : vector<16x64xf32>
    %c2_14 = arith.constant 2 : index
    %c8_15 = arith.constant 8 : index
    %36 = vector.load %arg7[%c2_14, %c8_15] : memref<20x80xf32, #tpu.memory_space<vmem>>, vector<16x64xf32>
    %37 = vector.extract_strided_slice %5 {offsets = [4, 0], sizes = [1, 64], strides = [1, 1]} : vector<9x64xf32> to vector<1x64xf32>
    %38 = vector.shape_cast %37 : vector<1x64xf32> to vector<64xf32>
    %39 = vector.shape_cast %38 : vector<64xf32> to vector<1x64xf32>
    %40 = vector.broadcast %39 : vector<1x64xf32> to vector<16x64xf32>
    %41 = arith.mulf %36, %40 : vector<16x64xf32>
    %42 = arith.addf %35, %41 : vector<16x64xf32>
    %c2_16 = arith.constant 2 : index
    %c12_17 = arith.constant 12 : index
    %43 = vector.load %arg7[%c2_16, %c12_17] : memref<20x80xf32, #tpu.memory_space<vmem>>, vector<16x64xf32>
    %44 = vector.extract_strided_slice %5 {offsets = [5, 0], sizes = [1, 64], strides = [1, 1]} : vector<9x64xf32> to vector<1x64xf32>
    %45 = vector.shape_cast %44 : vector<1x64xf32> to vector<64xf32>
    %46 = vector.shape_cast %45 : vector<64xf32> to vector<1x64xf32>
    %47 = vector.broadcast %46 : vector<1x64xf32> to vector<16x64xf32>
    %48 = arith.mulf %43, %47 : vector<16x64xf32>
    %49 = arith.addf %42, %48 : vector<16x64xf32>
    %c3 = arith.constant 3 : index
    %c4_18 = arith.constant 4 : index
    %50 = vector.load %arg7[%c3, %c4_18] : memref<20x80xf32, #tpu.memory_space<vmem>>, vector<16x64xf32>
    %51 = vector.extract_strided_slice %5 {offsets = [6, 0], sizes = [1, 64], strides = [1, 1]} : vector<9x64xf32> to vector<1x64xf32>
    %52 = vector.shape_cast %51 : vector<1x64xf32> to vector<64xf32>
    %53 = vector.shape_cast %52 : vector<64xf32> to vector<1x64xf32>
    %54 = vector.broadcast %53 : vector<1x64xf32> to vector<16x64xf32>
    %55 = arith.mulf %50, %54 : vector<16x64xf32>
    %56 = arith.addf %49, %55 : vector<16x64xf32>
    %c3_19 = arith.constant 3 : index
    %c8_20 = arith.constant 8 : index
    %57 = vector.load %arg7[%c3_19, %c8_20] : memref<20x80xf32, #tpu.memory_space<vmem>>, vector<16x64xf32>
    %58 = vector.extract_strided_slice %5 {offsets = [7, 0], sizes = [1, 64], strides = [1, 1]} : vector<9x64xf32> to vector<1x64xf32>
    %59 = vector.shape_cast %58 : vector<1x64xf32> to vector<64xf32>
    %60 = vector.shape_cast %59 : vector<64xf32> to vector<1x64xf32>
    %61 = vector.broadcast %60 : vector<1x64xf32> to vector<16x64xf32>
    %62 = arith.mulf %57, %61 : vector<16x64xf32>
    %63 = arith.addf %56, %62 : vector<16x64xf32>
    %c3_21 = arith.constant 3 : index
    %c12_22 = arith.constant 12 : index
    %64 = vector.load %arg7[%c3_21, %c12_22] : memref<20x80xf32, #tpu.memory_space<vmem>>, vector<16x64xf32>
    %65 = vector.extract_strided_slice %5 {offsets = [8, 0], sizes = [1, 64], strides = [1, 1]} : vector<9x64xf32> to vector<1x64xf32>
    %66 = vector.shape_cast %65 : vector<1x64xf32> to vector<64xf32>
    %67 = vector.shape_cast %66 : vector<64xf32> to vector<1x64xf32>
    %68 = vector.broadcast %67 : vector<1x64xf32> to vector<16x64xf32>
    %69 = arith.mulf %64, %68 : vector<16x64xf32>
    %70 = arith.addf %63, %69 : vector<16x64xf32>
    %c0_23 = arith.constant 0 : index
    %c0_24 = arith.constant 0 : index
    %71 = vector.load %arg3[%c0_23, %c0_24] : memref<64x1152xf32, #tpu.memory_space<vmem>>, vector<64x1152xf32>
    %cst_25 = arith.constant dense<0.000000e+00> : vector<16x1152xf32>
    %72 = tpu.matmul %70, %71, %cst_25 {dimension_numbers = #tpu.dot_dimension_numbers<[1], [0], [0], [1], [0, 0, 1, 1], [], []>} : vector<16x64xf32>, vector<64x1152xf32>, vector<16x1152xf32> -> vector<16x1152xf32>
    %cst_26 = arith.constant -1.000000e+00 : f32
    %cst_27 = arith.constant 1.000000e+00 : f32
    %73 = vector.broadcast %cst_26 : f32 to vector<16x1152xf32>
    %74 = arith.maximumf %73, %72 : vector<16x1152xf32>
    %75 = vector.broadcast %cst_27 : f32 to vector<16x1152xf32>
    %76 = arith.minimumf %75, %74 : vector<16x1152xf32>
    %cst_28 = arith.constant 0.000000e+00 : f32
    %77 = vector.broadcast %cst_28 : f32 to vector<16x64xf32>
    %78 = vector.extract_strided_slice %76 {offsets = [0, 0], sizes = [16, 64], strides = [1, 1]} : vector<16x1152xf32> to vector<16x64xf32>
    %79 = vector.extract_strided_slice %76 {offsets = [0, 64], sizes = [16, 64], strides = [1, 1]} : vector<16x1152xf32> to vector<16x64xf32>
    %cst_29 = arith.constant 0.000000e+00 : f32
    %80 = vector.broadcast %cst_29 : f32 to vector<16x64xf32>
    %81 = arith.subf %80, %78 : vector<16x64xf32>
    %cst_30 = arith.constant 0.000000e+00 : f32
    %82 = vector.broadcast %cst_30 : f32 to vector<16x64xf32>
    %83 = arith.maximumf %81, %82 : vector<16x64xf32>
    %cst_31 = arith.constant 0.000000e+00 : f32
    %84 = vector.broadcast %cst_31 : f32 to vector<16x64xf32>
    %85 = arith.maximumf %78, %84 : vector<16x64xf32>
    %cst_32 = arith.constant 1.000000e+00 : f32
    %86 = vector.broadcast %cst_32 : f32 to vector<16x64xf32>
    %87 = arith.subf %86, %83 : vector<16x64xf32>
    %88 = arith.subf %87, %85 : vector<16x64xf32>
    %cst_33 = arith.constant 0.000000e+00 : f32
    %89 = vector.broadcast %cst_33 : f32 to vector<16x64xf32>
    %90 = arith.subf %89, %79 : vector<16x64xf32>
    %cst_34 = arith.constant 0.000000e+00 : f32
    %91 = vector.broadcast %cst_34 : f32 to vector<16x64xf32>
    %92 = arith.maximumf %90, %91 : vector<16x64xf32>
    %cst_35 = arith.constant 0.000000e+00 : f32
    %93 = vector.broadcast %cst_35 : f32 to vector<16x64xf32>
    %94 = arith.maximumf %79, %93 : vector<16x64xf32>
    %cst_36 = arith.constant 1.000000e+00 : f32
    %95 = vector.broadcast %cst_36 : f32 to vector<16x64xf32>
    %96 = arith.subf %95, %92 : vector<16x64xf32>
    %97 = arith.subf %96, %94 : vector<16x64xf32>
    %cst_37 = arith.constant 0.000000e+00 : f32
    %98 = vector.broadcast %cst_37 : f32 to vector<16x64xf32>
    %c0_38 = arith.constant 0 : index
    %c0_39 = arith.constant 0 : index
    %99 = vector.load %arg7[%c0_38, %c0_39] : memref<20x80xf32, #tpu.memory_space<vmem>>, vector<16x64xf32>
    %100 = arith.mulf %83, %99 : vector<16x64xf32>
    %c1_40 = arith.constant 1 : index
    %c0_41 = arith.constant 0 : index
    %101 = vector.load %arg7[%c1_40, %c0_41] : memref<20x80xf32, #tpu.memory_space<vmem>>, vector<16x64xf32>
    %102 = arith.mulf %88, %101 : vector<16x64xf32>
    %103 = arith.addf %100, %102 : vector<16x64xf32>
    %c2_42 = arith.constant 2 : index
    %c0_43 = arith.constant 0 : index
    %104 = vector.load %arg7[%c2_42, %c0_43] : memref<20x80xf32, #tpu.memory_space<vmem>>, vector<16x64xf32>
    %105 = arith.mulf %85, %104 : vector<16x64xf32>
    %106 = arith.addf %103, %105 : vector<16x64xf32>
    %107 = arith.mulf %92, %106 : vector<16x64xf32>
    %108 = arith.addf %98, %107 : vector<16x64xf32>
    %c0_44 = arith.constant 0 : index
    %c4_45 = arith.constant 4 : index
    %109 = vector.load %arg7[%c0_44, %c4_45] : memref<20x80xf32, #tpu.memory_space<vmem>>, vector<16x64xf32>
    %110 = arith.mulf %83, %109 : vector<16x64xf32>
    %c1_46 = arith.constant 1 : index
    %c4_47 = arith.constant 4 : index
    %111 = vector.load %arg7[%c1_46, %c4_47] : memref<20x80xf32, #tpu.memory_space<vmem>>, vector<16x64xf32>
    %112 = arith.mulf %88, %111 : vector<16x64xf32>
    %113 = arith.addf %110, %112 : vector<16x64xf32>
    %c2_48 = arith.constant 2 : index
    %c4_49 = arith.constant 4 : index
    %114 = vector.load %arg7[%c2_48, %c4_49] : memref<20x80xf32, #tpu.memory_space<vmem>>, vector<16x64xf32>
    %115 = arith.mulf %85, %114 : vector<16x64xf32>
    %116 = arith.addf %113, %115 : vector<16x64xf32>
    %117 = arith.mulf %97, %116 : vector<16x64xf32>
    %118 = arith.addf %108, %117 : vector<16x64xf32>
    %c0_50 = arith.constant 0 : index
    %c8_51 = arith.constant 8 : index
    %119 = vector.load %arg7[%c0_50, %c8_51] : memref<20x80xf32, #tpu.memory_space<vmem>>, vector<16x64xf32>
    %120 = arith.mulf %83, %119 : vector<16x64xf32>
    %c1_52 = arith.constant 1 : index
    %c8_53 = arith.constant 8 : index
    %121 = vector.load %arg7[%c1_52, %c8_53] : memref<20x80xf32, #tpu.memory_space<vmem>>, vector<16x64xf32>
    %122 = arith.mulf %88, %121 : vector<16x64xf32>
    %123 = arith.addf %120, %122 : vector<16x64xf32>
    %c2_54 = arith.constant 2 : index
    %c8_55 = arith.constant 8 : index
    %124 = vector.load %arg7[%c2_54, %c8_55] : memref<20x80xf32, #tpu.memory_space<vmem>>, vector<16x64xf32>
    %125 = arith.mulf %85, %124 : vector<16x64xf32>
    %126 = arith.addf %123, %125 : vector<16x64xf32>
    %127 = arith.mulf %94, %126 : vector<16x64xf32>
    %128 = arith.addf %118, %127 : vector<16x64xf32>
    %129 = vector.extract_strided_slice %6 {offsets = [0, 0], sizes = [1, 64], strides = [1, 1]} : vector<9x64xf32> to vector<1x64xf32>
    %130 = vector.shape_cast %129 : vector<1x64xf32> to vector<64xf32>
    %131 = vector.shape_cast %130 : vector<64xf32> to vector<1x64xf32>
    %132 = vector.broadcast %131 : vector<1x64xf32> to vector<16x64xf32>
    %133 = arith.mulf %128, %132 : vector<16x64xf32>
    %134 = arith.addf %77, %133 : vector<16x64xf32>
    %135 = vector.extract_strided_slice %76 {offsets = [0, 128], sizes = [16, 64], strides = [1, 1]} : vector<16x1152xf32> to vector<16x64xf32>
    %136 = vector.extract_strided_slice %76 {offsets = [0, 192], sizes = [16, 64], strides = [1, 1]} : vector<16x1152xf32> to vector<16x64xf32>
    %cst_56 = arith.constant 0.000000e+00 : f32
    %137 = vector.broadcast %cst_56 : f32 to vector<16x64xf32>
    %138 = arith.subf %137, %135 : vector<16x64xf32>
    %cst_57 = arith.constant 0.000000e+00 : f32
    %139 = vector.broadcast %cst_57 : f32 to vector<16x64xf32>
    %140 = arith.maximumf %138, %139 : vector<16x64xf32>
    %cst_58 = arith.constant 0.000000e+00 : f32
    %141 = vector.broadcast %cst_58 : f32 to vector<16x64xf32>
    %142 = arith.maximumf %135, %141 : vector<16x64xf32>
    %cst_59 = arith.constant 1.000000e+00 : f32
    %143 = vector.broadcast %cst_59 : f32 to vector<16x64xf32>
    %144 = arith.subf %143, %140 : vector<16x64xf32>
    %145 = arith.subf %144, %142 : vector<16x64xf32>
    %cst_60 = arith.constant 0.000000e+00 : f32
    %146 = vector.broadcast %cst_60 : f32 to vector<16x64xf32>
    %147 = arith.subf %146, %136 : vector<16x64xf32>
    %cst_61 = arith.constant 0.000000e+00 : f32
    %148 = vector.broadcast %cst_61 : f32 to vector<16x64xf32>
    %149 = arith.maximumf %147, %148 : vector<16x64xf32>
    %cst_62 = arith.constant 0.000000e+00 : f32
    %150 = vector.broadcast %cst_62 : f32 to vector<16x64xf32>
    %151 = arith.maximumf %136, %150 : vector<16x64xf32>
    %cst_63 = arith.constant 1.000000e+00 : f32
    %152 = vector.broadcast %cst_63 : f32 to vector<16x64xf32>
    %153 = arith.subf %152, %149 : vector<16x64xf32>
    %154 = arith.subf %153, %151 : vector<16x64xf32>
    %cst_64 = arith.constant 0.000000e+00 : f32
    %155 = vector.broadcast %cst_64 : f32 to vector<16x64xf32>
    %c0_65 = arith.constant 0 : index
    %c4_66 = arith.constant 4 : index
    %156 = vector.load %arg7[%c0_65, %c4_66] : memref<20x80xf32, #tpu.memory_space<vmem>>, vector<16x64xf32>
    %157 = arith.mulf %140, %156 : vector<16x64xf32>
    %c1_67 = arith.constant 1 : index
    %c4_68 = arith.constant 4 : index
    %158 = vector.load %arg7[%c1_67, %c4_68] : memref<20x80xf32, #tpu.memory_space<vmem>>, vector<16x64xf32>
    %159 = arith.mulf %145, %158 : vector<16x64xf32>
    %160 = arith.addf %157, %159 : vector<16x64xf32>
    %c2_69 = arith.constant 2 : index
    %c4_70 = arith.constant 4 : index
    %161 = vector.load %arg7[%c2_69, %c4_70] : memref<20x80xf32, #tpu.memory_space<vmem>>, vector<16x64xf32>
    %162 = arith.mulf %142, %161 : vector<16x64xf32>
    %163 = arith.addf %160, %162 : vector<16x64xf32>
    %164 = arith.mulf %149, %163 : vector<16x64xf32>
    %165 = arith.addf %155, %164 : vector<16x64xf32>
    %c0_71 = arith.constant 0 : index
    %c8_72 = arith.constant 8 : index
    %166 = vector.load %arg7[%c0_71, %c8_72] : memref<20x80xf32, #tpu.memory_space<vmem>>, vector<16x64xf32>
    %167 = arith.mulf %140, %166 : vector<16x64xf32>
    %c1_73 = arith.constant 1 : index
    %c8_74 = arith.constant 8 : index
    %168 = vector.load %arg7[%c1_73, %c8_74] : memref<20x80xf32, #tpu.memory_space<vmem>>, vector<16x64xf32>
    %169 = arith.mulf %145, %168 : vector<16x64xf32>
    %170 = arith.addf %167, %169 : vector<16x64xf32>
    %c2_75 = arith.constant 2 : index
    %c8_76 = arith.constant 8 : index
    %171 = vector.load %arg7[%c2_75, %c8_76] : memref<20x80xf32, #tpu.memory_space<vmem>>, vector<16x64xf32>
    %172 = arith.mulf %142, %171 : vector<16x64xf32>
    %173 = arith.addf %170, %172 : vector<16x64xf32>
    %174 = arith.mulf %154, %173 : vector<16x64xf32>
    %175 = arith.addf %165, %174 : vector<16x64xf32>
    %c0_77 = arith.constant 0 : index
    %c12_78 = arith.constant 12 : index
    %176 = vector.load %arg7[%c0_77, %c12_78] : memref<20x80xf32, #tpu.memory_space<vmem>>, vector<16x64xf32>
    %177 = arith.mulf %140, %176 : vector<16x64xf32>
    %c1_79 = arith.constant 1 : index
    %c12_80 = arith.constant 12 : index
    %178 = vector.load %arg7[%c1_79, %c12_80] : memref<20x80xf32, #tpu.memory_space<vmem>>, vector<16x64xf32>
    %179 = arith.mulf %145, %178 : vector<16x64xf32>
    %180 = arith.addf %177, %179 : vector<16x64xf32>
    %c2_81 = arith.constant 2 : index
    %c12_82 = arith.constant 12 : index
    %181 = vector.load %arg7[%c2_81, %c12_82] : memref<20x80xf32, #tpu.memory_space<vmem>>, vector<16x64xf32>
    %182 = arith.mulf %142, %181 : vector<16x64xf32>
    %183 = arith.addf %180, %182 : vector<16x64xf32>
    %184 = arith.mulf %151, %183 : vector<16x64xf32>
    %185 = arith.addf %175, %184 : vector<16x64xf32>
    %186 = vector.extract_strided_slice %6 {offsets = [1, 0], sizes = [1, 64], strides = [1, 1]} : vector<9x64xf32> to vector<1x64xf32>
    %187 = vector.shape_cast %186 : vector<1x64xf32> to vector<64xf32>
    %188 = vector.shape_cast %187 : vector<64xf32> to vector<1x64xf32>
    %189 = vector.broadcast %188 : vector<1x64xf32> to vector<16x64xf32>
    %190 = arith.mulf %185, %189 : vector<16x64xf32>
    %191 = arith.addf %134, %190 : vector<16x64xf32>
    %192 = vector.extract_strided_slice %76 {offsets = [0, 256], sizes = [16, 64], strides = [1, 1]} : vector<16x1152xf32> to vector<16x64xf32>
    %193 = vector.extract_strided_slice %76 {offsets = [0, 320], sizes = [16, 64], strides = [1, 1]} : vector<16x1152xf32> to vector<16x64xf32>
    %cst_83 = arith.constant 0.000000e+00 : f32
    %194 = vector.broadcast %cst_83 : f32 to vector<16x64xf32>
    %195 = arith.subf %194, %192 : vector<16x64xf32>
    %cst_84 = arith.constant 0.000000e+00 : f32
    %196 = vector.broadcast %cst_84 : f32 to vector<16x64xf32>
    %197 = arith.maximumf %195, %196 : vector<16x64xf32>
    %cst_85 = arith.constant 0.000000e+00 : f32
    %198 = vector.broadcast %cst_85 : f32 to vector<16x64xf32>
    %199 = arith.maximumf %192, %198 : vector<16x64xf32>
    %cst_86 = arith.constant 1.000000e+00 : f32
    %200 = vector.broadcast %cst_86 : f32 to vector<16x64xf32>
    %201 = arith.subf %200, %197 : vector<16x64xf32>
    %202 = arith.subf %201, %199 : vector<16x64xf32>
    %cst_87 = arith.constant 0.000000e+00 : f32
    %203 = vector.broadcast %cst_87 : f32 to vector<16x64xf32>
    %204 = arith.subf %203, %193 : vector<16x64xf32>
    %cst_88 = arith.constant 0.000000e+00 : f32
    %205 = vector.broadcast %cst_88 : f32 to vector<16x64xf32>
    %206 = arith.maximumf %204, %205 : vector<16x64xf32>
    %cst_89 = arith.constant 0.000000e+00 : f32
    %207 = vector.broadcast %cst_89 : f32 to vector<16x64xf32>
    %208 = arith.maximumf %193, %207 : vector<16x64xf32>
    %cst_90 = arith.constant 1.000000e+00 : f32
    %209 = vector.broadcast %cst_90 : f32 to vector<16x64xf32>
    %210 = arith.subf %209, %206 : vector<16x64xf32>
    %211 = arith.subf %210, %208 : vector<16x64xf32>
    %cst_91 = arith.constant 0.000000e+00 : f32
    %212 = vector.broadcast %cst_91 : f32 to vector<16x64xf32>
    %c0_92 = arith.constant 0 : index
    %c8_93 = arith.constant 8 : index
    %213 = vector.load %arg7[%c0_92, %c8_93] : memref<20x80xf32, #tpu.memory_space<vmem>>, vector<16x64xf32>
    %214 = arith.mulf %197, %213 : vector<16x64xf32>
    %c1_94 = arith.constant 1 : index
    %c8_95 = arith.constant 8 : index
    %215 = vector.load %arg7[%c1_94, %c8_95] : memref<20x80xf32, #tpu.memory_space<vmem>>, vector<16x64xf32>
    %216 = arith.mulf %202, %215 : vector<16x64xf32>
    %217 = arith.addf %214, %216 : vector<16x64xf32>
    %c2_96 = arith.constant 2 : index
    %c8_97 = arith.constant 8 : index
    %218 = vector.load %arg7[%c2_96, %c8_97] : memref<20x80xf32, #tpu.memory_space<vmem>>, vector<16x64xf32>
    %219 = arith.mulf %199, %218 : vector<16x64xf32>
    %220 = arith.addf %217, %219 : vector<16x64xf32>
    %221 = arith.mulf %206, %220 : vector<16x64xf32>
    %222 = arith.addf %212, %221 : vector<16x64xf32>
    %c0_98 = arith.constant 0 : index
    %c12_99 = arith.constant 12 : index
    %223 = vector.load %arg7[%c0_98, %c12_99] : memref<20x80xf32, #tpu.memory_space<vmem>>, vector<16x64xf32>
    %224 = arith.mulf %197, %223 : vector<16x64xf32>
    %c1_100 = arith.constant 1 : index
    %c12_101 = arith.constant 12 : index
    %225 = vector.load %arg7[%c1_100, %c12_101] : memref<20x80xf32, #tpu.memory_space<vmem>>, vector<16x64xf32>
    %226 = arith.mulf %202, %225 : vector<16x64xf32>
    %227 = arith.addf %224, %226 : vector<16x64xf32>
    %c2_102 = arith.constant 2 : index
    %c12_103 = arith.constant 12 : index
    %228 = vector.load %arg7[%c2_102, %c12_103] : memref<20x80xf32, #tpu.memory_space<vmem>>, vector<16x64xf32>
    %229 = arith.mulf %199, %228 : vector<16x64xf32>
    %230 = arith.addf %227, %229 : vector<16x64xf32>
    %231 = arith.mulf %211, %230 : vector<16x64xf32>
    %232 = arith.addf %222, %231 : vector<16x64xf32>
    %c0_104 = arith.constant 0 : index
    %c16 = arith.constant 16 : index
    %233 = vector.load %arg7[%c0_104, %c16] : memref<20x80xf32, #tpu.memory_space<vmem>>, vector<16x64xf32>
    %234 = arith.mulf %197, %233 : vector<16x64xf32>
    %c1_105 = arith.constant 1 : index
    %c16_106 = arith.constant 16 : index
    %235 = vector.load %arg7[%c1_105, %c16_106] : memref<20x80xf32, #tpu.memory_space<vmem>>, vector<16x64xf32>
    %236 = arith.mulf %202, %235 : vector<16x64xf32>
    %237 = arith.addf %234, %236 : vector<16x64xf32>
    %c2_107 = arith.constant 2 : index
    %c16_108 = arith.constant 16 : index
    %238 = vector.load %arg7[%c2_107, %c16_108] : memref<20x80xf32, #tpu.memory_space<vmem>>, vector<16x64xf32>
    %239 = arith.mulf %199, %238 : vector<16x64xf32>
    %240 = arith.addf %237, %239 : vector<16x64xf32>
    %241 = arith.mulf %208, %240 : vector<16x64xf32>
    %242 = arith.addf %232, %241 : vector<16x64xf32>
    %243 = vector.extract_strided_slice %6 {offsets = [2, 0], sizes = [1, 64], strides = [1, 1]} : vector<9x64xf32> to vector<1x64xf32>
    %244 = vector.shape_cast %243 : vector<1x64xf32> to vector<64xf32>
    %245 = vector.shape_cast %244 : vector<64xf32> to vector<1x64xf32>
    %246 = vector.broadcast %245 : vector<1x64xf32> to vector<16x64xf32>
    %247 = arith.mulf %242, %246 : vector<16x64xf32>
    %248 = arith.addf %191, %247 : vector<16x64xf32>
    %249 = vector.extract_strided_slice %76 {offsets = [0, 384], sizes = [16, 64], strides = [1, 1]} : vector<16x1152xf32> to vector<16x64xf32>
    %250 = vector.extract_strided_slice %76 {offsets = [0, 448], sizes = [16, 64], strides = [1, 1]} : vector<16x1152xf32> to vector<16x64xf32>
    %cst_109 = arith.constant 0.000000e+00 : f32
    %251 = vector.broadcast %cst_109 : f32 to vector<16x64xf32>
    %252 = arith.subf %251, %249 : vector<16x64xf32>
    %cst_110 = arith.constant 0.000000e+00 : f32
    %253 = vector.broadcast %cst_110 : f32 to vector<16x64xf32>
    %254 = arith.maximumf %252, %253 : vector<16x64xf32>
    %cst_111 = arith.constant 0.000000e+00 : f32
    %255 = vector.broadcast %cst_111 : f32 to vector<16x64xf32>
    %256 = arith.maximumf %249, %255 : vector<16x64xf32>
    %cst_112 = arith.constant 1.000000e+00 : f32
    %257 = vector.broadcast %cst_112 : f32 to vector<16x64xf32>
    %258 = arith.subf %257, %254 : vector<16x64xf32>
    %259 = arith.subf %258, %256 : vector<16x64xf32>
    %cst_113 = arith.constant 0.000000e+00 : f32
    %260 = vector.broadcast %cst_113 : f32 to vector<16x64xf32>
    %261 = arith.subf %260, %250 : vector<16x64xf32>
    %cst_114 = arith.constant 0.000000e+00 : f32
    %262 = vector.broadcast %cst_114 : f32 to vector<16x64xf32>
    %263 = arith.maximumf %261, %262 : vector<16x64xf32>
    %cst_115 = arith.constant 0.000000e+00 : f32
    %264 = vector.broadcast %cst_115 : f32 to vector<16x64xf32>
    %265 = arith.maximumf %250, %264 : vector<16x64xf32>
    %cst_116 = arith.constant 1.000000e+00 : f32
    %266 = vector.broadcast %cst_116 : f32 to vector<16x64xf32>
    %267 = arith.subf %266, %263 : vector<16x64xf32>
    %268 = arith.subf %267, %265 : vector<16x64xf32>
    %cst_117 = arith.constant 0.000000e+00 : f32
    %269 = vector.broadcast %cst_117 : f32 to vector<16x64xf32>
    %c1_118 = arith.constant 1 : index
    %c0_119 = arith.constant 0 : index
    %270 = vector.load %arg7[%c1_118, %c0_119] : memref<20x80xf32, #tpu.memory_space<vmem>>, vector<16x64xf32>
    %271 = arith.mulf %254, %270 : vector<16x64xf32>
    %c2_120 = arith.constant 2 : index
    %c0_121 = arith.constant 0 : index
    %272 = vector.load %arg7[%c2_120, %c0_121] : memref<20x80xf32, #tpu.memory_space<vmem>>, vector<16x64xf32>
    %273 = arith.mulf %259, %272 : vector<16x64xf32>
    %274 = arith.addf %271, %273 : vector<16x64xf32>
    %c3_122 = arith.constant 3 : index
    %c0_123 = arith.constant 0 : index
    %275 = vector.load %arg7[%c3_122, %c0_123] : memref<20x80xf32, #tpu.memory_space<vmem>>, vector<16x64xf32>
    %276 = arith.mulf %256, %275 : vector<16x64xf32>
    %277 = arith.addf %274, %276 : vector<16x64xf32>
    %278 = arith.mulf %263, %277 : vector<16x64xf32>
    %279 = arith.addf %269, %278 : vector<16x64xf32>
    %c1_124 = arith.constant 1 : index
    %c4_125 = arith.constant 4 : index
    %280 = vector.load %arg7[%c1_124, %c4_125] : memref<20x80xf32, #tpu.memory_space<vmem>>, vector<16x64xf32>
    %281 = arith.mulf %254, %280 : vector<16x64xf32>
    %c2_126 = arith.constant 2 : index
    %c4_127 = arith.constant 4 : index
    %282 = vector.load %arg7[%c2_126, %c4_127] : memref<20x80xf32, #tpu.memory_space<vmem>>, vector<16x64xf32>
    %283 = arith.mulf %259, %282 : vector<16x64xf32>
    %284 = arith.addf %281, %283 : vector<16x64xf32>
    %c3_128 = arith.constant 3 : index
    %c4_129 = arith.constant 4 : index
    %285 = vector.load %arg7[%c3_128, %c4_129] : memref<20x80xf32, #tpu.memory_space<vmem>>, vector<16x64xf32>
    %286 = arith.mulf %256, %285 : vector<16x64xf32>
    %287 = arith.addf %284, %286 : vector<16x64xf32>
    %288 = arith.mulf %268, %287 : vector<16x64xf32>
    %289 = arith.addf %279, %288 : vector<16x64xf32>
    %c1_130 = arith.constant 1 : index
    %c8_131 = arith.constant 8 : index
    %290 = vector.load %arg7[%c1_130, %c8_131] : memref<20x80xf32, #tpu.memory_space<vmem>>, vector<16x64xf32>
    %291 = arith.mulf %254, %290 : vector<16x64xf32>
    %c2_132 = arith.constant 2 : index
    %c8_133 = arith.constant 8 : index
    %292 = vector.load %arg7[%c2_132, %c8_133] : memref<20x80xf32, #tpu.memory_space<vmem>>, vector<16x64xf32>
    %293 = arith.mulf %259, %292 : vector<16x64xf32>
    %294 = arith.addf %291, %293 : vector<16x64xf32>
    %c3_134 = arith.constant 3 : index
    %c8_135 = arith.constant 8 : index
    %295 = vector.load %arg7[%c3_134, %c8_135] : memref<20x80xf32, #tpu.memory_space<vmem>>, vector<16x64xf32>
    %296 = arith.mulf %256, %295 : vector<16x64xf32>
    %297 = arith.addf %294, %296 : vector<16x64xf32>
    %298 = arith.mulf %265, %297 : vector<16x64xf32>
    %299 = arith.addf %289, %298 : vector<16x64xf32>
    %300 = vector.extract_strided_slice %6 {offsets = [3, 0], sizes = [1, 64], strides = [1, 1]} : vector<9x64xf32> to vector<1x64xf32>
    %301 = vector.shape_cast %300 : vector<1x64xf32> to vector<64xf32>
    %302 = vector.shape_cast %301 : vector<64xf32> to vector<1x64xf32>
    %303 = vector.broadcast %302 : vector<1x64xf32> to vector<16x64xf32>
    %304 = arith.mulf %299, %303 : vector<16x64xf32>
    %305 = arith.addf %248, %304 : vector<16x64xf32>
    %306 = vector.extract_strided_slice %76 {offsets = [0, 512], sizes = [16, 64], strides = [1, 1]} : vector<16x1152xf32> to vector<16x64xf32>
    %307 = vector.extract_strided_slice %76 {offsets = [0, 576], sizes = [16, 64], strides = [1, 1]} : vector<16x1152xf32> to vector<16x64xf32>
    %cst_136 = arith.constant 0.000000e+00 : f32
    %308 = vector.broadcast %cst_136 : f32 to vector<16x64xf32>
    %309 = arith.subf %308, %306 : vector<16x64xf32>
    %cst_137 = arith.constant 0.000000e+00 : f32
    %310 = vector.broadcast %cst_137 : f32 to vector<16x64xf32>
    %311 = arith.maximumf %309, %310 : vector<16x64xf32>
    %cst_138 = arith.constant 0.000000e+00 : f32
    %312 = vector.broadcast %cst_138 : f32 to vector<16x64xf32>
    %313 = arith.maximumf %306, %312 : vector<16x64xf32>
    %cst_139 = arith.constant 1.000000e+00 : f32
    %314 = vector.broadcast %cst_139 : f32 to vector<16x64xf32>
    %315 = arith.subf %314, %311 : vector<16x64xf32>
    %316 = arith.subf %315, %313 : vector<16x64xf32>
    %cst_140 = arith.constant 0.000000e+00 : f32
    %317 = vector.broadcast %cst_140 : f32 to vector<16x64xf32>
    %318 = arith.subf %317, %307 : vector<16x64xf32>
    %cst_141 = arith.constant 0.000000e+00 : f32
    %319 = vector.broadcast %cst_141 : f32 to vector<16x64xf32>
    %320 = arith.maximumf %318, %319 : vector<16x64xf32>
    %cst_142 = arith.constant 0.000000e+00 : f32
    %321 = vector.broadcast %cst_142 : f32 to vector<16x64xf32>
    %322 = arith.maximumf %307, %321 : vector<16x64xf32>
    %cst_143 = arith.constant 1.000000e+00 : f32
    %323 = vector.broadcast %cst_143 : f32 to vector<16x64xf32>
    %324 = arith.subf %323, %320 : vector<16x64xf32>
    %325 = arith.subf %324, %322 : vector<16x64xf32>
    %cst_144 = arith.constant 0.000000e+00 : f32
    %326 = vector.broadcast %cst_144 : f32 to vector<16x64xf32>
    %c1_145 = arith.constant 1 : index
    %c4_146 = arith.constant 4 : index
    %327 = vector.load %arg7[%c1_145, %c4_146] : memref<20x80xf32, #tpu.memory_space<vmem>>, vector<16x64xf32>
    %328 = arith.mulf %311, %327 : vector<16x64xf32>
    %c2_147 = arith.constant 2 : index
    %c4_148 = arith.constant 4 : index
    %329 = vector.load %arg7[%c2_147, %c4_148] : memref<20x80xf32, #tpu.memory_space<vmem>>, vector<16x64xf32>
    %330 = arith.mulf %316, %329 : vector<16x64xf32>
    %331 = arith.addf %328, %330 : vector<16x64xf32>
    %c3_149 = arith.constant 3 : index
    %c4_150 = arith.constant 4 : index
    %332 = vector.load %arg7[%c3_149, %c4_150] : memref<20x80xf32, #tpu.memory_space<vmem>>, vector<16x64xf32>
    %333 = arith.mulf %313, %332 : vector<16x64xf32>
    %334 = arith.addf %331, %333 : vector<16x64xf32>
    %335 = arith.mulf %320, %334 : vector<16x64xf32>
    %336 = arith.addf %326, %335 : vector<16x64xf32>
    %c1_151 = arith.constant 1 : index
    %c8_152 = arith.constant 8 : index
    %337 = vector.load %arg7[%c1_151, %c8_152] : memref<20x80xf32, #tpu.memory_space<vmem>>, vector<16x64xf32>
    %338 = arith.mulf %311, %337 : vector<16x64xf32>
    %c2_153 = arith.constant 2 : index
    %c8_154 = arith.constant 8 : index
    %339 = vector.load %arg7[%c2_153, %c8_154] : memref<20x80xf32, #tpu.memory_space<vmem>>, vector<16x64xf32>
    %340 = arith.mulf %316, %339 : vector<16x64xf32>
    %341 = arith.addf %338, %340 : vector<16x64xf32>
    %c3_155 = arith.constant 3 : index
    %c8_156 = arith.constant 8 : index
    %342 = vector.load %arg7[%c3_155, %c8_156] : memref<20x80xf32, #tpu.memory_space<vmem>>, vector<16x64xf32>
    %343 = arith.mulf %313, %342 : vector<16x64xf32>
    %344 = arith.addf %341, %343 : vector<16x64xf32>
    %345 = arith.mulf %325, %344 : vector<16x64xf32>
    %346 = arith.addf %336, %345 : vector<16x64xf32>
    %c1_157 = arith.constant 1 : index
    %c12_158 = arith.constant 12 : index
    %347 = vector.load %arg7[%c1_157, %c12_158] : memref<20x80xf32, #tpu.memory_space<vmem>>, vector<16x64xf32>
    %348 = arith.mulf %311, %347 : vector<16x64xf32>
    %c2_159 = arith.constant 2 : index
    %c12_160 = arith.constant 12 : index
    %349 = vector.load %arg7[%c2_159, %c12_160] : memref<20x80xf32, #tpu.memory_space<vmem>>, vector<16x64xf32>
    %350 = arith.mulf %316, %349 : vector<16x64xf32>
    %351 = arith.addf %348, %350 : vector<16x64xf32>
    %c3_161 = arith.constant 3 : index
    %c12_162 = arith.constant 12 : index
    %352 = vector.load %arg7[%c3_161, %c12_162] : memref<20x80xf32, #tpu.memory_space<vmem>>, vector<16x64xf32>
    %353 = arith.mulf %313, %352 : vector<16x64xf32>
    %354 = arith.addf %351, %353 : vector<16x64xf32>
    %355 = arith.mulf %322, %354 : vector<16x64xf32>
    %356 = arith.addf %346, %355 : vector<16x64xf32>
    %357 = vector.extract_strided_slice %6 {offsets = [4, 0], sizes = [1, 64], strides = [1, 1]} : vector<9x64xf32> to vector<1x64xf32>
    %358 = vector.shape_cast %357 : vector<1x64xf32> to vector<64xf32>
    %359 = vector.shape_cast %358 : vector<64xf32> to vector<1x64xf32>
    %360 = vector.broadcast %359 : vector<1x64xf32> to vector<16x64xf32>
    %361 = arith.mulf %356, %360 : vector<16x64xf32>
    %362 = arith.addf %305, %361 : vector<16x64xf32>
    %363 = vector.extract_strided_slice %76 {offsets = [0, 640], sizes = [16, 64], strides = [1, 1]} : vector<16x1152xf32> to vector<16x64xf32>
    %364 = vector.extract_strided_slice %76 {offsets = [0, 704], sizes = [16, 64], strides = [1, 1]} : vector<16x1152xf32> to vector<16x64xf32>
    %cst_163 = arith.constant 0.000000e+00 : f32
    %365 = vector.broadcast %cst_163 : f32 to vector<16x64xf32>
    %366 = arith.subf %365, %363 : vector<16x64xf32>
    %cst_164 = arith.constant 0.000000e+00 : f32
    %367 = vector.broadcast %cst_164 : f32 to vector<16x64xf32>
    %368 = arith.maximumf %366, %367 : vector<16x64xf32>
    %cst_165 = arith.constant 0.000000e+00 : f32
    %369 = vector.broadcast %cst_165 : f32 to vector<16x64xf32>
    %370 = arith.maximumf %363, %369 : vector<16x64xf32>
    %cst_166 = arith.constant 1.000000e+00 : f32
    %371 = vector.broadcast %cst_166 : f32 to vector<16x64xf32>
    %372 = arith.subf %371, %368 : vector<16x64xf32>
    %373 = arith.subf %372, %370 : vector<16x64xf32>
    %cst_167 = arith.constant 0.000000e+00 : f32
    %374 = vector.broadcast %cst_167 : f32 to vector<16x64xf32>
    %375 = arith.subf %374, %364 : vector<16x64xf32>
    %cst_168 = arith.constant 0.000000e+00 : f32
    %376 = vector.broadcast %cst_168 : f32 to vector<16x64xf32>
    %377 = arith.maximumf %375, %376 : vector<16x64xf32>
    %cst_169 = arith.constant 0.000000e+00 : f32
    %378 = vector.broadcast %cst_169 : f32 to vector<16x64xf32>
    %379 = arith.maximumf %364, %378 : vector<16x64xf32>
    %cst_170 = arith.constant 1.000000e+00 : f32
    %380 = vector.broadcast %cst_170 : f32 to vector<16x64xf32>
    %381 = arith.subf %380, %377 : vector<16x64xf32>
    %382 = arith.subf %381, %379 : vector<16x64xf32>
    %cst_171 = arith.constant 0.000000e+00 : f32
    %383 = vector.broadcast %cst_171 : f32 to vector<16x64xf32>
    %c1_172 = arith.constant 1 : index
    %c8_173 = arith.constant 8 : index
    %384 = vector.load %arg7[%c1_172, %c8_173] : memref<20x80xf32, #tpu.memory_space<vmem>>, vector<16x64xf32>
    %385 = arith.mulf %368, %384 : vector<16x64xf32>
    %c2_174 = arith.constant 2 : index
    %c8_175 = arith.constant 8 : index
    %386 = vector.load %arg7[%c2_174, %c8_175] : memref<20x80xf32, #tpu.memory_space<vmem>>, vector<16x64xf32>
    %387 = arith.mulf %373, %386 : vector<16x64xf32>
    %388 = arith.addf %385, %387 : vector<16x64xf32>
    %c3_176 = arith.constant 3 : index
    %c8_177 = arith.constant 8 : index
    %389 = vector.load %arg7[%c3_176, %c8_177] : memref<20x80xf32, #tpu.memory_space<vmem>>, vector<16x64xf32>
    %390 = arith.mulf %370, %389 : vector<16x64xf32>
    %391 = arith.addf %388, %390 : vector<16x64xf32>
    %392 = arith.mulf %377, %391 : vector<16x64xf32>
    %393 = arith.addf %383, %392 : vector<16x64xf32>
    %c1_178 = arith.constant 1 : index
    %c12_179 = arith.constant 12 : index
    %394 = vector.load %arg7[%c1_178, %c12_179] : memref<20x80xf32, #tpu.memory_space<vmem>>, vector<16x64xf32>
    %395 = arith.mulf %368, %394 : vector<16x64xf32>
    %c2_180 = arith.constant 2 : index
    %c12_181 = arith.constant 12 : index
    %396 = vector.load %arg7[%c2_180, %c12_181] : memref<20x80xf32, #tpu.memory_space<vmem>>, vector<16x64xf32>
    %397 = arith.mulf %373, %396 : vector<16x64xf32>
    %398 = arith.addf %395, %397 : vector<16x64xf32>
    %c3_182 = arith.constant 3 : index
    %c12_183 = arith.constant 12 : index
    %399 = vector.load %arg7[%c3_182, %c12_183] : memref<20x80xf32, #tpu.memory_space<vmem>>, vector<16x64xf32>
    %400 = arith.mulf %370, %399 : vector<16x64xf32>
    %401 = arith.addf %398, %400 : vector<16x64xf32>
    %402 = arith.mulf %382, %401 : vector<16x64xf32>
    %403 = arith.addf %393, %402 : vector<16x64xf32>
    %c1_184 = arith.constant 1 : index
    %c16_185 = arith.constant 16 : index
    %404 = vector.load %arg7[%c1_184, %c16_185] : memref<20x80xf32, #tpu.memory_space<vmem>>, vector<16x64xf32>
    %405 = arith.mulf %368, %404 : vector<16x64xf32>
    %c2_186 = arith.constant 2 : index
    %c16_187 = arith.constant 16 : index
    %406 = vector.load %arg7[%c2_186, %c16_187] : memref<20x80xf32, #tpu.memory_space<vmem>>, vector<16x64xf32>
    %407 = arith.mulf %373, %406 : vector<16x64xf32>
    %408 = arith.addf %405, %407 : vector<16x64xf32>
    %c3_188 = arith.constant 3 : index
    %c16_189 = arith.constant 16 : index
    %409 = vector.load %arg7[%c3_188, %c16_189] : memref<20x80xf32, #tpu.memory_space<vmem>>, vector<16x64xf32>
    %410 = arith.mulf %370, %409 : vector<16x64xf32>
    %411 = arith.addf %408, %410 : vector<16x64xf32>
    %412 = arith.mulf %379, %411 : vector<16x64xf32>
    %413 = arith.addf %403, %412 : vector<16x64xf32>
    %414 = vector.extract_strided_slice %6 {offsets = [5, 0], sizes = [1, 64], strides = [1, 1]} : vector<9x64xf32> to vector<1x64xf32>
    %415 = vector.shape_cast %414 : vector<1x64xf32> to vector<64xf32>
    %416 = vector.shape_cast %415 : vector<64xf32> to vector<1x64xf32>
    %417 = vector.broadcast %416 : vector<1x64xf32> to vector<16x64xf32>
    %418 = arith.mulf %413, %417 : vector<16x64xf32>
    %419 = arith.addf %362, %418 : vector<16x64xf32>
    %420 = vector.extract_strided_slice %76 {offsets = [0, 768], sizes = [16, 64], strides = [1, 1]} : vector<16x1152xf32> to vector<16x64xf32>
    %421 = vector.extract_strided_slice %76 {offsets = [0, 832], sizes = [16, 64], strides = [1, 1]} : vector<16x1152xf32> to vector<16x64xf32>
    %cst_190 = arith.constant 0.000000e+00 : f32
    %422 = vector.broadcast %cst_190 : f32 to vector<16x64xf32>
    %423 = arith.subf %422, %420 : vector<16x64xf32>
    %cst_191 = arith.constant 0.000000e+00 : f32
    %424 = vector.broadcast %cst_191 : f32 to vector<16x64xf32>
    %425 = arith.maximumf %423, %424 : vector<16x64xf32>
    %cst_192 = arith.constant 0.000000e+00 : f32
    %426 = vector.broadcast %cst_192 : f32 to vector<16x64xf32>
    %427 = arith.maximumf %420, %426 : vector<16x64xf32>
    %cst_193 = arith.constant 1.000000e+00 : f32
    %428 = vector.broadcast %cst_193 : f32 to vector<16x64xf32>
    %429 = arith.subf %428, %425 : vector<16x64xf32>
    %430 = arith.subf %429, %427 : vector<16x64xf32>
    %cst_194 = arith.constant 0.000000e+00 : f32
    %431 = vector.broadcast %cst_194 : f32 to vector<16x64xf32>
    %432 = arith.subf %431, %421 : vector<16x64xf32>
    %cst_195 = arith.constant 0.000000e+00 : f32
    %433 = vector.broadcast %cst_195 : f32 to vector<16x64xf32>
    %434 = arith.maximumf %432, %433 : vector<16x64xf32>
    %cst_196 = arith.constant 0.000000e+00 : f32
    %435 = vector.broadcast %cst_196 : f32 to vector<16x64xf32>
    %436 = arith.maximumf %421, %435 : vector<16x64xf32>
    %cst_197 = arith.constant 1.000000e+00 : f32
    %437 = vector.broadcast %cst_197 : f32 to vector<16x64xf32>
    %438 = arith.subf %437, %434 : vector<16x64xf32>
    %439 = arith.subf %438, %436 : vector<16x64xf32>
    %cst_198 = arith.constant 0.000000e+00 : f32
    %440 = vector.broadcast %cst_198 : f32 to vector<16x64xf32>
    %c2_199 = arith.constant 2 : index
    %c0_200 = arith.constant 0 : index
    %441 = vector.load %arg7[%c2_199, %c0_200] : memref<20x80xf32, #tpu.memory_space<vmem>>, vector<16x64xf32>
    %442 = arith.mulf %425, %441 : vector<16x64xf32>
    %c3_201 = arith.constant 3 : index
    %c0_202 = arith.constant 0 : index
    %443 = vector.load %arg7[%c3_201, %c0_202] : memref<20x80xf32, #tpu.memory_space<vmem>>, vector<16x64xf32>
    %444 = arith.mulf %430, %443 : vector<16x64xf32>
    %445 = arith.addf %442, %444 : vector<16x64xf32>
    %c4_203 = arith.constant 4 : index
    %c0_204 = arith.constant 0 : index
    %446 = vector.load %arg7[%c4_203, %c0_204] : memref<20x80xf32, #tpu.memory_space<vmem>>, vector<16x64xf32>
    %447 = arith.mulf %427, %446 : vector<16x64xf32>
    %448 = arith.addf %445, %447 : vector<16x64xf32>
    %449 = arith.mulf %434, %448 : vector<16x64xf32>
    %450 = arith.addf %440, %449 : vector<16x64xf32>
    %c2_205 = arith.constant 2 : index
    %c4_206 = arith.constant 4 : index
    %451 = vector.load %arg7[%c2_205, %c4_206] : memref<20x80xf32, #tpu.memory_space<vmem>>, vector<16x64xf32>
    %452 = arith.mulf %425, %451 : vector<16x64xf32>
    %c3_207 = arith.constant 3 : index
    %c4_208 = arith.constant 4 : index
    %453 = vector.load %arg7[%c3_207, %c4_208] : memref<20x80xf32, #tpu.memory_space<vmem>>, vector<16x64xf32>
    %454 = arith.mulf %430, %453 : vector<16x64xf32>
    %455 = arith.addf %452, %454 : vector<16x64xf32>
    %c4_209 = arith.constant 4 : index
    %c4_210 = arith.constant 4 : index
    %456 = vector.load %arg7[%c4_209, %c4_210] : memref<20x80xf32, #tpu.memory_space<vmem>>, vector<16x64xf32>
    %457 = arith.mulf %427, %456 : vector<16x64xf32>
    %458 = arith.addf %455, %457 : vector<16x64xf32>
    %459 = arith.mulf %439, %458 : vector<16x64xf32>
    %460 = arith.addf %450, %459 : vector<16x64xf32>
    %c2_211 = arith.constant 2 : index
    %c8_212 = arith.constant 8 : index
    %461 = vector.load %arg7[%c2_211, %c8_212] : memref<20x80xf32, #tpu.memory_space<vmem>>, vector<16x64xf32>
    %462 = arith.mulf %425, %461 : vector<16x64xf32>
    %c3_213 = arith.constant 3 : index
    %c8_214 = arith.constant 8 : index
    %463 = vector.load %arg7[%c3_213, %c8_214] : memref<20x80xf32, #tpu.memory_space<vmem>>, vector<16x64xf32>
    %464 = arith.mulf %430, %463 : vector<16x64xf32>
    %465 = arith.addf %462, %464 : vector<16x64xf32>
    %c4_215 = arith.constant 4 : index
    %c8_216 = arith.constant 8 : index
    %466 = vector.load %arg7[%c4_215, %c8_216] : memref<20x80xf32, #tpu.memory_space<vmem>>, vector<16x64xf32>
    %467 = arith.mulf %427, %466 : vector<16x64xf32>
    %468 = arith.addf %465, %467 : vector<16x64xf32>
    %469 = arith.mulf %436, %468 : vector<16x64xf32>
    %470 = arith.addf %460, %469 : vector<16x64xf32>
    %471 = vector.extract_strided_slice %6 {offsets = [6, 0], sizes = [1, 64], strides = [1, 1]} : vector<9x64xf32> to vector<1x64xf32>
    %472 = vector.shape_cast %471 : vector<1x64xf32> to vector<64xf32>
    %473 = vector.shape_cast %472 : vector<64xf32> to vector<1x64xf32>
    %474 = vector.broadcast %473 : vector<1x64xf32> to vector<16x64xf32>
    %475 = arith.mulf %470, %474 : vector<16x64xf32>
    %476 = arith.addf %419, %475 : vector<16x64xf32>
    %477 = vector.extract_strided_slice %76 {offsets = [0, 896], sizes = [16, 64], strides = [1, 1]} : vector<16x1152xf32> to vector<16x64xf32>
    %478 = vector.extract_strided_slice %76 {offsets = [0, 960], sizes = [16, 64], strides = [1, 1]} : vector<16x1152xf32> to vector<16x64xf32>
    %cst_217 = arith.constant 0.000000e+00 : f32
    %479 = vector.broadcast %cst_217 : f32 to vector<16x64xf32>
    %480 = arith.subf %479, %477 : vector<16x64xf32>
    %cst_218 = arith.constant 0.000000e+00 : f32
    %481 = vector.broadcast %cst_218 : f32 to vector<16x64xf32>
    %482 = arith.maximumf %480, %481 : vector<16x64xf32>
    %cst_219 = arith.constant 0.000000e+00 : f32
    %483 = vector.broadcast %cst_219 : f32 to vector<16x64xf32>
    %484 = arith.maximumf %477, %483 : vector<16x64xf32>
    %cst_220 = arith.constant 1.000000e+00 : f32
    %485 = vector.broadcast %cst_220 : f32 to vector<16x64xf32>
    %486 = arith.subf %485, %482 : vector<16x64xf32>
    %487 = arith.subf %486, %484 : vector<16x64xf32>
    %cst_221 = arith.constant 0.000000e+00 : f32
    %488 = vector.broadcast %cst_221 : f32 to vector<16x64xf32>
    %489 = arith.subf %488, %478 : vector<16x64xf32>
    %cst_222 = arith.constant 0.000000e+00 : f32
    %490 = vector.broadcast %cst_222 : f32 to vector<16x64xf32>
    %491 = arith.maximumf %489, %490 : vector<16x64xf32>
    %cst_223 = arith.constant 0.000000e+00 : f32
    %492 = vector.broadcast %cst_223 : f32 to vector<16x64xf32>
    %493 = arith.maximumf %478, %492 : vector<16x64xf32>
    %cst_224 = arith.constant 1.000000e+00 : f32
    %494 = vector.broadcast %cst_224 : f32 to vector<16x64xf32>
    %495 = arith.subf %494, %491 : vector<16x64xf32>
    %496 = arith.subf %495, %493 : vector<16x64xf32>
    %cst_225 = arith.constant 0.000000e+00 : f32
    %497 = vector.broadcast %cst_225 : f32 to vector<16x64xf32>
    %c2_226 = arith.constant 2 : index
    %c4_227 = arith.constant 4 : index
    %498 = vector.load %arg7[%c2_226, %c4_227] : memref<20x80xf32, #tpu.memory_space<vmem>>, vector<16x64xf32>
    %499 = arith.mulf %482, %498 : vector<16x64xf32>
    %c3_228 = arith.constant 3 : index
    %c4_229 = arith.constant 4 : index
    %500 = vector.load %arg7[%c3_228, %c4_229] : memref<20x80xf32, #tpu.memory_space<vmem>>, vector<16x64xf32>
    %501 = arith.mulf %487, %500 : vector<16x64xf32>
    %502 = arith.addf %499, %501 : vector<16x64xf32>
    %c4_230 = arith.constant 4 : index
    %c4_231 = arith.constant 4 : index
    %503 = vector.load %arg7[%c4_230, %c4_231] : memref<20x80xf32, #tpu.memory_space<vmem>>, vector<16x64xf32>
    %504 = arith.mulf %484, %503 : vector<16x64xf32>
    %505 = arith.addf %502, %504 : vector<16x64xf32>
    %506 = arith.mulf %491, %505 : vector<16x64xf32>
    %507 = arith.addf %497, %506 : vector<16x64xf32>
    %c2_232 = arith.constant 2 : index
    %c8_233 = arith.constant 8 : index
    %508 = vector.load %arg7[%c2_232, %c8_233] : memref<20x80xf32, #tpu.memory_space<vmem>>, vector<16x64xf32>
    %509 = arith.mulf %482, %508 : vector<16x64xf32>
    %c3_234 = arith.constant 3 : index
    %c8_235 = arith.constant 8 : index
    %510 = vector.load %arg7[%c3_234, %c8_235] : memref<20x80xf32, #tpu.memory_space<vmem>>, vector<16x64xf32>
    %511 = arith.mulf %487, %510 : vector<16x64xf32>
    %512 = arith.addf %509, %511 : vector<16x64xf32>
    %c4_236 = arith.constant 4 : index
    %c8_237 = arith.constant 8 : index
    %513 = vector.load %arg7[%c4_236, %c8_237] : memref<20x80xf32, #tpu.memory_space<vmem>>, vector<16x64xf32>
    %514 = arith.mulf %484, %513 : vector<16x64xf32>
    %515 = arith.addf %512, %514 : vector<16x64xf32>
    %516 = arith.mulf %496, %515 : vector<16x64xf32>
    %517 = arith.addf %507, %516 : vector<16x64xf32>
    %c2_238 = arith.constant 2 : index
    %c12_239 = arith.constant 12 : index
    %518 = vector.load %arg7[%c2_238, %c12_239] : memref<20x80xf32, #tpu.memory_space<vmem>>, vector<16x64xf32>
    %519 = arith.mulf %482, %518 : vector<16x64xf32>
    %c3_240 = arith.constant 3 : index
    %c12_241 = arith.constant 12 : index
    %520 = vector.load %arg7[%c3_240, %c12_241] : memref<20x80xf32, #tpu.memory_space<vmem>>, vector<16x64xf32>
    %521 = arith.mulf %487, %520 : vector<16x64xf32>
    %522 = arith.addf %519, %521 : vector<16x64xf32>
    %c4_242 = arith.constant 4 : index
    %c12_243 = arith.constant 12 : index
    %523 = vector.load %arg7[%c4_242, %c12_243] : memref<20x80xf32, #tpu.memory_space<vmem>>, vector<16x64xf32>
    %524 = arith.mulf %484, %523 : vector<16x64xf32>
    %525 = arith.addf %522, %524 : vector<16x64xf32>
    %526 = arith.mulf %493, %525 : vector<16x64xf32>
    %527 = arith.addf %517, %526 : vector<16x64xf32>
    %528 = vector.extract_strided_slice %6 {offsets = [7, 0], sizes = [1, 64], strides = [1, 1]} : vector<9x64xf32> to vector<1x64xf32>
    %529 = vector.shape_cast %528 : vector<1x64xf32> to vector<64xf32>
    %530 = vector.shape_cast %529 : vector<64xf32> to vector<1x64xf32>
    %531 = vector.broadcast %530 : vector<1x64xf32> to vector<16x64xf32>
    %532 = arith.mulf %527, %531 : vector<16x64xf32>
    %533 = arith.addf %476, %532 : vector<16x64xf32>
    %534 = vector.extract_strided_slice %76 {offsets = [0, 1024], sizes = [16, 64], strides = [1, 1]} : vector<16x1152xf32> to vector<16x64xf32>
    %535 = vector.extract_strided_slice %76 {offsets = [0, 1088], sizes = [16, 64], strides = [1, 1]} : vector<16x1152xf32> to vector<16x64xf32>
    %cst_244 = arith.constant 0.000000e+00 : f32
    %536 = vector.broadcast %cst_244 : f32 to vector<16x64xf32>
    %537 = arith.subf %536, %534 : vector<16x64xf32>
    %cst_245 = arith.constant 0.000000e+00 : f32
    %538 = vector.broadcast %cst_245 : f32 to vector<16x64xf32>
    %539 = arith.maximumf %537, %538 : vector<16x64xf32>
    %cst_246 = arith.constant 0.000000e+00 : f32
    %540 = vector.broadcast %cst_246 : f32 to vector<16x64xf32>
    %541 = arith.maximumf %534, %540 : vector<16x64xf32>
    %cst_247 = arith.constant 1.000000e+00 : f32
    %542 = vector.broadcast %cst_247 : f32 to vector<16x64xf32>
    %543 = arith.subf %542, %539 : vector<16x64xf32>
    %544 = arith.subf %543, %541 : vector<16x64xf32>
    %cst_248 = arith.constant 0.000000e+00 : f32
    %545 = vector.broadcast %cst_248 : f32 to vector<16x64xf32>
    %546 = arith.subf %545, %535 : vector<16x64xf32>
    %cst_249 = arith.constant 0.000000e+00 : f32
    %547 = vector.broadcast %cst_249 : f32 to vector<16x64xf32>
    %548 = arith.maximumf %546, %547 : vector<16x64xf32>
    %cst_250 = arith.constant 0.000000e+00 : f32
    %549 = vector.broadcast %cst_250 : f32 to vector<16x64xf32>
    %550 = arith.maximumf %535, %549 : vector<16x64xf32>
    %cst_251 = arith.constant 1.000000e+00 : f32
    %551 = vector.broadcast %cst_251 : f32 to vector<16x64xf32>
    %552 = arith.subf %551, %548 : vector<16x64xf32>
    %553 = arith.subf %552, %550 : vector<16x64xf32>
    %cst_252 = arith.constant 0.000000e+00 : f32
    %554 = vector.broadcast %cst_252 : f32 to vector<16x64xf32>
    %c2_253 = arith.constant 2 : index
    %c8_254 = arith.constant 8 : index
    %555 = vector.load %arg7[%c2_253, %c8_254] : memref<20x80xf32, #tpu.memory_space<vmem>>, vector<16x64xf32>
    %556 = arith.mulf %539, %555 : vector<16x64xf32>
    %c3_255 = arith.constant 3 : index
    %c8_256 = arith.constant 8 : index
    %557 = vector.load %arg7[%c3_255, %c8_256] : memref<20x80xf32, #tpu.memory_space<vmem>>, vector<16x64xf32>
    %558 = arith.mulf %544, %557 : vector<16x64xf32>
    %559 = arith.addf %556, %558 : vector<16x64xf32>
    %c4_257 = arith.constant 4 : index
    %c8_258 = arith.constant 8 : index
    %560 = vector.load %arg7[%c4_257, %c8_258] : memref<20x80xf32, #tpu.memory_space<vmem>>, vector<16x64xf32>
    %561 = arith.mulf %541, %560 : vector<16x64xf32>
    %562 = arith.addf %559, %561 : vector<16x64xf32>
    %563 = arith.mulf %548, %562 : vector<16x64xf32>
    %564 = arith.addf %554, %563 : vector<16x64xf32>
    %c2_259 = arith.constant 2 : index
    %c12_260 = arith.constant 12 : index
    %565 = vector.load %arg7[%c2_259, %c12_260] : memref<20x80xf32, #tpu.memory_space<vmem>>, vector<16x64xf32>
    %566 = arith.mulf %539, %565 : vector<16x64xf32>
    %c3_261 = arith.constant 3 : index
    %c12_262 = arith.constant 12 : index
    %567 = vector.load %arg7[%c3_261, %c12_262] : memref<20x80xf32, #tpu.memory_space<vmem>>, vector<16x64xf32>
    %568 = arith.mulf %544, %567 : vector<16x64xf32>
    %569 = arith.addf %566, %568 : vector<16x64xf32>
    %c4_263 = arith.constant 4 : index
    %c12_264 = arith.constant 12 : index
    %570 = vector.load %arg7[%c4_263, %c12_264] : memref<20x80xf32, #tpu.memory_space<vmem>>, vector<16x64xf32>
    %571 = arith.mulf %541, %570 : vector<16x64xf32>
    %572 = arith.addf %569, %571 : vector<16x64xf32>
    %573 = arith.mulf %553, %572 : vector<16x64xf32>
    %574 = arith.addf %564, %573 : vector<16x64xf32>
    %c2_265 = arith.constant 2 : index
    %c16_266 = arith.constant 16 : index
    %575 = vector.load %arg7[%c2_265, %c16_266] : memref<20x80xf32, #tpu.memory_space<vmem>>, vector<16x64xf32>
    %576 = arith.mulf %539, %575 : vector<16x64xf32>
    %c3_267 = arith.constant 3 : index
    %c16_268 = arith.constant 16 : index
    %577 = vector.load %arg7[%c3_267, %c16_268] : memref<20x80xf32, #tpu.memory_space<vmem>>, vector<16x64xf32>
    %578 = arith.mulf %544, %577 : vector<16x64xf32>
    %579 = arith.addf %576, %578 : vector<16x64xf32>
    %c4_269 = arith.constant 4 : index
    %c16_270 = arith.constant 16 : index
    %580 = vector.load %arg7[%c4_269, %c16_270] : memref<20x80xf32, #tpu.memory_space<vmem>>, vector<16x64xf32>
    %581 = arith.mulf %541, %580 : vector<16x64xf32>
    %582 = arith.addf %579, %581 : vector<16x64xf32>
    %583 = arith.mulf %550, %582 : vector<16x64xf32>
    %584 = arith.addf %574, %583 : vector<16x64xf32>
    %585 = vector.extract_strided_slice %6 {offsets = [8, 0], sizes = [1, 64], strides = [1, 1]} : vector<9x64xf32> to vector<1x64xf32>
    %586 = vector.shape_cast %585 : vector<1x64xf32> to vector<64xf32>
    %587 = vector.shape_cast %586 : vector<64xf32> to vector<1x64xf32>
    %588 = vector.broadcast %587 : vector<1x64xf32> to vector<16x64xf32>
    %589 = arith.mulf %584, %588 : vector<16x64xf32>
    %590 = arith.addf %533, %589 : vector<16x64xf32>
    %c0_271 = arith.constant 0 : index
    %c0_272 = arith.constant 0 : index
    %591 = vector.load %arg5[%c0_271, %c0_272] : memref<64x128xf32, #tpu.memory_space<vmem>>, vector<64x128xf32>
    %cst_273 = arith.constant dense<0.000000e+00> : vector<16x128xf32>
    %592 = tpu.matmul %590, %591, %cst_273 {dimension_numbers = #tpu.dot_dimension_numbers<[1], [0], [0], [1], [0, 0, 1, 1], [], []>} : vector<16x64xf32>, vector<64x128xf32>, vector<16x128xf32> -> vector<16x128xf32>
    %cst_274 = arith.constant 3.000000e+00 : f32
    %593 = vector.broadcast %cst_274 : f32 to vector<16x128xf32>
    %594 = arith.addf %592, %593 : vector<16x128xf32>
    %cst_275 = arith.constant 0.000000e+00 : f32
    %cst_276 = arith.constant 6.000000e+00 : f32
    %595 = vector.broadcast %cst_275 : f32 to vector<16x128xf32>
    %596 = arith.maximumf %595, %594 : vector<16x128xf32>
    %597 = vector.broadcast %cst_276 : f32 to vector<16x128xf32>
    %598 = arith.minimumf %597, %596 : vector<16x128xf32>
    %599 = arith.mulf %592, %598 : vector<16x128xf32>
    %cst_277 = arith.constant 0.166666672 : f32
    %600 = vector.broadcast %cst_277 : f32 to vector<16x128xf32>
    %601 = arith.mulf %599, %600 : vector<16x128xf32>
    %c0_278 = arith.constant 0 : index
    %c0_279 = arith.constant 0 : index
    %c0_280 = arith.constant 0 : index
    %602 = vector.load %arg6[%c0_278, %c0_279, %c0_280] : memref<1x16x128xf32, #tpu.memory_space<vmem>>, vector<1x16x128xf32>
    %603 = vector.shape_cast %602 : vector<1x16x128xf32> to vector<16x128xf32>
    %604 = vector.shape_cast %601 : vector<16x128xf32> to vector<1x16x128xf32>
    tpu.vector_store %arg6[%c0_278, %c0_279, %c0_280], %604 {strides = array<i32>} : memref<1x16x128xf32, #tpu.memory_space<vmem>>, vector<1x16x128xf32>,
    return
  }
  func.func @transform_0(%arg0: i32) -> (i32, i32, i32) {
    %c0_i32 = arith.constant 0 : i32
    %c0_i32_0 = arith.constant 0 : i32
    %c0_i32_1 = arith.constant 0 : i32
    return %arg0, %c0_i32, %c0_i32_0 : i32, i32, i32
  }
  func.func @transform_1(%arg0: i32) -> (i32, i32) {
    %c0_i32 = arith.constant 0 : i32
    %c0_i32_0 = arith.constant 0 : i32
    %c0_i32_1 = arith.constant 0 : i32
    return %c0_i32, %c0_i32_0 : i32, i32
  }
  func.func @transform_2(%arg0: i32) -> (i32, i32) {
    %c0_i32 = arith.constant 0 : i32
    %c0_i32_0 = arith.constant 0 : i32
    %c0_i32_1 = arith.constant 0 : i32
    return %c0_i32, %c0_i32_0 : i32, i32
  }
  func.func @transform_3(%arg0: i32) -> (i32, i32) {
    %c0_i32 = arith.constant 0 : i32
    %c0_i32_0 = arith.constant 0 : i32
    %c0_i32_1 = arith.constant 0 : i32
    return %c0_i32, %c0_i32_0 : i32, i32
  }
  func.func @transform_4(%arg0: i32) -> (i32, i32) {
    %c0_i32 = arith.constant 0 : i32
    %c0_i32_0 = arith.constant 0 : i32
    %c0_i32_1 = arith.constant 0 : i32
    return %c0_i32, %c0_i32_0 : i32, i32
  }
  func.func @transform_5(%arg0: i32) -> (i32, i32, i32) {
    %c0_i32 = arith.constant 0 : i32
    %c0_i32_0 = arith.constant 0 : i32
    %c0_i32_1 = arith.constant 0 : i32
    return %arg0, %c0_i32, %c0_i32_0 : i32, i32, i32
  }
}

</mosaic_0001>

<llo_original>
// kernel: mul.26
$region0: #{mul.26}
  #allocation0 [shape = 's32[1]{0}', space=sflag, size = 0x4, scoped, tag = 'scoped memory for mul.26']
  %s0 = inlined_call_operand.vmem [shape: f32[16,4,18,16], index: 0, kind: input, shape index: {}]
  %s1 = inlined_call_operand.vmem [shape: f32[16,4,18,16,4], index: 1, kind: output, shape index: {}]
  loop: start=0, step=1, limit=34
  $region2: #{mul.26} parent=0 // loop_pre_header
    _
  $region3: #{mul.26} parent=0 // loop_header
    %s3 = sphi 0, %s7
    %p4 = scmp.ge.s32.totalorder %s3, 34
    %s18 = sphi 0, %s91
    %s19 = sphi 0, %s87
    %s20 = sphi 0, %s83
    %s21 = sphi 0, %s79
    %s22 = sphi 0, %s75
    %s23 = sphi 0, %s18
    %s24 = sphi 0, %s19
    %s25 = sphi 0, %s20
    %s26 = sphi 0, %s21
    %s27 = sphi 0, %s22
    %s28 = sphi 0, %s23
    %s29 = sphi 0, %s24
    %s30 = sphi 0, %s25
    %s31 = sphi 0, %s26
    %s32 = sphi 0, %s27
    %s33 = sphi 0, %s28
    %s34 = sphi 0, %s29
    %s35 = sphi 0, %s30
    %s36 = sphi 0, %s31
    %s37 = sphi 0, %s32
    %s38 = sphi 0, %s33
    %s39 = sphi 0, %s34
    %s40 = sphi 0, %s35
    %s41 = sphi 0, %s36
    %s42 = sphi 0, %s37
    %s43 = sphi 0, %s38
    %s44 = sphi 0, %s39
    %s45 = sphi 0, %s40
    %s46 = sphi 0, %s41
    %s47 = sphi 0, %s42
    %s48 = sphi 0, %s43
    %s49 = sphi 0, %s44
    %s50 = sphi 0, %s45
    %s51 = sphi 0, %s46
    %s52 = sphi 0, %s47
    %s53 = sphi 0, %s48
    %s54 = sphi 0, %s49
    %s55 = sphi 0, %s50
    %s56 = sphi 0, %s51
    %s57 = sphi 0, %s52
    %s58 = sphi 0, %s53
    %s59 = sphi 0, %s54
    %s60 = sphi 0, %s55
    %s61 = sphi 0, %s56
    %s62 = sphi 0, %s57
    %s63 = sphi 0, %s58
    %s64 = sphi 0, %s59
    %s65 = sphi 0, %s60
    %s66 = sphi 0, %s61
    %s67 = sphi 0, %s62
    %s68 = sphi 0, %s63
    %s69 = sphi 0, %s64
    %s70 = sphi 0, %s65
    %s71 = sphi 0, %s66
    %s72 = sphi 0, %s67
    %s116 = sphi 0, %s118
    %s119 = sphi 0, %s116
    %s120 = sphi 0, %s119
    %s121 = sphi 0, %s120
    %s122 = sphi 0, %s121
    %s123 = sphi 0, %s122
    %s124 = sphi 0, %s123
    %s125 = sphi 0, %s124
    %s126 = sphi 0, %s125
    %s127 = sphi 0, %s126
    %s128 = sphi 0, %s127
    %s192 = sphi 0, %s128
  $region4: #{mul.26} parent=0 // loop_header_branch
    %6 = sbr.rel (%p4) target = $region8
  $region5: #{mul.26} parent=0 // loop_body
    %s8 = ssub.s32 %s3, 1
    %s9 = ssub.s32 %s3, 2
    %s10 = ssub.s32 %s3, 3
    %s11 = ssub.s32 %s3, 4
    %s12 = ssub.s32 %s3, 5
    %s13 = ssub.s32 %s3, 6
    %s14 = ssub.s32 %s3, 7
    %s15 = ssub.s32 %s3, 8
    %s16 = ssub.s32 %s3, 9
    %s17 = ssub.s32 %s3, 10
    %s73 = sadd.s32 1, %s22
    %p74 = scmp.ge.s32.totalorder %s73, 1
    %s75 = scalar_select %p74, 0, %s73
    %s76 = sadd.s32 1, %s21
    %s77 = scalar_select %p74, %s76, %s21
    %p78 = scmp.ge.s32.totalorder %s77, 1
    %s79 = scalar_select %p78, 0, %s77
    %s80 = sadd.s32 1, %s20
    %s81 = scalar_select %p78, %s80, %s20
    %p82 = scmp.ge.s32.totalorder %s81, 3
    %s83 = scalar_select %p82, 0, %s81
    %s84 = sadd.s32 1, %s19
    %s85 = scalar_select %p82, %s84, %s19
    %p86 = scmp.ge.s32.totalorder %s85, 1
    %s87 = scalar_select %p86, 0, %s85
    %s88 = sadd.s32 1, %s18
    %s89 = scalar_select %p86, %s88, %s18
    %p90 = scmp.ge.s32.totalorder %s89, 8
    %s91 = scalar_select %p90, 0, %s89
    %s92 = smul.addr %s18, 2
    %s94 = smul.addr %s19, 4
    %s96 = smul.addr %s20, 6
    %s97 = sshrl.u32 %s96, 3
    %s98 = smul.addr %s21, 16
    %s99 = sshrl.u32 %s98, 7
    %s100 = smul.addr %s91, 2
    %s102 = smul.addr %s87, 4
    %s104 = smul.addr %s83, 6
    %s105 = sshrl.u32 %s104, 3
    %s106 = smul.addr %s79, 16
    %s107 = sshrl.u32 %s106, 7
    %s108 = ssub.s32 %s92, %s100
    %s109 = ssub.s32 %s94, %s102
    %s110 = sor.u32 %s108, %s109
    %s111 = ssub.s32 %s97, %s105
    %s112 = sor.u32 %s110, %s111
    %s113 = ssub.s32 %s99, %s107
    %s114 = sor.u32 %s112, %s113
    %p115 = scmp.eq.s32.totalorder %s114, 0
    %s117 = sadd.s32 %s116, 1
    %s118 = scalar_select %p115, %s116, %s117
    %p129 = pneg %p115
    %p130 = scmp.eq.s32.totalorder %s3, 23
    %p131 = por %p129, %p130
    %p132 = scmp.ne.s32.totalorder %s116, %s119
    %p133 = scmp.eq.s32.totalorder %s3, 0
    %p134 = por %p132, %p133
    %p135 = scmp.ne.s32.totalorder %s116, %s119
    %p136 = scmp.eq.s32.totalorder %s8, 23
    %p137 = por %p135, %p136
    %p138 = scmp.ne.s32.totalorder %s119, %s120
    %p139 = scmp.eq.s32.totalorder %s8, 0
    %p140 = por %p138, %p139
    %p141 = scmp.ne.s32.totalorder %s119, %s120
    %p142 = scmp.eq.s32.totalorder %s9, 23
    %p143 = por %p141, %p142
    %p144 = scmp.ne.s32.totalorder %s120, %s121
    %p145 = scmp.eq.s32.totalorder %s9, 0
    %p146 = por %p144, %p145
    %p147 = scmp.ne.s32.totalorder %s120, %s121
    %p148 = scmp.eq.s32.totalorder %s10, 23
    %p149 = por %p147, %p148
    %p150 = scmp.ne.s32.totalorder %s121, %s122
    %p151 = scmp.eq.s32.totalorder %s10, 0
    %p152 = por %p150, %p151
    %p153 = scmp.ne.s32.totalorder %s121, %s122
    %p154 = scmp.eq.s32.totalorder %s11, 23
    %p155 = por %p153, %p154
    %p156 = scmp.ne.s32.totalorder %s122, %s123
    %p157 = scmp.eq.s32.totalorder %s11, 0
    %p158 = por %p156, %p157
    %p159 = scmp.ne.s32.totalorder %s122, %s123
    %p160 = scmp.eq.s32.totalorder %s12, 23
    %p161 = por %p159, %p160
    %p162 = scmp.ne.s32.totalorder %s123, %s124
    %p163 = scmp.eq.s32.totalorder %s12, 0
    %p164 = por %p162, %p163
    %p165 = scmp.ne.s32.totalorder %s123, %s124
    %p166 = scmp.eq.s32.totalorder %s13, 23
    %p167 = por %p165, %p166
    %p168 = scmp.ne.s32.totalorder %s124, %s125
    %p169 = scmp.eq.s32.totalorder %s13, 0
    %p170 = por %p168, %p169
    %p171 = scmp.ne.s32.totalorder %s124, %s125
    %p172 = scmp.eq.s32.totalorder %s14, 23
    %p173 = por %p171, %p172
    %p174 = scmp.ne.s32.totalorder %s125, %s126
    %p175 = scmp.eq.s32.totalorder %s14, 0
    %p176 = por %p174, %p175
    %p177 = scmp.ne.s32.totalorder %s125, %s126
    %p178 = scmp.eq.s32.totalorder %s15, 23
    %p179 = por %p177, %p178
    %p180 = scmp.ne.s32.totalorder %s126, %s127
    %p181 = scmp.eq.s32.totalorder %s15, 0
    %p182 = por %p180, %p181
    %p183 = scmp.ne.s32.totalorder %s126, %s127
    %p184 = scmp.eq.s32.totalorder %s16, 23
    %p185 = por %p183, %p184
    %p186 = scmp.ne.s32.totalorder %s127, %s128
    %p187 = scmp.eq.s32.totalorder %s16, 0
    %p188 = por %p186, %p187
    %p189 = scmp.ne.s32.totalorder %s127, %s128
    %p190 = scmp.eq.s32.totalorder %s17, 23
    %p191 = por %p189, %p190
    %p193 = scmp.ne.s32.totalorder %s128, %s192
    %p194 = scmp.eq.s32.totalorder %s17, 0
    %p195 = por %p193, %p194
    %p196 = scmp.le.s32.totalorder 5, %s3
    %p197 = scmp.lt.s32.totalorder %s3, 29
    %p198 = pnand %p196, %p197
    %p199 = pneg %p198
    // Predicated region
    $region9: #{mul.26} parent=5 // pred_check
      _
    $region10: #{mul.26} parent=5 // pred_check_branch
      %201 = sbr.rel (%p198) target = $region12
    $region11: #{mul.26} parent=5 // pred_region
      %s202 = ssub.s32 %s3, 5
    $region12: #{mul.26} parent=5 // pred_fallthru
      _
    %p203 = scmp.lt.s32.totalorder %s3, 24
    // Predicated region
    $region13: #{mul.26} parent=5 // pred_check
      %p204 = pneg %p203
    $region14: #{mul.26} parent=5 // pred_check_branch
      %206 = sbr.rel (%p204) target = $region16
    $region15: #{mul.26} parent=5 // pred_region
      // Predicated region
      $region17: #{mul.26} parent=15 // pred_check
        %p207 = pneg %p134
      $region18: #{mul.26} parent=15 // pred_check_branch
        %209 = sbr.rel (%p207) target = $region20
      $region19: #{mul.26} parent=15 // pred_region
        %s210 = smul.addr %s18, 2
        %s212 = smul.addr %s19, 4
        %s214 = smul.addr %s20, 6
        %s215 = sshrl.u32 %s214, 3
        %s216 = smul.addr %s21, 16
        %s217 = sshrl.u32 %s216, 7
        %s218 = ssub.s32 3, %s215
        %p219 = scmp.lt.s32.totalorder %s218, 2
        %s220 = scalar_select %p219, %s218, 2
        %s221 = smul.u32 64, %s220
        %s222 = ssub.s32 1, %s217
        %s223 = smul.u32 %s221, %s222
        %p224 = scmp.lt.s32.totalorder %s210, 15
        %s225 = scalar_select %p224, %s210, 15
        %p226 = scmp.lt.s32.totalorder %s212, 3
        %s227 = scalar_select %p226, %s212, 3
        %p228 = scmp.lt.s32.totalorder %s215, 2
        %s229 = scalar_select %p228, %s215, 2
        %p230 = scmp.lt.s32.totalorder %s217, 0
        %s231 = scalar_select %p230, %s217, 0
        %s232 = sadd.s32 %s231, %s229
        %s233 = smul.addr %s227, 3
        %s234 = sadd.s32 %s232, %s233
        %s235 = smul.addr %s225, 12
        %s236 = sadd.s32 %s234, %s235
        %s237 = smul.addr %s236, 8
        %s238 = scalar_lea.vmem %s0, %s237
        %s239 = smul.addr %s18, 2
        %s241 = smul.addr %s19, 4
        %s243 = smul.addr %s20, 6
        %s244 = sshrl.u32 %s243, 3
        %s245 = smul.addr %s21, 16
        %s246 = sshrl.u32 %s245, 7
        %s247 = ssub.s32 3, %s244
        %p248 = scmp.lt.s32.totalorder %s247, 2
        %s249 = scalar_select %p248, %s247, 2
        %s250 = smul.u32 64, %s249
        %s251 = ssub.s32 1, %s246
        %s252 = smul.u32 %s250, %s251
      $region20: #{mul.26} parent=15 // pred_fallthru
        _
    $region16: #{mul.26} parent=5 // pred_fallthru
      _
    %p253 = scmp.le.s32.totalorder 5, %s3
    %p254 = scmp.lt.s32.totalorder %s3, 29
    %p255 = pnand %p253, %p254
    %p256 = pneg %p255
    // Predicated region
    $region21: #{mul.26} parent=5 // pred_check
      _
    $region22: #{mul.26} parent=5 // pred_check_branch
      %258 = sbr.rel (%p255) target = $region24
    $region23: #{mul.26} parent=5 // pred_region
      %s259 = ssub.s32 %s3, 5
      %s260 = smul.addr %s43, 2
      %s262 = smul.addr %s44, 4
      %s264 = smul.addr %s45, 6
      %s265 = sshrl.u32 %s264, 3
      %s266 = smul.addr %s46, 16
      %s267 = sshrl.u32 %s266, 7
      %s268 = ssub.s32 3, %s265
      %p269 = scmp.lt.s32.totalorder %s268, 2
      %s270 = scalar_select %p269, %s268, 2
      %s271 = smul.u32 64, %s270
      %s272 = ssub.s32 1, %s267
      %s273 = smul.u32 %s271, %s272
      %p274 = scmp.lt.s32.totalorder %s260, 15
      %s275 = scalar_select %p274, %s260, 15
      %p276 = scmp.lt.s32.totalorder %s262, 3
      %s277 = scalar_select %p276, %s262, 3
      %p278 = scmp.lt.s32.totalorder %s265, 2
      %s279 = scalar_select %p278, %s265, 2
      %p280 = scmp.lt.s32.totalorder %s267, 0
      %s281 = scalar_select %p280, %s267, 0
      %s282 = sadd.s32 %s281, %s279
      %s283 = smul.addr %s277, 3
      %s284 = sadd.s32 %s282, %s283
      %s285 = smul.addr %s275, 12
      %s286 = sadd.s32 %s284, %s285
      %s287 = smul.addr %s286, 8
      %s288 = scalar_lea.vmem %s0, %s287
      %p289 = pneg %p164
      %p290 = pneg %p161
      %s291 = smul.u32 2, %s43
      %s292 = smul.u32 4, %s44
      %s293 = smul.u32 6, %s45
      %s294 = smul.u32 2, %s46
      %p295 = scmp.lt.s32.totalorder %s291, 15
      %s296 = scalar_select %p295, %s291, 15
      %p297 = scmp.lt.s32.totalorder %s292, 3
      %s298 = scalar_select %p297, %s292, 3
      %p299 = scmp.lt.s32.totalorder %s293, 17
      %s300 = scalar_select %p299, %s293, 17
      %p301 = scmp.lt.s32.totalorder %s294, 1
      %s302 = scalar_select %p301, %s294, 1
      %p303 = scmp.lt.s32.totalorder %s47, 0
      %s304 = scalar_select %p303, %s47, 0
      %s305 = sadd.s32 %s304, %s302
      %s306 = smul.addr %s300, 2
      %s307 = sadd.s32 %s305, %s306
      %s308 = smul.addr %s298, 36
      %s309 = sadd.s32 %s307, %s308
      %s310 = smul.addr %s296, 144
      %s311 = sadd.s32 %s309, %s310
      %s312 = smul.addr %s311, 8
      %s313 = scalar_lea.vmem %s1, %s312
      %s314 = smul.u32 2, %s43
      %s315 = smul.u32 4, %s44
      %s316 = smul.u32 6, %s45
      %s317 = smul.u32 2, %s46
      %s318 = smul.addr %s43, 2
      %s320 = smul.addr %s44, 4
      %s322 = smul.addr %s45, 6
      %s323 = sshrl.u32 %s322, 3
      %s324 = smul.addr %s46, 16
      %s325 = sshrl.u32 %s324, 7
      %s326 = ssub.s32 3, %s323
      %p327 = scmp.lt.s32.totalorder %s326, 2
      %s328 = scalar_select %p327, %s326, 2
      %s329 = smul.u32 64, %s328
      %s330 = ssub.s32 1, %s325
      %s331 = smul.u32 %s329, %s330
      %p332 = scmp.lt.s32.totalorder %s318, 15
      %s333 = scalar_select %p332, %s318, 15
      %p334 = scmp.lt.s32.totalorder %s320, 3
      %s335 = scalar_select %p334, %s320, 3
      %p336 = scmp.lt.s32.totalorder %s323, 2
      %s337 = scalar_select %p336, %s323, 2
      %p338 = scmp.lt.s32.totalorder %s325, 0
      %s339 = scalar_select %p338, %s325, 0
      %s340 = sadd.s32 %s339, %s337
      %s341 = smul.addr %s335, 3
      %s342 = sadd.s32 %s340, %s341
      %s343 = smul.addr %s333, 12
      %s344 = sadd.s32 %s342, %s343
      %s345 = smul.addr %s344, 8
      %s346 = scalar_lea.vmem %s0, %s345
      %s347 = smul.addr %s43, 2
      %s349 = smul.addr %s44, 4
      %s351 = smul.addr %s45, 6
      %s352 = sshrl.u32 %s351, 3
      %s353 = smul.addr %s46, 16
      %s354 = sshrl.u32 %s353, 7
      %s355 = ssub.s32 3, %s352
      %p356 = scmp.lt.s32.totalorder %s355, 2
      %s357 = scalar_select %p356, %s355, 2
      %s358 = smul.u32 64, %s357
      %s359 = ssub.s32 1, %s354
      %s360 = smul.u32 %s358, %s359
      %s361 = smul.u32 2, %s43
      %s362 = smul.u32 4, %s44
      %s363 = smul.u32 6, %s45
      %s364 = smul.u32 2, %s46
      %p365 = scmp.lt.s32.totalorder %s361, 15
      %s366 = scalar_select %p365, %s361, 15
      %p367 = scmp.lt.s32.totalorder %s362, 3
      %s368 = scalar_select %p367, %s362, 3
      %p369 = scmp.lt.s32.totalorder %s363, 17
      %s370 = scalar_select %p369, %s363, 17
      %p371 = scmp.lt.s32.totalorder %s364, 1
      %s372 = scalar_select %p371, %s364, 1
      %p373 = scmp.lt.s32.totalorder %s47, 0
      %s374 = scalar_select %p373, %s47, 0
      %s375 = sadd.s32 %s374, %s372
      %s376 = smul.addr %s370, 2
      %s377 = sadd.s32 %s375, %s376
      %s378 = smul.addr %s368, 36
      %s379 = sadd.s32 %s377, %s378
      %s380 = smul.addr %s366, 144
      %s381 = sadd.s32 %s379, %s380
      %s382 = smul.addr %s381, 8
      %s383 = scalar_lea.vmem %s1, %s382
      %s384 = smul.u32 2, %s43
      %s385 = smul.u32 4, %s44
      %s386 = smul.u32 6, %s45
      %s387 = smul.u32 2, %s46
      %s388 = smul.addr %s43, 2
      %s389 = smul.addr %s44, 4
      %s390 = smul.addr %s45, 6
      %s391 = smul.addr %s46, 2
      %s392 = smul.addr %s391, 8
      %s393 = smul.addr %s47, 128
      %s394 = sshrl.u32 %s390, 3
      %p395 = scmp.lt.s32.totalorder 2, %s394
      %s396 = scalar_select %p395, 2, %s394
      %s397 = sand.u32 %s390, 7
      %s398 = sshrl.u32 %s392, 7
      %p399 = scmp.lt.s32.totalorder 0, %s398
      %s400 = scalar_select %p399, 0, %s398
      %s401 = sand.u32 %s392, 127
      %s402 = sadd.s32 %s400, %s396
      %s403 = smul.addr %s349, 3
      %s404 = sadd.s32 %s402, %s403
      %s405 = smul.addr %s347, 12
      %s406 = sadd.s32 %s404, %s405
      %s407 = smul.addr %s406, 8
      %s408 = scalar_lea.vmem %s0, %s407
      %s410 = scalar_lea.vmem %s408, %s397
      %v411 = vld [vmem:[%s410] ss:$0 sm:$0xff]
      %v412 = vlaneseq
      %v413 = vshrl.u32 %v412, 7
      %v414 = vstv %s401
      %v415 = vadd.s32 %v413, %v414
      %416 = vset.pattern.permute.xlu0 %v415
      %417 = vperm.xlu0 %416, %v411
      %v418 = vpop.permute.xlu0 %417
      %419 = vst [vmem:[%s383] sm:$0xff] %v418
      %s420 = sadd.s32 1, %s347
      %s421 = sshrl.u32 %s390, 3
      %p422 = scmp.lt.s32.totalorder 2, %s421
      %s423 = scalar_select %p422, 2, %s421
      %s424 = sand.u32 %s390, 7
      %s425 = sshrl.u32 %s392, 7
      %p426 = scmp.lt.s32.totalorder 0, %s425
      %s427 = scalar_select %p426, 0, %s425
      %s428 = sand.u32 %s392, 127
      %s429 = sadd.s32 %s427, %s423
      %s430 = smul.addr %s349, 3
      %s431 = sadd.s32 %s429, %s430
      %s432 = smul.addr %s420, 12
      %s433 = sadd.s32 %s431, %s432
      %s434 = smul.addr %s433, 8
      %s435 = scalar_lea.vmem %s0, %s434
      %s437 = scalar_lea.vmem %s435, %s424
      %v438 = vld [vmem:[%s437] ss:$0 sm:$0xff]
      %v439 = vlaneseq
      %v440 = vshrl.u32 %v439, 7
      %v441 = vstv %s428
      %v442 = vadd.s32 %v440, %v441
      %443 = vset.pattern.permute.xlu0 %v442
      %444 = vperm.xlu0 %443, %v438
      %v445 = vpop.permute.xlu0 %444
      %s446 = scalar_lea.vmem %s383, 1152
      %447 = vst [vmem:[%s446] sm:$0xff] %v445
      %s448 = sadd.s32 1, %s349
      %s449 = sshrl.u32 %s390, 3
      %p450 = scmp.lt.s32.totalorder 2, %s449
      %s451 = scalar_select %p450, 2, %s449
      %s452 = sand.u32 %s390, 7
      %s453 = sshrl.u32 %s392, 7
      %p454 = scmp.lt.s32.totalorder 0, %s453
      %s455 = scalar_select %p454, 0, %s453
      %s456 = sand.u32 %s392, 127
      %s457 = sadd.s32 %s455, %s451
      %s458 = smul.addr %s448, 3
      %s459 = sadd.s32 %s457, %s458
      %s460 = smul.addr %s347, 12
      %s461 = sadd.s32 %s459, %s460
      %s462 = smul.addr %s461, 8
      %s463 = scalar_lea.vmem %s0, %s462
      %s465 = scalar_lea.vmem %s463, %s452
      %v466 = vld [vmem:[%s465] ss:$0 sm:$0xff]
      %v467 = vlaneseq
      %v468 = vshrl.u32 %v467, 7
      %v469 = vstv %s456
      %v470 = vadd.s32 %v468, %v469
      %471 = vset.pattern.permute.xlu0 %v470
      %472 = vperm.xlu0 %471, %v466
      %v473 = vpop.permute.xlu0 %472
      %s474 = scalar_lea.vmem %s383, 288
      %475 = vst [vmem:[%s474] sm:$0xff] %v473
      %s476 = sadd.s32 1, %s347
      %s477 = sadd.s32 1, %s349
      %s478 = sshrl.u32 %s390, 3
      %p479 = scmp.lt.s32.totalorder 2, %s478
      %s480 = scalar_select %p479, 2, %s478
      %s481 = sand.u32 %s390, 7
      %s482 = sshrl.u32 %s392, 7
      %p483 = scmp.lt.s32.totalorder 0, %s482
      %s484 = scalar_select %p483, 0, %s482
      %s485 = sand.u32 %s392, 127
      %s486 = sadd.s32 %s484, %s480
      %s487 = smul.addr %s477, 3
      %s488 = sadd.s32 %s486, %s487
      %s489 = smul.addr %s476, 12
      %s490 = sadd.s32 %s488, %s489
      %s491 = smul.addr %s490, 8
      %s492 = scalar_lea.vmem %s0, %s491
      %s494 = scalar_lea.vmem %s492, %s481
      %v495 = vld [vmem:[%s494] ss:$0 sm:$0xff]
      %v496 = vlaneseq
      %v497 = vshrl.u32 %v496, 7
      %v498 = vstv %s485
      %v499 = vadd.s32 %v497, %v498
      %500 = vset.pattern.permute.xlu0 %v499
      %501 = vperm.xlu0 %500, %v495
      %v502 = vpop.permute.xlu0 %501
      %s503 = scalar_lea.vmem %s383, 1440
      %504 = vst [vmem:[%s503] sm:$0xff] %v502
      %s505 = sadd.s32 2, %s349
      %s506 = sshrl.u32 %s390, 3
      %p507 = scmp.lt.s32.totalorder 2, %s506
      %s508 = scalar_select %p507, 2, %s506
      %s509 = sand.u32 %s390, 7
      %s510 = sshrl.u32 %s392, 7
      %p511 = scmp.lt.s32.totalorder 0, %s510
      %s512 = scalar_select %p511, 0, %s510
      %s513 = sand.u32 %s392, 127
      %s514 = sadd.s32 %s512, %s508
      %s515 = smul.addr %s505, 3
      %s516 = sadd.s32 %s514, %s515
      %s517 = smul.addr %s347, 12
      %s518 = sadd.s32 %s516, %s517
      %s519 = smul.addr %s518, 8
      %s520 = scalar_lea.vmem %s0, %s519
      %s522 = scalar_lea.vmem %s520, %s509
      %v523 = vld [vmem:[%s522] ss:$0 sm:$0xff]
      %v524 = vlaneseq
      %v525 = vshrl.u32 %v524, 7
      %v526 = vstv %s513
      %v527 = vadd.s32 %v525, %v526
      %528 = vset.pattern.permute.xlu0 %v527
      %529 = vperm.xlu0 %528, %v523
      %v530 = vpop.permute.xlu0 %529
      %s531 = scalar_lea.vmem %s383, 576
      %532 = vst [vmem:[%s531] sm:$0xff] %v530
      %s533 = sadd.s32 1, %s347
      %s534 = sadd.s32 2, %s349
      %s535 = sshrl.u32 %s390, 3
      %p536 = scmp.lt.s32.totalorder 2, %s535
      %s537 = scalar_select %p536, 2, %s535
      %s538 = sand.u32 %s390, 7
      %s539 = sshrl.u32 %s392, 7
      %p540 = scmp.lt.s32.totalorder 0, %s539
      %s541 = scalar_select %p540, 0, %s539
      %s542 = sand.u32 %s392, 127
      %s543 = sadd.s32 %s541, %s537
      %s544 = smul.addr %s534, 3
      %s545 = sadd.s32 %s543, %s544
      %s546 = smul.addr %s533, 12
      %s547 = sadd.s32 %s545, %s546
      %s548 = smul.addr %s547, 8
      %s549 = scalar_lea.vmem %s0, %s548
      %s551 = scalar_lea.vmem %s549, %s538
      %v552 = vld [vmem:[%s551] ss:$0 sm:$0xff]
      %v553 = vlaneseq
      %v554 = vshrl.u32 %v553, 7
      %v555 = vstv %s542
      %v556 = vadd.s32 %v554, %v555
      %557 = vset.pattern.permute.xlu0 %v556
      %558 = vperm.xlu0 %557, %v552
      %v559 = vpop.permute.xlu0 %558
      %s560 = scalar_lea.vmem %s383, 1728
      %561 = vst [vmem:[%s560] sm:$0xff] %v559
      %s562 = sadd.s32 3, %s349
      %s563 = sshrl.u32 %s390, 3
      %p564 = scmp.lt.s32.totalorder 2, %s563
      %s565 = scalar_select %p564, 2, %s563
      %s566 = sand.u32 %s390, 7
      %s567 = sshrl.u32 %s392, 7
      %p568 = scmp.lt.s32.totalorder 0, %s567
      %s569 = scalar_select %p568, 0, %s567
      %s570 = sand.u32 %s392, 127
      %s571 = sadd.s32 %s569, %s565
      %s572 = smul.addr %s562, 3
      %s573 = sadd.s32 %s571, %s572
      %s574 = smul.addr %s347, 12
      %s575 = sadd.s32 %s573, %s574
      %s576 = smul.addr %s575, 8
      %s577 = scalar_lea.vmem %s0, %s576
      %s579 = scalar_lea.vmem %s577, %s566
      %v580 = vld [vmem:[%s579] ss:$0 sm:$0xff]
      %v581 = vlaneseq
      %v582 = vshrl.u32 %v581, 7
      %v583 = vstv %s570
      %v584 = vadd.s32 %v582, %v583
      %585 = vset.pattern.permute.xlu0 %v584
      %586 = vperm.xlu0 %585, %v580
      %v587 = vpop.permute.xlu0 %586
      %s588 = scalar_lea.vmem %s383, 864
      %589 = vst [vmem:[%s588] sm:$0xff] %v587
      %s590 = sadd.s32 1, %s347
      %s591 = sadd.s32 3, %s349
      %s592 = sshrl.u32 %s390, 3
      %p593 = scmp.lt.s32.totalorder 2, %s592
      %s594 = scalar_select %p593, 2, %s592
      %s595 = sand.u32 %s390, 7
      %s596 = sshrl.u32 %s392, 7
      %p597 = scmp.lt.s32.totalorder 0, %s596
      %s598 = scalar_select %p597, 0, %s596
      %s599 = sand.u32 %s392, 127
      %s600 = sadd.s32 %s598, %s594
      %s601 = smul.addr %s591, 3
      %s602 = sadd.s32 %s600, %s601
      %s603 = smul.addr %s590, 12
      %s604 = sadd.s32 %s602, %s603
      %s605 = smul.addr %s604, 8
      %s606 = scalar_lea.vmem %s0, %s605
      %s608 = scalar_lea.vmem %s606, %s595
      %v609 = vld [vmem:[%s608] ss:$0 sm:$0xff]
      %v610 = vlaneseq
      %v611 = vshrl.u32 %v610, 7
      %v612 = vstv %s599
      %v613 = vadd.s32 %v611, %v612
      %614 = vset.pattern.permute.xlu0 %v613
      %615 = vperm.xlu0 %614, %v609
      %v616 = vpop.permute.xlu0 %615
      %s617 = scalar_lea.vmem %s383, 2016
      %618 = vst [vmem:[%s617] sm:$0xff] %v616
      %s619 = sadd.s32 %s390, 1
      %s620 = sshrl.u32 %s619, 3
      %p621 = scmp.lt.s32.totalorder 2, %s620
      %s622 = scalar_select %p621, 2, %s620
      %s623 = sand.u32 %s619, 7
      %s624 = sshrl.u32 %s392, 7
      %p625 = scmp.lt.s32.totalorder 0, %s624
      %s626 = scalar_select %p625, 0, %s624
      %s627 = sand.u32 %s392, 127
      %s628 = sadd.s32 %s626, %s622
      %s629 = smul.addr %s349, 3
      %s630 = sadd.s32 %s628, %s629
      %s631 = smul.addr %s347, 12
      %s632 = sadd.s32 %s630, %s631
      %s633 = smul.addr %s632, 8
      %s634 = scalar_lea.vmem %s0, %s633
      %s636 = scalar_lea.vmem %s634, %s623
      %v637 = vld [vmem:[%s636] ss:$0 sm:$0xff]
      %v638 = vlaneseq
      %v639 = vshrl.u32 %v638, 7
      %v640 = vstv %s627
      %v641 = vadd.s32 %v639, %v640
      %642 = vset.pattern.permute.xlu0 %v641
      %643 = vperm.xlu0 %642, %v637
      %v644 = vpop.permute.xlu0 %643
      %s645 = scalar_lea.vmem %s383, 16
      %646 = vst [vmem:[%s645] sm:$0xff] %v644
      %s647 = sadd.s32 1, %s347
      %s648 = sadd.s32 %s390, 1
      %s649 = sshrl.u32 %s648, 3
      %p650 = scmp.lt.s32.totalorder 2, %s649
      %s651 = scalar_select %p650, 2, %s649
      %s652 = sand.u32 %s648, 7
      %s653 = sshrl.u32 %s392, 7
      %p654 = scmp.lt.s32.totalorder 0, %s653
      %s655 = scalar_select %p654, 0, %s653
      %s656 = sand.u32 %s392, 127
      %s657 = sadd.s32 %s655, %s651
      %s658 = smul.addr %s349, 3
      %s659 = sadd.s32 %s657, %s658
      %s660 = smul.addr %s647, 12
      %s661 = sadd.s32 %s659, %s660
      %s662 = smul.addr %s661, 8
      %s663 = scalar_lea.vmem %s0, %s662
      %s665 = scalar_lea.vmem %s663, %s652
      %v666 = vld [vmem:[%s665] ss:$0 sm:$0xff]
      %v667 = vlaneseq
      %v668 = vshrl.u32 %v667, 7
      %v669 = vstv %s656
      %v670 = vadd.s32 %v668, %v669
      %671 = vset.pattern.permute.xlu0 %v670
      %672 = vperm.xlu0 %671, %v666
      %v673 = vpop.permute.xlu0 %672
      %s674 = scalar_lea.vmem %s383, 1168
      %675 = vst [vmem:[%s674] sm:$0xff] %v673
      %s676 = sadd.s32 1, %s349
      %s677 = sadd.s32 %s390, 1
      %s678 = sshrl.u32 %s677, 3
      %p679 = scmp.lt.s32.totalorder 2, %s678
      %s680 = scalar_select %p679, 2, %s678
      %s681 = sand.u32 %s677, 7
      %s682 = sshrl.u32 %s392, 7
      %p683 = scmp.lt.s32.totalorder 0, %s682
      %s684 = scalar_select %p683, 0, %s682
      %s685 = sand.u32 %s392, 127
      %s686 = sadd.s32 %s684, %s680
      %s687 = smul.addr %s676, 3
      %s688 = sadd.s32 %s686, %s687
      %s689 = smul.addr %s347, 12
      %s690 = sadd.s32 %s688, %s689
      %s691 = smul.addr %s690, 8
      %s692 = scalar_lea.vmem %s0, %s691
      %s694 = scalar_lea.vmem %s692, %s681
      %v695 = vld [vmem:[%s694] ss:$0 sm:$0xff]
      %v696 = vlaneseq
      %v697 = vshrl.u32 %v696, 7
      %v698 = vstv %s685
      %v699 = vadd.s32 %v697, %v698
      %700 = vset.pattern.permute.xlu0 %v699
      %701 = vperm.xlu0 %700, %v695
      %v702 = vpop.permute.xlu0 %701
      %s703 = scalar_lea.vmem %s383, 304
      %704 = vst [vmem:[%s703] sm:$0xff] %v702
      %s705 = sadd.s32 1, %s347
      %s706 = sadd.s32 1, %s349
      %s707 = sadd.s32 %s390, 1
      %s708 = sshrl.u32 %s707, 3
      %p709 = scmp.lt.s32.totalorder 2, %s708
      %s710 = scalar_select %p709, 2, %s708
      %s711 = sand.u32 %s707, 7
      %s712 = sshrl.u32 %s392, 7
      %p713 = scmp.lt.s32.totalorder 0, %s712
      %s714 = scalar_select %p713, 0, %s712
      %s715 = sand.u32 %s392, 127
      %s716 = sadd.s32 %s714, %s710
      %s717 = smul.addr %s706, 3
      %s718 = sadd.s32 %s716, %s717
      %s719 = smul.addr %s705, 12
      %s720 = sadd.s32 %s718, %s719
      %s721 = smul.addr %s720, 8
      %s722 = scalar_lea.vmem %s0, %s721
      %s724 = scalar_lea.vmem %s722, %s711
      %v725 = vld [vmem:[%s724] ss:$0 sm:$0xff]
      %v726 = vlaneseq
      %v727 = vshrl.u32 %v726, 7
      %v728 = vstv %s715
      %v729 = vadd.s32 %v727, %v728
      %730 = vset.pattern.permute.xlu0 %v729
      %731 = vperm.xlu0 %730, %v725
      %v732 = vpop.permute.xlu0 %731
      %s733 = scalar_lea.vmem %s383, 1456
      %734 = vst [vmem:[%s733] sm:$0xff] %v732
      %s735 = sadd.s32 2, %s349
      %s736 = sadd.s32 %s390, 1
      %s737 = sshrl.u32 %s736, 3
      %p738 = scmp.lt.s32.totalorder 2, %s737
      %s739 = scalar_select %p738, 2, %s737
      %s740 = sand.u32 %s736, 7
      %s741 = sshrl.u32 %s392, 7
      %p742 = scmp.lt.s32.totalorder 0, %s741
      %s743 = scalar_select %p742, 0, %s741
      %s744 = sand.u32 %s392, 127
      %s745 = sadd.s32 %s743, %s739
      %s746 = smul.addr %s735, 3
      %s747 = sadd.s32 %s745, %s746
      %s748 = smul.addr %s347, 12
      %s749 = sadd.s32 %s747, %s748
      %s750 = smul.addr %s749, 8
      %s751 = scalar_lea.vmem %s0, %s750
      %s753 = scalar_lea.vmem %s751, %s740
      %v754 = vld [vmem:[%s753] ss:$0 sm:$0xff]
      %v755 = vlaneseq
      %v756 = vshrl.u32 %v755, 7
      %v757 = vstv %s744
      %v758 = vadd.s32 %v756, %v757
      %759 = vset.pattern.permute.xlu0 %v758
      %760 = vperm.xlu0 %759, %v754
      %v761 = vpop.permute.xlu0 %760
      %s762 = scalar_lea.vmem %s383, 592
      %763 = vst [vmem:[%s762] sm:$0xff] %v761
      %s764 = sadd.s32 1, %s347
      %s765 = sadd.s32 2, %s349
      %s766 = sadd.s32 %s390, 1
      %s767 = sshrl.u32 %s766, 3
      %p768 = scmp.lt.s32.totalorder 2, %s767
      %s769 = scalar_select %p768, 2, %s767
      %s770 = sand.u32 %s766, 7
      %s771 = sshrl.u32 %s392, 7
      %p772 = scmp.lt.s32.totalorder 0, %s771
      %s773 = scalar_select %p772, 0, %s771
      %s774 = sand.u32 %s392, 127
      %s775 = sadd.s32 %s773, %s769
      %s776 = smul.addr %s765, 3
      %s777 = sadd.s32 %s775, %s776
      %s778 = smul.addr %s764, 12
      %s779 = sadd.s32 %s777, %s778
      %s780 = smul.addr %s779, 8
      %s781 = scalar_lea.vmem %s0, %s780
      %s783 = scalar_lea.vmem %s781, %s770
      %v784 = vld [vmem:[%s783] ss:$0 sm:$0xff]
      %v785 = vlaneseq
      %v786 = vshrl.u32 %v785, 7
      %v787 = vstv %s774
      %v788 = vadd.s32 %v786, %v787
      %789 = vset.pattern.permute.xlu0 %v788
      %790 = vperm.xlu0 %789, %v784
      %v791 = vpop.permute.xlu0 %790
      %s792 = scalar_lea.vmem %s383, 1744
      %793 = vst [vmem:[%s792] sm:$0xff] %v791
      %s794 = sadd.s32 3, %s349
      %s795 = sadd.s32 %s390, 1
      %s796 = sshrl.u32 %s795, 3
      %p797 = scmp.lt.s32.totalorder 2, %s796
      %s798 = scalar_select %p797, 2, %s796
      %s799 = sand.u32 %s795, 7
      %s800 = sshrl.u32 %s392, 7
      %p801 = scmp.lt.s32.totalorder 0, %s800
      %s802 = scalar_select %p801, 0, %s800
      %s803 = sand.u32 %s392, 127
      %s804 = sadd.s32 %s802, %s798
      %s805 = smul.addr %s794, 3
      %s806 = sadd.s32 %s804, %s805
      %s807 = smul.addr %s347, 12
      %s808 = sadd.s32 %s806, %s807
      %s809 = smul.addr %s808, 8
      %s810 = scalar_lea.vmem %s0, %s809
      %s812 = scalar_lea.vmem %s810, %s799
      %v813 = vld [vmem:[%s812] ss:$0 sm:$0xff]
      %v814 = vlaneseq
      %v815 = vshrl.u32 %v814, 7
      %v816 = vstv %s803
      %v817 = vadd.s32 %v815, %v816
      %818 = vset.pattern.permute.xlu0 %v817
      %819 = vperm.xlu0 %818, %v813
      %v820 = vpop.permute.xlu0 %819
      %s821 = scalar_lea.vmem %s383, 880
      %822 = vst [vmem:[%s821] sm:$0xff] %v820
      %s823 = sadd.s32 1, %s347
      %s824 = sadd.s32 3, %s349
      %s825 = sadd.s32 %s390, 1
      %s826 = sshrl.u32 %s825, 3
      %p827 = scmp.lt.s32.totalorder 2, %s826
      %s828 = scalar_select %p827, 2, %s826
      %s829 = sand.u32 %s825, 7
      %s830 = sshrl.u32 %s392, 7
      %p831 = scmp.lt.s32.totalorder 0, %s830
      %s832 = scalar_select %p831, 0, %s830
      %s833 = sand.u32 %s392, 127
      %s834 = sadd.s32 %s832, %s828
      %s835 = smul.addr %s824, 3
      %s836 = sadd.s32 %s834, %s835
      %s837 = smul.addr %s823, 12
      %s838 = sadd.s32 %s836, %s837
      %s839 = smul.addr %s838, 8
      %s840 = scalar_lea.vmem %s0, %s839
      %s842 = scalar_lea.vmem %s840, %s829
      %v843 = vld [vmem:[%s842] ss:$0 sm:$0xff]
      %v844 = vlaneseq
      %v845 = vshrl.u32 %v844, 7
      %v846 = vstv %s833
      %v847 = vadd.s32 %v845, %v846
      %848 = vset.pattern.permute.xlu0 %v847
      %849 = vperm.xlu0 %848, %v843
      %v850 = vpop.permute.xlu0 %849
      %s851 = scalar_lea.vmem %s383, 2032
      %852 = vst [vmem:[%s851] sm:$0xff] %v850
      %s853 = sadd.s32 %s390, 2
      %s854 = sshrl.u32 %s853, 3
      %p855 = scmp.lt.s32.totalorder 2, %s854
      %s856 = scalar_select %p855, 2, %s854
      %s857 = sand.u32 %s853, 7
      %s858 = sshrl.u32 %s392, 7
      %p859 = scmp.lt.s32.totalorder 0, %s858
      %s860 = scalar_select %p859, 0, %s858
      %s861 = sand.u32 %s392, 127
      %s862 = sadd.s32 %s860, %s856
      %s863 = smul.addr %s349, 3
      %s864 = sadd.s32 %s862, %s863
      %s865 = smul.addr %s347, 12
      %s866 = sadd.s32 %s864, %s865
      %s867 = smul.addr %s866, 8
      %s868 = scalar_lea.vmem %s0, %s867
      %s870 = scalar_lea.vmem %s868, %s857
      %v871 = vld [vmem:[%s870] ss:$0 sm:$0xff]
      %v872 = vlaneseq
      %v873 = vshrl.u32 %v872, 7
      %v874 = vstv %s861
      %v875 = vadd.s32 %v873, %v874
      %876 = vset.pattern.permute.xlu0 %v875
      %877 = vperm.xlu0 %876, %v871
      %v878 = vpop.permute.xlu0 %877
      %s879 = scalar_lea.vmem %s383, 32
      %880 = vst [vmem:[%s879] sm:$0xff] %v878
      %s881 = sadd.s32 1, %s347
      %s882 = sadd.s32 %s390, 2
      %s883 = sshrl.u32 %s882, 3
      %p884 = scmp.lt.s32.totalorder 2, %s883
      %s885 = scalar_select %p884, 2, %s883
      %s886 = sand.u32 %s882, 7
      %s887 = sshrl.u32 %s392, 7
      %p888 = scmp.lt.s32.totalorder 0, %s887
      %s889 = scalar_select %p888, 0, %s887
      %s890 = sand.u32 %s392, 127
      %s891 = sadd.s32 %s889, %s885
      %s892 = smul.addr %s349, 3
      %s893 = sadd.s32 %s891, %s892
      %s894 = smul.addr %s881, 12
      %s895 = sadd.s32 %s893, %s894
      %s896 = smul.addr %s895, 8
      %s897 = scalar_lea.vmem %s0, %s896
      %s899 = scalar_lea.vmem %s897, %s886
      %v900 = vld [vmem:[%s899] ss:$0 sm:$0xff]
      %v901 = vlaneseq
      %v902 = vshrl.u32 %v901, 7
      %v903 = vstv %s890
      %v904 = vadd.s32 %v902, %v903
      %905 = vset.pattern.permute.xlu0 %v904
      %906 = vperm.xlu0 %905, %v900
      %v907 = vpop.permute.xlu0 %906
      %s908 = scalar_lea.vmem %s383, 1184
      %909 = vst [vmem:[%s908] sm:$0xff] %v907
      %s910 = sadd.s32 1, %s349
      %s911 = sadd.s32 %s390, 2
      %s912 = sshrl.u32 %s911, 3
      %p913 = scmp.lt.s32.totalorder 2, %s912
      %s914 = scalar_select %p913, 2, %s912
      %s915 = sand.u32 %s911, 7
      %s916 = sshrl.u32 %s392, 7
      %p917 = scmp.lt.s32.totalorder 0, %s916
      %s918 = scalar_select %p917, 0, %s916
      %s919 = sand.u32 %s392, 127
      %s920 = sadd.s32 %s918, %s914
      %s921 = smul.addr %s910, 3
      %s922 = sadd.s32 %s920, %s921
      %s923 = smul.addr %s347, 12
      %s924 = sadd.s32 %s922, %s923
      %s925 = smul.addr %s924, 8
      %s926 = scalar_lea.vmem %s0, %s925
      %s928 = scalar_lea.vmem %s926, %s915
      %v929 = vld [vmem:[%s928] ss:$0 sm:$0xff]
      %v930 = vlaneseq
      %v931 = vshrl.u32 %v930, 7
      %v932 = vstv %s919
      %v933 = vadd.s32 %v931, %v932
      %934 = vset.pattern.permute.xlu0 %v933
      %935 = vperm.xlu0 %934, %v929
      %v936 = vpop.permute.xlu0 %935
      %s937 = scalar_lea.vmem %s383, 320
      %938 = vst [vmem:[%s937] sm:$0xff] %v936
      %s939 = sadd.s32 1, %s347
      %s940 = sadd.s32 1, %s349
      %s941 = sadd.s32 %s390, 2
      %s942 = sshrl.u32 %s941, 3
      %p943 = scmp.lt.s32.totalorder 2, %s942
      %s944 = scalar_select %p943, 2, %s942
      %s945 = sand.u32 %s941, 7
      %s946 = sshrl.u32 %s392, 7
      %p947 = scmp.lt.s32.totalorder 0, %s946
      %s948 = scalar_select %p947, 0, %s946
      %s949 = sand.u32 %s392, 127
      %s950 = sadd.s32 %s948, %s944
      %s951 = smul.addr %s940, 3
      %s952 = sadd.s32 %s950, %s951
      %s953 = smul.addr %s939, 12
      %s954 = sadd.s32 %s952, %s953
      %s955 = smul.addr %s954, 8
      %s956 = scalar_lea.vmem %s0, %s955
      %s958 = scalar_lea.vmem %s956, %s945
      %v959 = vld [vmem:[%s958] ss:$0 sm:$0xff]
      %v960 = vlaneseq
      %v961 = vshrl.u32 %v960, 7
      %v962 = vstv %s949
      %v963 = vadd.s32 %v961, %v962
      %964 = vset.pattern.permute.xlu0 %v963
      %965 = vperm.xlu0 %964, %v959
      %v966 = vpop.permute.xlu0 %965
      %s967 = scalar_lea.vmem %s383, 1472
      %968 = vst [vmem:[%s967] sm:$0xff] %v966
      %s969 = sadd.s32 2, %s349
      %s970 = sadd.s32 %s390, 2
      %s971 = sshrl.u32 %s970, 3
      %p972 = scmp.lt.s32.totalorder 2, %s971
      %s973 = scalar_select %p972, 2, %s971
      %s974 = sand.u32 %s970, 7
      %s975 = sshrl.u32 %s392, 7
      %p976 = scmp.lt.s32.totalorder 0, %s975
      %s977 = scalar_select %p976, 0, %s975
      %s978 = sand.u32 %s392, 127
      %s979 = sadd.s32 %s977, %s973
      %s980 = smul.addr %s969, 3
      %s981 = sadd.s32 %s979, %s980
      %s982 = smul.addr %s347, 12
      %s983 = sadd.s32 %s981, %s982
      %s984 = smul.addr %s983, 8
      %s985 = scalar_lea.vmem %s0, %s984
      %s987 = scalar_lea.vmem %s985, %s974
      %v988 = vld [vmem:[%s987] ss:$0 sm:$0xff]
      %v989 = vlaneseq
      %v990 = vshrl.u32 %v989, 7
      %v991 = vstv %s978
      %v992 = vadd.s32 %v990, %v991
      %993 = vset.pattern.permute.xlu0 %v992
      %994 = vperm.xlu0 %993, %v988
      %v995 = vpop.permute.xlu0 %994
      %s996 = scalar_lea.vmem %s383, 608
      %997 = vst [vmem:[%s996] sm:$0xff] %v995
      %s998 = sadd.s32 1, %s347
      %s999 = sadd.s32 2, %s349
      %s1000 = sadd.s32 %s390, 2
      %s1001 = sshrl.u32 %s1000, 3
      %p1002 = scmp.lt.s32.totalorder 2, %s1001
      %s1003 = scalar_select %p1002, 2, %s1001
      %s1004 = sand.u32 %s1000, 7
      %s1005 = sshrl.u32 %s392, 7
      %p1006 = scmp.lt.s32.totalorder 0, %s1005
      %s1007 = scalar_select %p1006, 0, %s1005
      %s1008 = sand.u32 %s392, 127
      %s1009 = sadd.s32 %s1007, %s1003
      %s1010 = smul.addr %s999, 3
      %s1011 = sadd.s32 %s1009, %s1010
      %s1012 = smul.addr %s998, 12
      %s1013 = sadd.s32 %s1011, %s1012
      %s1014 = smul.addr %s1013, 8
      %s1015 = scalar_lea.vmem %s0, %s1014
      %s1017 = scalar_lea.vmem %s1015, %s1004
      %v1018 = vld [vmem:[%s1017] ss:$0 sm:$0xff]
      %v1019 = vlaneseq
      %v1020 = vshrl.u32 %v1019, 7
      %v1021 = vstv %s1008
      %v1022 = vadd.s32 %v1020, %v1021
      %1023 = vset.pattern.permute.xlu0 %v1022
      %1024 = vperm.xlu0 %1023, %v1018
      %v1025 = vpop.permute.xlu0 %1024
      %s1026 = scalar_lea.vmem %s383, 1760
      %1027 = vst [vmem:[%s1026] sm:$0xff] %v1025
      %s1028 = sadd.s32 3, %s349
      %s1029 = sadd.s32 %s390, 2
      %s1030 = sshrl.u32 %s1029, 3
      %p1031 = scmp.lt.s32.totalorder 2, %s1030
      %s1032 = scalar_select %p1031, 2, %s1030
      %s1033 = sand.u32 %s1029, 7
      %s1034 = sshrl.u32 %s392, 7
      %p1035 = scmp.lt.s32.totalorder 0, %s1034
      %s1036 = scalar_select %p1035, 0, %s1034
      %s1037 = sand.u32 %s392, 127
      %s1038 = sadd.s32 %s1036, %s1032
      %s1039 = smul.addr %s1028, 3
      %s1040 = sadd.s32 %s1038, %s1039
      %s1041 = smul.addr %s347, 12
      %s1042 = sadd.s32 %s1040, %s1041
      %s1043 = smul.addr %s1042, 8
      %s1044 = scalar_lea.vmem %s0, %s1043
      %s1046 = scalar_lea.vmem %s1044, %s1033
      %v1047 = vld [vmem:[%s1046] ss:$0 sm:$0xff]
      %v1048 = vlaneseq
      %v1049 = vshrl.u32 %v1048, 7
      %v1050 = vstv %s1037
      %v1051 = vadd.s32 %v1049, %v1050
      %1052 = vset.pattern.permute.xlu0 %v1051
      %1053 = vperm.xlu0 %1052, %v1047
      %v1054 = vpop.permute.xlu0 %1053
      %s1055 = scalar_lea.vmem %s383, 896
      %1056 = vst [vmem:[%s1055] sm:$0xff] %v1054
      %s1057 = sadd.s32 1, %s347
      %s1058 = sadd.s32 3, %s349
      %s1059 = sadd.s32 %s390, 2
      %s1060 = sshrl.u32 %s1059, 3
      %p1061 = scmp.lt.s32.totalorder 2, %s1060
      %s1062 = scalar_select %p1061, 2, %s1060
      %s1063 = sand.u32 %s1059, 7
      %s1064 = sshrl.u32 %s392, 7
      %p1065 = scmp.lt.s32.totalorder 0, %s1064
      %s1066 = scalar_select %p1065, 0, %s1064
      %s1067 = sand.u32 %s392, 127
      %s1068 = sadd.s32 %s1066, %s1062
      %s1069 = smul.addr %s1058, 3
      %s1070 = sadd.s32 %s1068, %s1069
      %s1071 = smul.addr %s1057, 12
      %s1072 = sadd.s32 %s1070, %s1071
      %s1073 = smul.addr %s1072, 8
      %s1074 = scalar_lea.vmem %s0, %s1073
      %s1076 = scalar_lea.vmem %s1074, %s1063
      %v1077 = vld [vmem:[%s1076] ss:$0 sm:$0xff]
      %v1078 = vlaneseq
      %v1079 = vshrl.u32 %v1078, 7
      %v1080 = vstv %s1067
      %v1081 = vadd.s32 %v1079, %v1080
      %1082 = vset.pattern.permute.xlu0 %v1081
      %1083 = vperm.xlu0 %1082, %v1077
      %v1084 = vpop.permute.xlu0 %1083
      %s1085 = scalar_lea.vmem %s383, 2048
      %1086 = vst [vmem:[%s1085] sm:$0xff] %v1084
      %s1087 = sadd.s32 %s390, 3
      %s1088 = sshrl.u32 %s1087, 3
      %p1089 = scmp.lt.s32.totalorder 2, %s1088
      %s1090 = scalar_select %p1089, 2, %s1088
      %s1091 = sand.u32 %s1087, 7
      %s1092 = sshrl.u32 %s392, 7
      %p1093 = scmp.lt.s32.totalorder 0, %s1092
      %s1094 = scalar_select %p1093, 0, %s1092
      %s1095 = sand.u32 %s392, 127
      %s1096 = sadd.s32 %s1094, %s1090
      %s1097 = smul.addr %s349, 3
      %s1098 = sadd.s32 %s1096, %s1097
      %s1099 = smul.addr %s347, 12
      %s1100 = sadd.s32 %s1098, %s1099
      %s1101 = smul.addr %s1100, 8
      %s1102 = scalar_lea.vmem %s0, %s1101
      %s1104 = scalar_lea.vmem %s1102, %s1091
      %v1105 = vld [vmem:[%s1104] ss:$0 sm:$0xff]
      %v1106 = vlaneseq
      %v1107 = vshrl.u32 %v1106, 7
      %v1108 = vstv %s1095
      %v1109 = vadd.s32 %v1107, %v1108
      %1110 = vset.pattern.permute.xlu0 %v1109
      %1111 = vperm.xlu0 %1110, %v1105
      %v1112 = vpop.permute.xlu0 %1111
      %s1113 = scalar_lea.vmem %s383, 48
      %1114 = vst [vmem:[%s1113] sm:$0xff] %v1112
      %s1115 = sadd.s32 1, %s347
      %s1116 = sadd.s32 %s390, 3
      %s1117 = sshrl.u32 %s1116, 3
      %p1118 = scmp.lt.s32.totalorder 2, %s1117
      %s1119 = scalar_select %p1118, 2, %s1117
      %s1120 = sand.u32 %s1116, 7
      %s1121 = sshrl.u32 %s392, 7
      %p1122 = scmp.lt.s32.totalorder 0, %s1121
      %s1123 = scalar_select %p1122, 0, %s1121
      %s1124 = sand.u32 %s392, 127
      %s1125 = sadd.s32 %s1123, %s1119
      %s1126 = smul.addr %s349, 3
      %s1127 = sadd.s32 %s1125, %s1126
      %s1128 = smul.addr %s1115, 12
      %s1129 = sadd.s32 %s1127, %s1128
      %s1130 = smul.addr %s1129, 8
      %s1131 = scalar_lea.vmem %s0, %s1130
      %s1133 = scalar_lea.vmem %s1131, %s1120
      %v1134 = vld [vmem:[%s1133] ss:$0 sm:$0xff]
      %v1135 = vlaneseq
      %v1136 = vshrl.u32 %v1135, 7
      %v1137 = vstv %s1124
      %v1138 = vadd.s32 %v1136, %v1137
      %1139 = vset.pattern.permute.xlu0 %v1138
      %1140 = vperm.xlu0 %1139, %v1134
      %v1141 = vpop.permute.xlu0 %1140
      %s1142 = scalar_lea.vmem %s383, 1200
      %1143 = vst [vmem:[%s1142] sm:$0xff] %v1141
      %s1144 = sadd.s32 1, %s349
      %s1145 = sadd.s32 %s390, 3
      %s1146 = sshrl.u32 %s1145, 3
      %p1147 = scmp.lt.s32.totalorder 2, %s1146
      %s1148 = scalar_select %p1147, 2, %s1146
      %s1149 = sand.u32 %s1145, 7
      %s1150 = sshrl.u32 %s392, 7
      %p1151 = scmp.lt.s32.totalorder 0, %s1150
      %s1152 = scalar_select %p1151, 0, %s1150
      %s1153 = sand.u32 %s392, 127
      %s1154 = sadd.s32 %s1152, %s1148
      %s1155 = smul.addr %s1144, 3
      %s1156 = sadd.s32 %s1154, %s1155
      %s1157 = smul.addr %s347, 12
      %s1158 = sadd.s32 %s1156, %s1157
      %s1159 = smul.addr %s1158, 8
      %s1160 = scalar_lea.vmem %s0, %s1159
      %s1162 = scalar_lea.vmem %s1160, %s1149
      %v1163 = vld [vmem:[%s1162] ss:$0 sm:$0xff]
      %v1164 = vlaneseq
      %v1165 = vshrl.u32 %v1164, 7
      %v1166 = vstv %s1153
      %v1167 = vadd.s32 %v1165, %v1166
      %1168 = vset.pattern.permute.xlu0 %v1167
      %1169 = vperm.xlu0 %1168, %v1163
      %v1170 = vpop.permute.xlu0 %1169
      %s1171 = scalar_lea.vmem %s383, 336
      %1172 = vst [vmem:[%s1171] sm:$0xff] %v1170
      %s1173 = sadd.s32 1, %s347
      %s1174 = sadd.s32 1, %s349
      %s1175 = sadd.s32 %s390, 3
      %s1176 = sshrl.u32 %s1175, 3
      %p1177 = scmp.lt.s32.totalorder 2, %s1176
      %s1178 = scalar_select %p1177, 2, %s1176
      %s1179 = sand.u32 %s1175, 7
      %s1180 = sshrl.u32 %s392, 7
      %p1181 = scmp.lt.s32.totalorder 0, %s1180
      %s1182 = scalar_select %p1181, 0, %s1180
      %s1183 = sand.u32 %s392, 127
      %s1184 = sadd.s32 %s1182, %s1178
      %s1185 = smul.addr %s1174, 3
      %s1186 = sadd.s32 %s1184, %s1185
      %s1187 = smul.addr %s1173, 12
      %s1188 = sadd.s32 %s1186, %s1187
      %s1189 = smul.addr %s1188, 8
      %s1190 = scalar_lea.vmem %s0, %s1189
      %s1192 = scalar_lea.vmem %s1190, %s1179
      %v1193 = vld [vmem:[%s1192] ss:$0 sm:$0xff]
      %v1194 = vlaneseq
      %v1195 = vshrl.u32 %v1194, 7
      %v1196 = vstv %s1183
      %v1197 = vadd.s32 %v1195, %v1196
      %1198 = vset.pattern.permute.xlu0 %v1197
      %1199 = vperm.xlu0 %1198, %v1193
      %v1200 = vpop.permute.xlu0 %1199
      %s1201 = scalar_lea.vmem %s383, 1488
      %1202 = vst [vmem:[%s1201] sm:$0xff] %v1200
      %s1203 = sadd.s32 2, %s349
      %s1204 = sadd.s32 %s390, 3
      %s1205 = sshrl.u32 %s1204, 3
      %p1206 = scmp.lt.s32.totalorder 2, %s1205
      %s1207 = scalar_select %p1206, 2, %s1205
      %s1208 = sand.u32 %s1204, 7
      %s1209 = sshrl.u32 %s392, 7
      %p1210 = scmp.lt.s32.totalorder 0, %s1209
      %s1211 = scalar_select %p1210, 0, %s1209
      %s1212 = sand.u32 %s392, 127
      %s1213 = sadd.s32 %s1211, %s1207
      %s1214 = smul.addr %s1203, 3
      %s1215 = sadd.s32 %s1213, %s1214
      %s1216 = smul.addr %s347, 12
      %s1217 = sadd.s32 %s1215, %s1216
      %s1218 = smul.addr %s1217, 8
      %s1219 = scalar_lea.vmem %s0, %s1218
      %s1221 = scalar_lea.vmem %s1219, %s1208
      %v1222 = vld [vmem:[%s1221] ss:$0 sm:$0xff]
      %v1223 = vlaneseq
      %v1224 = vshrl.u32 %v1223, 7
      %v1225 = vstv %s1212
      %v1226 = vadd.s32 %v1224, %v1225
      %1227 = vset.pattern.permute.xlu0 %v1226
      %1228 = vperm.xlu0 %1227, %v1222
      %v1229 = vpop.permute.xlu0 %1228
      %s1230 = scalar_lea.vmem %s383, 624
      %1231 = vst [vmem:[%s1230] sm:$0xff] %v1229
      %s1232 = sadd.s32 1, %s347
      %s1233 = sadd.s32 2, %s349
      %s1234 = sadd.s32 %s390, 3
      %s1235 = sshrl.u32 %s1234, 3
      %p1236 = scmp.lt.s32.totalorder 2, %s1235
      %s1237 = scalar_select %p1236, 2, %s1235
      %s1238 = sand.u32 %s1234, 7
      %s1239 = sshrl.u32 %s392, 7
      %p1240 = scmp.lt.s32.totalorder 0, %s1239
      %s1241 = scalar_select %p1240, 0, %s1239
      %s1242 = sand.u32 %s392, 127
      %s1243 = sadd.s32 %s1241, %s1237
      %s1244 = smul.addr %s1233, 3
      %s1245 = sadd.s32 %s1243, %s1244
      %s1246 = smul.addr %s1232, 12
      %s1247 = sadd.s32 %s1245, %s1246
      %s1248 = smul.addr %s1247, 8
      %s1249 = scalar_lea.vmem %s0, %s1248
      %s1251 = scalar_lea.vmem %s1249, %s1238
      %v1252 = vld [vmem:[%s1251] ss:$0 sm:$0xff]
      %v1253 = vlaneseq
      %v1254 = vshrl.u32 %v1253, 7
      %v1255 = vstv %s1242
      %v1256 = vadd.s32 %v1254, %v1255
      %1257 = vset.pattern.permute.xlu0 %v1256
      %1258 = vperm.xlu0 %1257, %v1252
      %v1259 = vpop.permute.xlu0 %1258
      %s1260 = scalar_lea.vmem %s383, 1776
      %1261 = vst [vmem:[%s1260] sm:$0xff] %v1259
      %s1262 = sadd.s32 3, %s349
      %s1263 = sadd.s32 %s390, 3
      %s1264 = sshrl.u32 %s1263, 3
      %p1265 = scmp.lt.s32.totalorder 2, %s1264
      %s1266 = scalar_select %p1265, 2, %s1264
      %s1267 = sand.u32 %s1263, 7
      %s1268 = sshrl.u32 %s392, 7
      %p1269 = scmp.lt.s32.totalorder 0, %s1268
      %s1270 = scalar_select %p1269, 0, %s1268
      %s1271 = sand.u32 %s392, 127
      %s1272 = sadd.s32 %s1270, %s1266
      %s1273 = smul.addr %s1262, 3
      %s1274 = sadd.s32 %s1272, %s1273
      %s1275 = smul.addr %s347, 12
      %s1276 = sadd.s32 %s1274, %s1275
      %s1277 = smul.addr %s1276, 8
      %s1278 = scalar_lea.vmem %s0, %s1277
      %s1280 = scalar_lea.vmem %s1278, %s1267
      %v1281 = vld [vmem:[%s1280] ss:$0 sm:$0xff]
      %v1282 = vlaneseq
      %v1283 = vshrl.u32 %v1282, 7
      %v1284 = vstv %s1271
      %v1285 = vadd.s32 %v1283, %v1284
      %1286 = vset.pattern.permute.xlu0 %v1285
      %1287 = vperm.xlu0 %1286, %v1281
      %v1288 = vpop.permute.xlu0 %1287
      %s1289 = scalar_lea.vmem %s383, 912
      %1290 = vst [vmem:[%s1289] sm:$0xff] %v1288
      %s1291 = sadd.s32 1, %s347
      %s1292 = sadd.s32 3, %s349
      %s1293 = sadd.s32 %s390, 3
      %s1294 = sshrl.u32 %s1293, 3
      %p1295 = scmp.lt.s32.totalorder 2, %s1294
      %s1296 = scalar_select %p1295, 2, %s1294
      %s1297 = sand.u32 %s1293, 7
      %s1298 = sshrl.u32 %s392, 7
      %p1299 = scmp.lt.s32.totalorder 0, %s1298
      %s1300 = scalar_select %p1299, 0, %s1298
      %s1301 = sand.u32 %s392, 127
      %s1302 = sadd.s32 %s1300, %s1296
      %s1303 = smul.addr %s1292, 3
      %s1304 = sadd.s32 %s1302, %s1303
      %s1305 = smul.addr %s1291, 12
      %s1306 = sadd.s32 %s1304, %s1305
      %s1307 = smul.addr %s1306, 8
      %s1308 = scalar_lea.vmem %s0, %s1307
      %s1310 = scalar_lea.vmem %s1308, %s1297
      %v1311 = vld [vmem:[%s1310] ss:$0 sm:$0xff]
      %v1312 = vlaneseq
      %v1313 = vshrl.u32 %v1312, 7
      %v1314 = vstv %s1301
      %v1315 = vadd.s32 %v1313, %v1314
      %1316 = vset.pattern.permute.xlu0 %v1315
      %1317 = vperm.xlu0 %1316, %v1311
      %v1318 = vpop.permute.xlu0 %1317
      %s1319 = scalar_lea.vmem %s383, 2064
      %1320 = vst [vmem:[%s1319] sm:$0xff] %v1318
      %s1321 = sadd.s32 %s390, 4
      %s1322 = sshrl.u32 %s1321, 3
      %p1323 = scmp.lt.s32.totalorder 2, %s1322
      %s1324 = scalar_select %p1323, 2, %s1322
      %s1325 = sand.u32 %s1321, 7
      %s1326 = sshrl.u32 %s392, 7
      %p1327 = scmp.lt.s32.totalorder 0, %s1326
      %s1328 = scalar_select %p1327, 0, %s1326
      %s1329 = sand.u32 %s392, 127
      %s1330 = sadd.s32 %s1328, %s1324
      %s1331 = smul.addr %s349, 3
      %s1332 = sadd.s32 %s1330, %s1331
      %s1333 = smul.addr %s347, 12
      %s1334 = sadd.s32 %s1332, %s1333
      %s1335 = smul.addr %s1334, 8
      %s1336 = scalar_lea.vmem %s0, %s1335
      %s1338 = scalar_lea.vmem %s1336, %s1325
      %v1339 = vld [vmem:[%s1338] ss:$0 sm:$0xff]
      %v1340 = vlaneseq
      %v1341 = vshrl.u32 %v1340, 7
      %v1342 = vstv %s1329
      %v1343 = vadd.s32 %v1341, %v1342
      %1344 = vset.pattern.permute.xlu0 %v1343
      %1345 = vperm.xlu0 %1344, %v1339
      %v1346 = vpop.permute.xlu0 %1345
      %s1347 = scalar_lea.vmem %s383, 64
      %1348 = vst [vmem:[%s1347] sm:$0xff] %v1346
      %s1349 = sadd.s32 1, %s347
      %s1350 = sadd.s32 %s390, 4
      %s1351 = sshrl.u32 %s1350, 3
      %p1352 = scmp.lt.s32.totalorder 2, %s1351
      %s1353 = scalar_select %p1352, 2, %s1351
      %s1354 = sand.u32 %s1350, 7
      %s1355 = sshrl.u32 %s392, 7
      %p1356 = scmp.lt.s32.totalorder 0, %s1355
      %s1357 = scalar_select %p1356, 0, %s1355
      %s1358 = sand.u32 %s392, 127
      %s1359 = sadd.s32 %s1357, %s1353
      %s1360 = smul.addr %s349, 3
      %s1361 = sadd.s32 %s1359, %s1360
      %s1362 = smul.addr %s1349, 12
      %s1363 = sadd.s32 %s1361, %s1362
      %s1364 = smul.addr %s1363, 8
      %s1365 = scalar_lea.vmem %s0, %s1364
      %s1367 = scalar_lea.vmem %s1365, %s1354
      %v1368 = vld [vmem:[%s1367] ss:$0 sm:$0xff]
      %v1369 = vlaneseq
      %v1370 = vshrl.u32 %v1369, 7
      %v1371 = vstv %s1358
      %v1372 = vadd.s32 %v1370, %v1371
      %1373 = vset.pattern.permute.xlu0 %v1372
      %1374 = vperm.xlu0 %1373, %v1368
      %v1375 = vpop.permute.xlu0 %1374
      %s1376 = scalar_lea.vmem %s383, 1216
      %1377 = vst [vmem:[%s1376] sm:$0xff] %v1375
      %s1378 = sadd.s32 1, %s349
      %s1379 = sadd.s32 %s390, 4
      %s1380 = sshrl.u32 %s1379, 3
      %p1381 = scmp.lt.s32.totalorder 2, %s1380
      %s1382 = scalar_select %p1381, 2, %s1380
      %s1383 = sand.u32 %s1379, 7
      %s1384 = sshrl.u32 %s392, 7
      %p1385 = scmp.lt.s32.totalorder 0, %s1384
      %s1386 = scalar_select %p1385, 0, %s1384
      %s1387 = sand.u32 %s392, 127
      %s1388 = sadd.s32 %s1386, %s1382
      %s1389 = smul.addr %s1378, 3
      %s1390 = sadd.s32 %s1388, %s1389
      %s1391 = smul.addr %s347, 12
      %s1392 = sadd.s32 %s1390, %s1391
      %s1393 = smul.addr %s1392, 8
      %s1394 = scalar_lea.vmem %s0, %s1393
      %s1396 = scalar_lea.vmem %s1394, %s1383
      %v1397 = vld [vmem:[%s1396] ss:$0 sm:$0xff]
      %v1398 = vlaneseq
      %v1399 = vshrl.u32 %v1398, 7
      %v1400 = vstv %s1387
      %v1401 = vadd.s32 %v1399, %v1400
      %1402 = vset.pattern.permute.xlu0 %v1401
      %1403 = vperm.xlu0 %1402, %v1397
      %v1404 = vpop.permute.xlu0 %1403
      %s1405 = scalar_lea.vmem %s383, 352
      %1406 = vst [vmem:[%s1405] sm:$0xff] %v1404
      %s1407 = sadd.s32 1, %s347
      %s1408 = sadd.s32 1, %s349
      %s1409 = sadd.s32 %s390, 4
      %s1410 = sshrl.u32 %s1409, 3
      %p1411 = scmp.lt.s32.totalorder 2, %s1410
      %s1412 = scalar_select %p1411, 2, %s1410
      %s1413 = sand.u32 %s1409, 7
      %s1414 = sshrl.u32 %s392, 7
      %p1415 = scmp.lt.s32.totalorder 0, %s1414
      %s1416 = scalar_select %p1415, 0, %s1414
      %s1417 = sand.u32 %s392, 127
      %s1418 = sadd.s32 %s1416, %s1412
      %s1419 = smul.addr %s1408, 3
      %s1420 = sadd.s32 %s1418, %s1419
      %s1421 = smul.addr %s1407, 12
      %s1422 = sadd.s32 %s1420, %s1421
      %s1423 = smul.addr %s1422, 8
      %s1424 = scalar_lea.vmem %s0, %s1423
      %s1426 = scalar_lea.vmem %s1424, %s1413
      %v1427 = vld [vmem:[%s1426] ss:$0 sm:$0xff]
      %v1428 = vlaneseq
      %v1429 = vshrl.u32 %v1428, 7
      %v1430 = vstv %s1417
      %v1431 = vadd.s32 %v1429, %v1430
      %1432 = vset.pattern.permute.xlu0 %v1431
      %1433 = vperm.xlu0 %1432, %v1427
      %v1434 = vpop.permute.xlu0 %1433
      %s1435 = scalar_lea.vmem %s383, 1504
      %1436 = vst [vmem:[%s1435] sm:$0xff] %v1434
      %s1437 = sadd.s32 2, %s349
      %s1438 = sadd.s32 %s390, 4
      %s1439 = sshrl.u32 %s1438, 3
      %p1440 = scmp.lt.s32.totalorder 2, %s1439
      %s1441 = scalar_select %p1440, 2, %s1439
      %s1442 = sand.u32 %s1438, 7
      %s1443 = sshrl.u32 %s392, 7
      %p1444 = scmp.lt.s32.totalorder 0, %s1443
      %s1445 = scalar_select %p1444, 0, %s1443
      %s1446 = sand.u32 %s392, 127
      %s1447 = sadd.s32 %s1445, %s1441
      %s1448 = smul.addr %s1437, 3
      %s1449 = sadd.s32 %s1447, %s1448
      %s1450 = smul.addr %s347, 12
      %s1451 = sadd.s32 %s1449, %s1450
      %s1452 = smul.addr %s1451, 8
      %s1453 = scalar_lea.vmem %s0, %s1452
      %s1455 = scalar_lea.vmem %s1453, %s1442
      %v1456 = vld [vmem:[%s1455] ss:$0 sm:$0xff]
      %v1457 = vlaneseq
      %v1458 = vshrl.u32 %v1457, 7
      %v1459 = vstv %s1446
      %v1460 = vadd.s32 %v1458, %v1459
      %1461 = vset.pattern.permute.xlu0 %v1460
      %1462 = vperm.xlu0 %1461, %v1456
      %v1463 = vpop.permute.xlu0 %1462
      %s1464 = scalar_lea.vmem %s383, 640
      %1465 = vst [vmem:[%s1464] sm:$0xff] %v1463
      %s1466 = sadd.s32 1, %s347
      %s1467 = sadd.s32 2, %s349
      %s1468 = sadd.s32 %s390, 4
      %s1469 = sshrl.u32 %s1468, 3
      %p1470 = scmp.lt.s32.totalorder 2, %s1469
      %s1471 = scalar_select %p1470, 2, %s1469
      %s1472 = sand.u32 %s1468, 7
      %s1473 = sshrl.u32 %s392, 7
      %p1474 = scmp.lt.s32.totalorder 0, %s1473
      %s1475 = scalar_select %p1474, 0, %s1473
      %s1476 = sand.u32 %s392, 127
      %s1477 = sadd.s32 %s1475, %s1471
      %s1478 = smul.addr %s1467, 3
      %s1479 = sadd.s32 %s1477, %s1478
      %s1480 = smul.addr %s1466, 12
      %s1481 = sadd.s32 %s1479, %s1480
      %s1482 = smul.addr %s1481, 8
      %s1483 = scalar_lea.vmem %s0, %s1482
      %s1485 = scalar_lea.vmem %s1483, %s1472
      %v1486 = vld [vmem:[%s1485] ss:$0 sm:$0xff]
      %v1487 = vlaneseq
      %v1488 = vshrl.u32 %v1487, 7
      %v1489 = vstv %s1476
      %v1490 = vadd.s32 %v1488, %v1489
      %1491 = vset.pattern.permute.xlu0 %v1490
      %1492 = vperm.xlu0 %1491, %v1486
      %v1493 = vpop.permute.xlu0 %1492
      %s1494 = scalar_lea.vmem %s383, 1792
      %1495 = vst [vmem:[%s1494] sm:$0xff] %v1493
      %s1496 = sadd.s32 3, %s349
      %s1497 = sadd.s32 %s390, 4
      %s1498 = sshrl.u32 %s1497, 3
      %p1499 = scmp.lt.s32.totalorder 2, %s1498
      %s1500 = scalar_select %p1499, 2, %s1498
      %s1501 = sand.u32 %s1497, 7
      %s1502 = sshrl.u32 %s392, 7
      %p1503 = scmp.lt.s32.totalorder 0, %s1502
      %s1504 = scalar_select %p1503, 0, %s1502
      %s1505 = sand.u32 %s392, 127
      %s1506 = sadd.s32 %s1504, %s1500
      %s1507 = smul.addr %s1496, 3
      %s1508 = sadd.s32 %s1506, %s1507
      %s1509 = smul.addr %s347, 12
      %s1510 = sadd.s32 %s1508, %s1509
      %s1511 = smul.addr %s1510, 8
      %s1512 = scalar_lea.vmem %s0, %s1511
      %s1514 = scalar_lea.vmem %s1512, %s1501
      %v1515 = vld [vmem:[%s1514] ss:$0 sm:$0xff]
      %v1516 = vlaneseq
      %v1517 = vshrl.u32 %v1516, 7
      %v1518 = vstv %s1505
      %v1519 = vadd.s32 %v1517, %v1518
      %1520 = vset.pattern.permute.xlu0 %v1519
      %1521 = vperm.xlu0 %1520, %v1515
      %v1522 = vpop.permute.xlu0 %1521
      %s1523 = scalar_lea.vmem %s383, 928
      %1524 = vst [vmem:[%s1523] sm:$0xff] %v1522
      %s1525 = sadd.s32 1, %s347
      %s1526 = sadd.s32 3, %s349
      %s1527 = sadd.s32 %s390, 4
      %s1528 = sshrl.u32 %s1527, 3
      %p1529 = scmp.lt.s32.totalorder 2, %s1528
      %s1530 = scalar_select %p1529, 2, %s1528
      %s1531 = sand.u32 %s1527, 7
      %s1532 = sshrl.u32 %s392, 7
      %p1533 = scmp.lt.s32.totalorder 0, %s1532
      %s1534 = scalar_select %p1533, 0, %s1532
      %s1535 = sand.u32 %s392, 127
      %s1536 = sadd.s32 %s1534, %s1530
      %s1537 = smul.addr %s1526, 3
      %s1538 = sadd.s32 %s1536, %s1537
      %s1539 = smul.addr %s1525, 12
      %s1540 = sadd.s32 %s1538, %s1539
      %s1541 = smul.addr %s1540, 8
      %s1542 = scalar_lea.vmem %s0, %s1541
      %s1544 = scalar_lea.vmem %s1542, %s1531
      %v1545 = vld [vmem:[%s1544] ss:$0 sm:$0xff]
      %v1546 = vlaneseq
      %v1547 = vshrl.u32 %v1546, 7
      %v1548 = vstv %s1535
      %v1549 = vadd.s32 %v1547, %v1548
      %1550 = vset.pattern.permute.xlu0 %v1549
      %1551 = vperm.xlu0 %1550, %v1545
      %v1552 = vpop.permute.xlu0 %1551
      %s1553 = scalar_lea.vmem %s383, 2080
      %1554 = vst [vmem:[%s1553] sm:$0xff] %v1552
      %s1555 = sadd.s32 %s390, 5
      %s1556 = sshrl.u32 %s1555, 3
      %p1557 = scmp.lt.s32.totalorder 2, %s1556
      %s1558 = scalar_select %p1557, 2, %s1556
      %s1559 = sand.u32 %s1555, 7
      %s1560 = sshrl.u32 %s392, 7
      %p1561 = scmp.lt.s32.totalorder 0, %s1560
      %s1562 = scalar_select %p1561, 0, %s1560
      %s1563 = sand.u32 %s392, 127
      %s1564 = sadd.s32 %s1562, %s1558
      %s1565 = smul.addr %s349, 3
      %s1566 = sadd.s32 %s1564, %s1565
      %s1567 = smul.addr %s347, 12
      %s1568 = sadd.s32 %s1566, %s1567
      %s1569 = smul.addr %s1568, 8
      %s1570 = scalar_lea.vmem %s0, %s1569
      %s1572 = scalar_lea.vmem %s1570, %s1559
      %v1573 = vld [vmem:[%s1572] ss:$0 sm:$0xff]
      %v1574 = vlaneseq
      %v1575 = vshrl.u32 %v1574, 7
      %v1576 = vstv %s1563
      %v1577 = vadd.s32 %v1575, %v1576
      %1578 = vset.pattern.permute.xlu0 %v1577
      %1579 = vperm.xlu0 %1578, %v1573
      %v1580 = vpop.permute.xlu0 %1579
      %s1581 = scalar_lea.vmem %s383, 80
      %1582 = vst [vmem:[%s1581] sm:$0xff] %v1580
      %s1583 = sadd.s32 1, %s347
      %s1584 = sadd.s32 %s390, 5
      %s1585 = sshrl.u32 %s1584, 3
      %p1586 = scmp.lt.s32.totalorder 2, %s1585
      %s1587 = scalar_select %p1586, 2, %s1585
      %s1588 = sand.u32 %s1584, 7
      %s1589 = sshrl.u32 %s392, 7
      %p1590 = scmp.lt.s32.totalorder 0, %s1589
      %s1591 = scalar_select %p1590, 0, %s1589
      %s1592 = sand.u32 %s392, 127
      %s1593 = sadd.s32 %s1591, %s1587
      %s1594 = smul.addr %s349, 3
      %s1595 = sadd.s32 %s1593, %s1594
      %s1596 = smul.addr %s1583, 12
      %s1597 = sadd.s32 %s1595, %s1596
      %s1598 = smul.addr %s1597, 8
      %s1599 = scalar_lea.vmem %s0, %s1598
      %s1601 = scalar_lea.vmem %s1599, %s1588
      %v1602 = vld [vmem:[%s1601] ss:$0 sm:$0xff]
      %v1603 = vlaneseq
      %v1604 = vshrl.u32 %v1603, 7
      %v1605 = vstv %s1592
      %v1606 = vadd.s32 %v1604, %v1605
      %1607 = vset.pattern.permute.xlu0 %v1606
      %1608 = vperm.xlu0 %1607, %v1602
      %v1609 = vpop.permute.xlu0 %1608
      %s1610 = scalar_lea.vmem %s383, 1232
      %1611 = vst [vmem:[%s1610] sm:$0xff] %v1609
      %s1612 = sadd.s32 1, %s349
      %s1613 = sadd.s32 %s390, 5
      %s1614 = sshrl.u32 %s1613, 3
      %p1615 = scmp.lt.s32.totalorder 2, %s1614
      %s1616 = scalar_select %p1615, 2, %s1614
      %s1617 = sand.u32 %s1613, 7
      %s1618 = sshrl.u32 %s392, 7
      %p1619 = scmp.lt.s32.totalorder 0, %s1618
      %s1620 = scalar_select %p1619, 0, %s1618
      %s1621 = sand.u32 %s392, 127
      %s1622 = sadd.s32 %s1620, %s1616
      %s1623 = smul.addr %s1612, 3
      %s1624 = sadd.s32 %s1622, %s1623
      %s1625 = smul.addr %s347, 12
      %s1626 = sadd.s32 %s1624, %s1625
      %s1627 = smul.addr %s1626, 8
      %s1628 = scalar_lea.vmem %s0, %s1627
      %s1630 = scalar_lea.vmem %s1628, %s1617
      %v1631 = vld [vmem:[%s1630] ss:$0 sm:$0xff]
      %v1632 = vlaneseq
      %v1633 = vshrl.u32 %v1632, 7
      %v1634 = vstv %s1621
      %v1635 = vadd.s32 %v1633, %v1634
      %1636 = vset.pattern.permute.xlu0 %v1635
      %1637 = vperm.xlu0 %1636, %v1631
      %v1638 = vpop.permute.xlu0 %1637
      %s1639 = scalar_lea.vmem %s383, 368
      %1640 = vst [vmem:[%s1639] sm:$0xff] %v1638
      %s1641 = sadd.s32 1, %s347
      %s1642 = sadd.s32 1, %s349
      %s1643 = sadd.s32 %s390, 5
      %s1644 = sshrl.u32 %s1643, 3
      %p1645 = scmp.lt.s32.totalorder 2, %s1644
      %s1646 = scalar_select %p1645, 2, %s1644
      %s1647 = sand.u32 %s1643, 7
      %s1648 = sshrl.u32 %s392, 7
      %p1649 = scmp.lt.s32.totalorder 0, %s1648
      %s1650 = scalar_select %p1649, 0, %s1648
      %s1651 = sand.u32 %s392, 127
      %s1652 = sadd.s32 %s1650, %s1646
      %s1653 = smul.addr %s1642, 3
      %s1654 = sadd.s32 %s1652, %s1653
      %s1655 = smul.addr %s1641, 12
      %s1656 = sadd.s32 %s1654, %s1655
      %s1657 = smul.addr %s1656, 8
      %s1658 = scalar_lea.vmem %s0, %s1657
      %s1660 = scalar_lea.vmem %s1658, %s1647
      %v1661 = vld [vmem:[%s1660] ss:$0 sm:$0xff]
      %v1662 = vlaneseq
      %v1663 = vshrl.u32 %v1662, 7
      %v1664 = vstv %s1651
      %v1665 = vadd.s32 %v1663, %v1664
      %1666 = vset.pattern.permute.xlu0 %v1665
      %1667 = vperm.xlu0 %1666, %v1661
      %v1668 = vpop.permute.xlu0 %1667
      %s1669 = scalar_lea.vmem %s383, 1520
      %1670 = vst [vmem:[%s1669] sm:$0xff] %v1668
      %s1671 = sadd.s32 2, %s349
      %s1672 = sadd.s32 %s390, 5
      %s1673 = sshrl.u32 %s1672, 3
      %p1674 = scmp.lt.s32.totalorder 2, %s1673
      %s1675 = scalar_select %p1674, 2, %s1673
      %s1676 = sand.u32 %s1672, 7
      %s1677 = sshrl.u32 %s392, 7
      %p1678 = scmp.lt.s32.totalorder 0, %s1677
      %s1679 = scalar_select %p1678, 0, %s1677
      %s1680 = sand.u32 %s392, 127
      %s1681 = sadd.s32 %s1679, %s1675
      %s1682 = smul.addr %s1671, 3
      %s1683 = sadd.s32 %s1681, %s1682
      %s1684 = smul.addr %s347, 12
      %s1685 = sadd.s32 %s1683, %s1684
      %s1686 = smul.addr %s1685, 8
      %s1687 = scalar_lea.vmem %s0, %s1686
      %s1689 = scalar_lea.vmem %s1687, %s1676
      %v1690 = vld [vmem:[%s1689] ss:$0 sm:$0xff]
      %v1691 = vlaneseq
      %v1692 = vshrl.u32 %v1691, 7
      %v1693 = vstv %s1680
      %v1694 = vadd.s32 %v1692, %v1693
      %1695 = vset.pattern.permute.xlu0 %v1694
      %1696 = vperm.xlu0 %1695, %v1690
      %v1697 = vpop.permute.xlu0 %1696
      %s1698 = scalar_lea.vmem %s383, 656
      %1699 = vst [vmem:[%s1698] sm:$0xff] %v1697
      %s1700 = sadd.s32 1, %s347
      %s1701 = sadd.s32 2, %s349
      %s1702 = sadd.s32 %s390, 5
      %s1703 = sshrl.u32 %s1702, 3
      %p1704 = scmp.lt.s32.totalorder 2, %s1703
      %s1705 = scalar_select %p1704, 2, %s1703
      %s1706 = sand.u32 %s1702, 7
      %s1707 = sshrl.u32 %s392, 7
      %p1708 = scmp.lt.s32.totalorder 0, %s1707
      %s1709 = scalar_select %p1708, 0, %s1707
      %s1710 = sand.u32 %s392, 127
      %s1711 = sadd.s32 %s1709, %s1705
      %s1712 = smul.addr %s1701, 3
      %s1713 = sadd.s32 %s1711, %s1712
      %s1714 = smul.addr %s1700, 12
      %s1715 = sadd.s32 %s1713, %s1714
      %s1716 = smul.addr %s1715, 8
      %s1717 = scalar_lea.vmem %s0, %s1716
      %s1719 = scalar_lea.vmem %s1717, %s1706
      %v1720 = vld [vmem:[%s1719] ss:$0 sm:$0xff]
      %v1721 = vlaneseq
      %v1722 = vshrl.u32 %v1721, 7
      %v1723 = vstv %s1710
      %v1724 = vadd.s32 %v1722, %v1723
      %1725 = vset.pattern.permute.xlu0 %v1724
      %1726 = vperm.xlu0 %1725, %v1720
      %v1727 = vpop.permute.xlu0 %1726
      %s1728 = scalar_lea.vmem %s383, 1808
      %1729 = vst [vmem:[%s1728] sm:$0xff] %v1727
      %s1730 = sadd.s32 3, %s349
      %s1731 = sadd.s32 %s390, 5
      %s1732 = sshrl.u32 %s1731, 3
      %p1733 = scmp.lt.s32.totalorder 2, %s1732
      %s1734 = scalar_select %p1733, 2, %s1732
      %s1735 = sand.u32 %s1731, 7
      %s1736 = sshrl.u32 %s392, 7
      %p1737 = scmp.lt.s32.totalorder 0, %s1736
      %s1738 = scalar_select %p1737, 0, %s1736
      %s1739 = sand.u32 %s392, 127
      %s1740 = sadd.s32 %s1738, %s1734
      %s1741 = smul.addr %s1730, 3
      %s1742 = sadd.s32 %s1740, %s1741
      %s1743 = smul.addr %s347, 12
      %s1744 = sadd.s32 %s1742, %s1743
      %s1745 = smul.addr %s1744, 8
      %s1746 = scalar_lea.vmem %s0, %s1745
      %s1748 = scalar_lea.vmem %s1746, %s1735
      %v1749 = vld [vmem:[%s1748] ss:$0 sm:$0xff]
      %v1750 = vlaneseq
      %v1751 = vshrl.u32 %v1750, 7
      %v1752 = vstv %s1739
      %v1753 = vadd.s32 %v1751, %v1752
      %1754 = vset.pattern.permute.xlu0 %v1753
      %1755 = vperm.xlu0 %1754, %v1749
      %v1756 = vpop.permute.xlu0 %1755
      %s1757 = scalar_lea.vmem %s383, 944
      %1758 = vst [vmem:[%s1757] sm:$0xff] %v1756
      %s1759 = sadd.s32 1, %s347
      %s1760 = sadd.s32 3, %s349
      %s1761 = sadd.s32 %s390, 5
      %s1762 = sshrl.u32 %s1761, 3
      %p1763 = scmp.lt.s32.totalorder 2, %s1762
      %s1764 = scalar_select %p1763, 2, %s1762
      %s1765 = sand.u32 %s1761, 7
      %s1766 = sshrl.u32 %s392, 7
      %p1767 = scmp.lt.s32.totalorder 0, %s1766
      %s1768 = scalar_select %p1767, 0, %s1766
      %s1769 = sand.u32 %s392, 127
      %s1770 = sadd.s32 %s1768, %s1764
      %s1771 = smul.addr %s1760, 3
      %s1772 = sadd.s32 %s1770, %s1771
      %s1773 = smul.addr %s1759, 12
      %s1774 = sadd.s32 %s1772, %s1773
      %s1775 = smul.addr %s1774, 8
      %s1776 = scalar_lea.vmem %s0, %s1775
      %s1778 = scalar_lea.vmem %s1776, %s1765
      %v1779 = vld [vmem:[%s1778] ss:$0 sm:$0xff]
      %v1780 = vlaneseq
      %v1781 = vshrl.u32 %v1780, 7
      %v1782 = vstv %s1769
      %v1783 = vadd.s32 %v1781, %v1782
      %1784 = vset.pattern.permute.xlu0 %v1783
      %1785 = vperm.xlu0 %1784, %v1779
      %v1786 = vpop.permute.xlu0 %1785
      %s1787 = scalar_lea.vmem %s383, 2096
      %1788 = vst [vmem:[%s1787] sm:$0xff] %v1786
      %s1789 = sshrl.u32 %s390, 3
      %p1790 = scmp.lt.s32.totalorder 2, %s1789
      %s1791 = scalar_select %p1790, 2, %s1789
      %s1792 = sand.u32 %s390, 7
      %s1793 = sadd.s32 %s392, 8
      %s1794 = sshrl.u32 %s1793, 7
      %p1795 = scmp.lt.s32.totalorder 0, %s1794
      %s1796 = scalar_select %p1795, 0, %s1794
      %s1797 = sand.u32 %s1793, 127
      %s1798 = sadd.s32 %s1796, %s1791
      %s1799 = smul.addr %s349, 3
      %s1800 = sadd.s32 %s1798, %s1799
      %s1801 = smul.addr %s347, 12
      %s1802 = sadd.s32 %s1800, %s1801
      %s1803 = smul.addr %s1802, 8
      %s1804 = scalar_lea.vmem %s0, %s1803
      %s1806 = scalar_lea.vmem %s1804, %s1792
      %v1807 = vld [vmem:[%s1806] ss:$0 sm:$0xff]
      %v1808 = vlaneseq
      %v1809 = vshrl.u32 %v1808, 7
      %v1810 = vstv %s1797
      %v1811 = vadd.s32 %v1809, %v1810
      %1812 = vset.pattern.permute.xlu0 %v1811
      %1813 = vperm.xlu0 %1812, %v1807
      %v1814 = vpop.permute.xlu0 %1813
      %s1815 = scalar_lea.vmem %s383, 8
      %1816 = vst [vmem:[%s1815] sm:$0xff] %v1814
      %s1817 = sadd.s32 1, %s347
      %s1818 = sshrl.u32 %s390, 3
      %p1819 = scmp.lt.s32.totalorder 2, %s1818
      %s1820 = scalar_select %p1819, 2, %s1818
      %s1821 = sand.u32 %s390, 7
      %s1822 = sadd.s32 %s392, 8
      %s1823 = sshrl.u32 %s1822, 7
      %p1824 = scmp.lt.s32.totalorder 0, %s1823
      %s1825 = scalar_select %p1824, 0, %s1823
      %s1826 = sand.u32 %s1822, 127
      %s1827 = sadd.s32 %s1825, %s1820
      %s1828 = smul.addr %s349, 3
      %s1829 = sadd.s32 %s1827, %s1828
      %s1830 = smul.addr %s1817, 12
      %s1831 = sadd.s32 %s1829, %s1830
      %s1832 = smul.addr %s1831, 8
      %s1833 = scalar_lea.vmem %s0, %s1832
      %s1835 = scalar_lea.vmem %s1833, %s1821
      %v1836 = vld [vmem:[%s1835] ss:$0 sm:$0xff]
      %v1837 = vlaneseq
      %v1838 = vshrl.u32 %v1837, 7
      %v1839 = vstv %s1826
      %v1840 = vadd.s32 %v1838, %v1839
      %1841 = vset.pattern.permute.xlu0 %v1840
      %1842 = vperm.xlu0 %1841, %v1836
      %v1843 = vpop.permute.xlu0 %1842
      %s1844 = scalar_lea.vmem %s383, 1160
      %1845 = vst [vmem:[%s1844] sm:$0xff] %v1843
      %s1846 = sadd.s32 1, %s349
      %s1847 = sshrl.u32 %s390, 3
      %p1848 = scmp.lt.s32.totalorder 2, %s1847
      %s1849 = scalar_select %p1848, 2, %s1847
      %s1850 = sand.u32 %s390, 7
      %s1851 = sadd.s32 %s392, 8
      %s1852 = sshrl.u32 %s1851, 7
      %p1853 = scmp.lt.s32.totalorder 0, %s1852
      %s1854 = scalar_select %p1853, 0, %s1852
      %s1855 = sand.u32 %s1851, 127
      %s1856 = sadd.s32 %s1854, %s1849
      %s1857 = smul.addr %s1846, 3
      %s1858 = sadd.s32 %s1856, %s1857
      %s1859 = smul.addr %s347, 12
      %s1860 = sadd.s32 %s1858, %s1859
      %s1861 = smul.addr %s1860, 8
      %s1862 = scalar_lea.vmem %s0, %s1861
      %s1864 = scalar_lea.vmem %s1862, %s1850
      %v1865 = vld [vmem:[%s1864] ss:$0 sm:$0xff]
      %v1866 = vlaneseq
      %v1867 = vshrl.u32 %v1866, 7
      %v1868 = vstv %s1855
      %v1869 = vadd.s32 %v1867, %v1868
      %1870 = vset.pattern.permute.xlu0 %v1869
      %1871 = vperm.xlu0 %1870, %v1865
      %v1872 = vpop.permute.xlu0 %1871
      %s1873 = scalar_lea.vmem %s383, 296
      %1874 = vst [vmem:[%s1873] sm:$0xff] %v1872
      %s1875 = sadd.s32 1, %s347
      %s1876 = sadd.s32 1, %s349
      %s1877 = sshrl.u32 %s390, 3
      %p1878 = scmp.lt.s32.totalorder 2, %s1877
      %s1879 = scalar_select %p1878, 2, %s1877
      %s1880 = sand.u32 %s390, 7
      %s1881 = sadd.s32 %s392, 8
      %s1882 = sshrl.u32 %s1881, 7
      %p1883 = scmp.lt.s32.totalorder 0, %s1882
      %s1884 = scalar_select %p1883, 0, %s1882
      %s1885 = sand.u32 %s1881, 127
      %s1886 = sadd.s32 %s1884, %s1879
      %s1887 = smul.addr %s1876, 3
      %s1888 = sadd.s32 %s1886, %s1887
      %s1889 = smul.addr %s1875, 12
      %s1890 = sadd.s32 %s1888, %s1889
      %s1891 = smul.addr %s1890, 8
      %s1892 = scalar_lea.vmem %s0, %s1891
      %s1894 = scalar_lea.vmem %s1892, %s1880
      %v1895 = vld [vmem:[%s1894] ss:$0 sm:$0xff]
      %v1896 = vlaneseq
      %v1897 = vshrl.u32 %v1896, 7
      %v1898 = vstv %s1885
      %v1899 = vadd.s32 %v1897, %v1898
      %1900 = vset.pattern.permute.xlu0 %v1899
      %1901 = vperm.xlu0 %1900, %v1895
      %v1902 = vpop.permute.xlu0 %1901
      %s1903 = scalar_lea.vmem %s383, 1448
      %1904 = vst [vmem:[%s1903] sm:$0xff] %v1902
      %s1905 = sadd.s32 2, %s349
      %s1906 = sshrl.u32 %s390, 3
      %p1907 = scmp.lt.s32.totalorder 2, %s1906
      %s1908 = scalar_select %p1907, 2, %s1906
      %s1909 = sand.u32 %s390, 7
      %s1910 = sadd.s32 %s392, 8
      %s1911 = sshrl.u32 %s1910, 7
      %p1912 = scmp.lt.s32.totalorder 0, %s1911
      %s1913 = scalar_select %p1912, 0, %s1911
      %s1914 = sand.u32 %s1910, 127
      %s1915 = sadd.s32 %s1913, %s1908
      %s1916 = smul.addr %s1905, 3
      %s1917 = sadd.s32 %s1915, %s1916
      %s1918 = smul.addr %s347, 12
      %s1919 = sadd.s32 %s1917, %s1918
      %s1920 = smul.addr %s1919, 8
      %s1921 = scalar_lea.vmem %s0, %s1920
      %s1923 = scalar_lea.vmem %s1921, %s1909
      %v1924 = vld [vmem:[%s1923] ss:$0 sm:$0xff]
      %v1925 = vlaneseq
      %v1926 = vshrl.u32 %v1925, 7
      %v1927 = vstv %s1914
      %v1928 = vadd.s32 %v1926, %v1927
      %1929 = vset.pattern.permute.xlu0 %v1928
      %1930 = vperm.xlu0 %1929, %v1924
      %v1931 = vpop.permute.xlu0 %1930
      %s1932 = scalar_lea.vmem %s383, 584
      %1933 = vst [vmem:[%s1932] sm:$0xff] %v1931
      %s1934 = sadd.s32 1, %s347
      %s1935 = sadd.s32 2, %s349
      %s1936 = sshrl.u32 %s390, 3
      %p1937 = scmp.lt.s32.totalorder 2, %s1936
      %s1938 = scalar_select %p1937, 2, %s1936
      %s1939 = sand.u32 %s390, 7
      %s1940 = sadd.s32 %s392, 8
      %s1941 = sshrl.u32 %s1940, 7
      %p1942 = scmp.lt.s32.totalorder 0, %s1941
      %s1943 = scalar_select %p1942, 0, %s1941
      %s1944 = sand.u32 %s1940, 127
      %s1945 = sadd.s32 %s1943, %s1938
      %s1946 = smul.addr %s1935, 3
      %s1947 = sadd.s32 %s1945, %s1946
      %s1948 = smul.addr %s1934, 12
      %s1949 = sadd.s32 %s1947, %s1948
      %s1950 = smul.addr %s1949, 8
      %s1951 = scalar_lea.vmem %s0, %s1950
      %s1953 = scalar_lea.vmem %s1951, %s1939
      %v1954 = vld [vmem:[%s1953] ss:$0 sm:$0xff]
      %v1955 = vlaneseq
      %v1956 = vshrl.u32 %v1955, 7
      %v1957 = vstv %s1944
      %v1958 = vadd.s32 %v1956, %v1957
      %1959 = vset.pattern.permute.xlu0 %v1958
      %1960 = vperm.xlu0 %1959, %v1954
      %v1961 = vpop.permute.xlu0 %1960
      %s1962 = scalar_lea.vmem %s383, 1736
      %1963 = vst [vmem:[%s1962] sm:$0xff] %v1961
      %s1964 = sadd.s32 3, %s349
      %s1965 = sshrl.u32 %s390, 3
      %p1966 = scmp.lt.s32.totalorder 2, %s1965
      %s1967 = scalar_select %p1966, 2, %s1965
      %s1968 = sand.u32 %s390, 7
      %s1969 = sadd.s32 %s392, 8
      %s1970 = sshrl.u32 %s1969, 7
      %p1971 = scmp.lt.s32.totalorder 0, %s1970
      %s1972 = scalar_select %p1971, 0, %s1970
      %s1973 = sand.u32 %s1969, 127
      %s1974 = sadd.s32 %s1972, %s1967
      %s1975 = smul.addr %s1964, 3
      %s1976 = sadd.s32 %s1974, %s1975
      %s1977 = smul.addr %s347, 12
      %s1978 = sadd.s32 %s1976, %s1977
      %s1979 = smul.addr %s1978, 8
      %s1980 = scalar_lea.vmem %s0, %s1979
      %s1982 = scalar_lea.vmem %s1980, %s1968
      %v1983 = vld [vmem:[%s1982] ss:$0 sm:$0xff]
      %v1984 = vlaneseq
      %v1985 = vshrl.u32 %v1984, 7
      %v1986 = vstv %s1973
      %v1987 = vadd.s32 %v1985, %v1986
      %1988 = vset.pattern.permute.xlu0 %v1987
      %1989 = vperm.xlu0 %1988, %v1983
      %v1990 = vpop.permute.xlu0 %1989
      %s1991 = scalar_lea.vmem %s383, 872
      %1992 = vst [vmem:[%s1991] sm:$0xff] %v1990
      %s1993 = sadd.s32 1, %s347
      %s1994 = sadd.s32 3, %s349
      %s1995 = sshrl.u32 %s390, 3
      %p1996 = scmp.lt.s32.totalorder 2, %s1995
      %s1997 = scalar_select %p1996, 2, %s1995
      %s1998 = sand.u32 %s390, 7
      %s1999 = sadd.s32 %s392, 8
      %s2000 = sshrl.u32 %s1999, 7
      %p2001 = scmp.lt.s32.totalorder 0, %s2000
      %s2002 = scalar_select %p2001, 0, %s2000
      %s2003 = sand.u32 %s1999, 127
      %s2004 = sadd.s32 %s2002, %s1997
      %s2005 = smul.addr %s1994, 3
      %s2006 = sadd.s32 %s2004, %s2005
      %s2007 = smul.addr %s1993, 12
      %s2008 = sadd.s32 %s2006, %s2007
      %s2009 = smul.addr %s2008, 8
      %s2010 = scalar_lea.vmem %s0, %s2009
      %s2012 = scalar_lea.vmem %s2010, %s1998
      %v2013 = vld [vmem:[%s2012] ss:$0 sm:$0xff]
      %v2014 = vlaneseq
      %v2015 = vshrl.u32 %v2014, 7
      %v2016 = vstv %s2003
      %v2017 = vadd.s32 %v2015, %v2016
      %2018 = vset.pattern.permute.xlu0 %v2017
      %2019 = vperm.xlu0 %2018, %v2013
      %v2020 = vpop.permute.xlu0 %2019
      %s2021 = scalar_lea.vmem %s383, 2024
      %2022 = vst [vmem:[%s2021] sm:$0xff] %v2020
      %s2023 = sadd.s32 %s390, 1
      %s2024 = sshrl.u32 %s2023, 3
      %p2025 = scmp.lt.s32.totalorder 2, %s2024
      %s2026 = scalar_select %p2025, 2, %s2024
      %s2027 = sand.u32 %s2023, 7
      %s2028 = sadd.s32 %s392, 8
      %s2029 = sshrl.u32 %s2028, 7
      %p2030 = scmp.lt.s32.totalorder 0, %s2029
      %s2031 = scalar_select %p2030, 0, %s2029
      %s2032 = sand.u32 %s2028, 127
      %s2033 = sadd.s32 %s2031, %s2026
      %s2034 = smul.addr %s349, 3
      %s2035 = sadd.s32 %s2033, %s2034
      %s2036 = smul.addr %s347, 12
      %s2037 = sadd.s32 %s2035, %s2036
      %s2038 = smul.addr %s2037, 8
      %s2039 = scalar_lea.vmem %s0, %s2038
      %s2041 = scalar_lea.vmem %s2039, %s2027
      %v2042 = vld [vmem:[%s2041] ss:$0 sm:$0xff]
      %v2043 = vlaneseq
      %v2044 = vshrl.u32 %v2043, 7
      %v2045 = vstv %s2032
      %v2046 = vadd.s32 %v2044, %v2045
      %2047 = vset.pattern.permute.xlu0 %v2046
      %2048 = vperm.xlu0 %2047, %v2042
      %v2049 = vpop.permute.xlu0 %2048
      %s2050 = scalar_lea.vmem %s383, 24
      %2051 = vst [vmem:[%s2050] sm:$0xff] %v2049
      %s2052 = sadd.s32 1, %s347
      %s2053 = sadd.s32 %s390, 1
      %s2054 = sshrl.u32 %s2053, 3
      %p2055 = scmp.lt.s32.totalorder 2, %s2054
      %s2056 = scalar_select %p2055, 2, %s2054
      %s2057 = sand.u32 %s2053, 7
      %s2058 = sadd.s32 %s392, 8
      %s2059 = sshrl.u32 %s2058, 7
      %p2060 = scmp.lt.s32.totalorder 0, %s2059
      %s2061 = scalar_select %p2060, 0, %s2059
      %s2062 = sand.u32 %s2058, 127
      %s2063 = sadd.s32 %s2061, %s2056
      %s2064 = smul.addr %s349, 3
      %s2065 = sadd.s32 %s2063, %s2064
      %s2066 = smul.addr %s2052, 12
      %s2067 = sadd.s32 %s2065, %s2066
      %s2068 = smul.addr %s2067, 8
      %s2069 = scalar_lea.vmem %s0, %s2068
      %s2071 = scalar_lea.vmem %s2069, %s2057
      %v2072 = vld [vmem:[%s2071] ss:$0 sm:$0xff]
      %v2073 = vlaneseq
      %v2074 = vshrl.u32 %v2073, 7
      %v2075 = vstv %s2062
      %v2076 = vadd.s32 %v2074, %v2075
      %2077 = vset.pattern.permute.xlu0 %v2076
      %2078 = vperm.xlu0 %2077, %v2072
      %v2079 = vpop.permute.xlu0 %2078
      %s2080 = scalar_lea.vmem %s383, 1176
      %2081 = vst [vmem:[%s2080] sm:$0xff] %v2079
      %s2082 = sadd.s32 1, %s349
      %s2083 = sadd.s32 %s390, 1
      %s2084 = sshrl.u32 %s2083, 3
      %p2085 = scmp.lt.s32.totalorder 2, %s2084
      %s2086 = scalar_select %p2085, 2, %s2084
      %s2087 = sand.u32 %s2083, 7
      %s2088 = sadd.s32 %s392, 8
      %s2089 = sshrl.u32 %s2088, 7
      %p2090 = scmp.lt.s32.totalorder 0, %s2089
      %s2091 = scalar_select %p2090, 0, %s2089
      %s2092 = sand.u32 %s2088, 127
      %s2093 = sadd.s32 %s2091, %s2086
      %s2094 = smul.addr %s2082, 3
      %s2095 = sadd.s32 %s2093, %s2094
      %s2096 = smul.addr %s347, 12
      %s2097 = sadd.s32 %s2095, %s2096
      %s2098 = smul.addr %s2097, 8
      %s2099 = scalar_lea.vmem %s0, %s2098
      %s2101 = scalar_lea.vmem %s2099, %s2087
      %v2102 = vld [vmem:[%s2101] ss:$0 sm:$0xff]
      %v2103 = vlaneseq
      %v2104 = vshrl.u32 %v2103, 7
      %v2105 = vstv %s2092
      %v2106 = vadd.s32 %v2104, %v2105
      %2107 = vset.pattern.permute.xlu0 %v2106
      %2108 = vperm.xlu0 %2107, %v2102
      %v2109 = vpop.permute.xlu0 %2108
      %s2110 = scalar_lea.vmem %s383, 312
      %2111 = vst [vmem:[%s2110] sm:$0xff] %v2109
      %s2112 = sadd.s32 1, %s347
      %s2113 = sadd.s32 1, %s349
      %s2114 = sadd.s32 %s390, 1
      %s2115 = sshrl.u32 %s2114, 3
      %p2116 = scmp.lt.s32.totalorder 2, %s2115
      %s2117 = scalar_select %p2116, 2, %s2115
      %s2118 = sand.u32 %s2114, 7
      %s2119 = sadd.s32 %s392, 8
      %s2120 = sshrl.u32 %s2119, 7
      %p2121 = scmp.lt.s32.totalorder 0, %s2120
      %s2122 = scalar_select %p2121, 0, %s2120
      %s2123 = sand.u32 %s2119, 127
      %s2124 = sadd.s32 %s2122, %s2117
      %s2125 = smul.addr %s2113, 3
      %s2126 = sadd.s32 %s2124, %s2125
      %s2127 = smul.addr %s2112, 12
      %s2128 = sadd.s32 %s2126, %s2127
      %s2129 = smul.addr %s2128, 8
      %s2130 = scalar_lea.vmem %s0, %s2129
      %s2132 = scalar_lea.vmem %s2130, %s2118
      %v2133 = vld [vmem:[%s2132] ss:$0 sm:$0xff]
      %v2134 = vlaneseq
      %v2135 = vshrl.u32 %v2134, 7
      %v2136 = vstv %s2123
      %v2137 = vadd.s32 %v2135, %v2136
      %2138 = vset.pattern.permute.xlu0 %v2137
      %2139 = vperm.xlu0 %2138, %v2133
      %v2140 = vpop.permute.xlu0 %2139
      %s2141 = scalar_lea.vmem %s383, 1464
      %2142 = vst [vmem:[%s2141] sm:$0xff] %v2140
      %s2143 = sadd.s32 2, %s349
      %s2144 = sadd.s32 %s390, 1
      %s2145 = sshrl.u32 %s2144, 3
      %p2146 = scmp.lt.s32.totalorder 2, %s2145
      %s2147 = scalar_select %p2146, 2, %s2145
      %s2148 = sand.u32 %s2144, 7
      %s2149 = sadd.s32 %s392, 8
      %s2150 = sshrl.u32 %s2149, 7
      %p2151 = scmp.lt.s32.totalorder 0, %s2150
      %s2152 = scalar_select %p2151, 0, %s2150
      %s2153 = sand.u32 %s2149, 127
      %s2154 = sadd.s32 %s2152, %s2147
      %s2155 = smul.addr %s2143, 3
      %s2156 = sadd.s32 %s2154, %s2155
      %s2157 = smul.addr %s347, 12
      %s2158 = sadd.s32 %s2156, %s2157
      %s2159 = smul.addr %s2158, 8
      %s2160 = scalar_lea.vmem %s0, %s2159
      %s2162 = scalar_lea.vmem %s2160, %s2148
      %v2163 = vld [vmem:[%s2162] ss:$0 sm:$0xff]
      %v2164 = vlaneseq
      %v2165 = vshrl.u32 %v2164, 7
      %v2166 = vstv %s2153
      %v2167 = vadd.s32 %v2165, %v2166
      %2168 = vset.pattern.permute.xlu0 %v2167
      %2169 = vperm.xlu0 %2168, %v2163
      %v2170 = vpop.permute.xlu0 %2169
      %s2171 = scalar_lea.vmem %s383, 600
      %2172 = vst [vmem:[%s2171] sm:$0xff] %v2170
      %s2173 = sadd.s32 1, %s347
      %s2174 = sadd.s32 2, %s349
      %s2175 = sadd.s32 %s390, 1
      %s2176 = sshrl.u32 %s2175, 3
      %p2177 = scmp.lt.s32.totalorder 2, %s2176
      %s2178 = scalar_select %p2177, 2, %s2176
      %s2179 = sand.u32 %s2175, 7
      %s2180 = sadd.s32 %s392, 8
      %s2181 = sshrl.u32 %s2180, 7
      %p2182 = scmp.lt.s32.totalorder 0, %s2181
      %s2183 = scalar_select %p2182, 0, %s2181
      %s2184 = sand.u32 %s2180, 127
      %s2185 = sadd.s32 %s2183, %s2178
      %s2186 = smul.addr %s2174, 3
      %s2187 = sadd.s32 %s2185, %s2186
      %s2188 = smul.addr %s2173, 12
      %s2189 = sadd.s32 %s2187, %s2188
      %s2190 = smul.addr %s2189, 8
      %s2191 = scalar_lea.vmem %s0, %s2190
      %s2193 = scalar_lea.vmem %s2191, %s2179
      %v2194 = vld [vmem:[%s2193] ss:$0 sm:$0xff]
      %v2195 = vlaneseq
      %v2196 = vshrl.u32 %v2195, 7
      %v2197 = vstv %s2184
      %v2198 = vadd.s32 %v2196, %v2197
      %2199 = vset.pattern.permute.xlu0 %v2198
      %2200 = vperm.xlu0 %2199, %v2194
      %v2201 = vpop.permute.xlu0 %2200
      %s2202 = scalar_lea.vmem %s383, 1752
      %2203 = vst [vmem:[%s2202] sm:$0xff] %v2201
      %s2204 = sadd.s32 3, %s349
      %s2205 = sadd.s32 %s390, 1
      %s2206 = sshrl.u32 %s2205, 3
      %p2207 = scmp.lt.s32.totalorder 2, %s2206
      %s2208 = scalar_select %p2207, 2, %s2206
      %s2209 = sand.u32 %s2205, 7
      %s2210 = sadd.s32 %s392, 8
      %s2211 = sshrl.u32 %s2210, 7
      %p2212 = scmp.lt.s32.totalorder 0, %s2211
      %s2213 = scalar_select %p2212, 0, %s2211
      %s2214 = sand.u32 %s2210, 127
      %s2215 = sadd.s32 %s2213, %s2208
      %s2216 = smul.addr %s2204, 3
      %s2217 = sadd.s32 %s2215, %s2216
      %s2218 = smul.addr %s347, 12
      %s2219 = sadd.s32 %s2217, %s2218
      %s2220 = smul.addr %s2219, 8
      %s2221 = scalar_lea.vmem %s0, %s2220
      %s2223 = scalar_lea.vmem %s2221, %s2209
      %v2224 = vld [vmem:[%s2223] ss:$0 sm:$0xff]
      %v2225 = vlaneseq
      %v2226 = vshrl.u32 %v2225, 7
      %v2227 = vstv %s2214
      %v2228 = vadd.s32 %v2226, %v2227
      %2229 = vset.pattern.permute.xlu0 %v2228
      %2230 = vperm.xlu0 %2229, %v2224
      %v2231 = vpop.permute.xlu0 %2230
      %s2232 = scalar_lea.vmem %s383, 888
      %2233 = vst [vmem:[%s2232] sm:$0xff] %v2231
      %s2234 = sadd.s32 1, %s347
      %s2235 = sadd.s32 3, %s349
      %s2236 = sadd.s32 %s390, 1
      %s2237 = sshrl.u32 %s2236, 3
      %p2238 = scmp.lt.s32.totalorder 2, %s2237
      %s2239 = scalar_select %p2238, 2, %s2237
      %s2240 = sand.u32 %s2236, 7
      %s2241 = sadd.s32 %s392, 8
      %s2242 = sshrl.u32 %s2241, 7
      %p2243 = scmp.lt.s32.totalorder 0, %s2242
      %s2244 = scalar_select %p2243, 0, %s2242
      %s2245 = sand.u32 %s2241, 127
      %s2246 = sadd.s32 %s2244, %s2239
      %s2247 = smul.addr %s2235, 3
      %s2248 = sadd.s32 %s2246, %s2247
      %s2249 = smul.addr %s2234, 12
      %s2250 = sadd.s32 %s2248, %s2249
      %s2251 = smul.addr %s2250, 8
      %s2252 = scalar_lea.vmem %s0, %s2251
      %s2254 = scalar_lea.vmem %s2252, %s2240
      %v2255 = vld [vmem:[%s2254] ss:$0 sm:$0xff]
      %v2256 = vlaneseq
      %v2257 = vshrl.u32 %v2256, 7
      %v2258 = vstv %s2245
      %v2259 = vadd.s32 %v2257, %v2258
      %2260 = vset.pattern.permute.xlu0 %v2259
      %2261 = vperm.xlu0 %2260, %v2255
      %v2262 = vpop.permute.xlu0 %2261
      %s2263 = scalar_lea.vmem %s383, 2040
      %2264 = vst [vmem:[%s2263] sm:$0xff] %v2262
      %s2265 = sadd.s32 %s390, 2
      %s2266 = sshrl.u32 %s2265, 3
      %p2267 = scmp.lt.s32.totalorder 2, %s2266
      %s2268 = scalar_select %p2267, 2, %s2266
      %s2269 = sand.u32 %s2265, 7
      %s2270 = sadd.s32 %s392, 8
      %s2271 = sshrl.u32 %s2270, 7
      %p2272 = scmp.lt.s32.totalorder 0, %s2271
      %s2273 = scalar_select %p2272, 0, %s2271
      %s2274 = sand.u32 %s2270, 127
      %s2275 = sadd.s32 %s2273, %s2268
      %s2276 = smul.addr %s349, 3
      %s2277 = sadd.s32 %s2275, %s2276
      %s2278 = smul.addr %s347, 12
      %s2279 = sadd.s32 %s2277, %s2278
      %s2280 = smul.addr %s2279, 8
      %s2281 = scalar_lea.vmem %s0, %s2280
      %s2283 = scalar_lea.vmem %s2281, %s2269
      %v2284 = vld [vmem:[%s2283] ss:$0 sm:$0xff]
      %v2285 = vlaneseq
      %v2286 = vshrl.u32 %v2285, 7
      %v2287 = vstv %s2274
      %v2288 = vadd.s32 %v2286, %v2287
      %2289 = vset.pattern.permute.xlu0 %v2288
      %2290 = vperm.xlu0 %2289, %v2284
      %v2291 = vpop.permute.xlu0 %2290
      %s2292 = scalar_lea.vmem %s383, 40
      %2293 = vst [vmem:[%s2292] sm:$0xff] %v2291
      %s2294 = sadd.s32 1, %s347
      %s2295 = sadd.s32 %s390, 2
      %s2296 = sshrl.u32 %s2295, 3
      %p2297 = scmp.lt.s32.totalorder 2, %s2296
      %s2298 = scalar_select %p2297, 2, %s2296
      %s2299 = sand.u32 %s2295, 7
      %s2300 = sadd.s32 %s392, 8
      %s2301 = sshrl.u32 %s2300, 7
      %p2302 = scmp.lt.s32.totalorder 0, %s2301
      %s2303 = scalar_select %p2302, 0, %s2301
      %s2304 = sand.u32 %s2300, 127
      %s2305 = sadd.s32 %s2303, %s2298
      %s2306 = smul.addr %s349, 3
      %s2307 = sadd.s32 %s2305, %s2306
      %s2308 = smul.addr %s2294, 12
      %s2309 = sadd.s32 %s2307, %s2308
      %s2310 = smul.addr %s2309, 8
      %s2311 = scalar_lea.vmem %s0, %s2310
      %s2313 = scalar_lea.vmem %s2311, %s2299
      %v2314 = vld [vmem:[%s2313] ss:$0 sm:$0xff]
      %v2315 = vlaneseq
      %v2316 = vshrl.u32 %v2315, 7
      %v2317 = vstv %s2304
      %v2318 = vadd.s32 %v2316, %v2317
      %2319 = vset.pattern.permute.xlu0 %v2318
      %2320 = vperm.xlu0 %2319, %v2314
      %v2321 = vpop.permute.xlu0 %2320
      %s2322 = scalar_lea.vmem %s383, 1192
      %2323 = vst [vmem:[%s2322] sm:$0xff] %v2321
      %s2324 = sadd.s32 1, %s349
      %s2325 = sadd.s32 %s390, 2
      %s2326 = sshrl.u32 %s2325, 3
      %p2327 = scmp.lt.s32.totalorder 2, %s2326
      %s2328 = scalar_select %p2327, 2, %s2326
      %s2329 = sand.u32 %s2325, 7
      %s2330 = sadd.s32 %s392, 8
      %s2331 = sshrl.u32 %s2330, 7
      %p2332 = scmp.lt.s32.totalorder 0, %s2331
      %s2333 = scalar_select %p2332, 0, %s2331
      %s2334 = sand.u32 %s2330, 127
      %s2335 = sadd.s32 %s2333, %s2328
      %s2336 = smul.addr %s2324, 3
      %s2337 = sadd.s32 %s2335, %s2336
      %s2338 = smul.addr %s347, 12
      %s2339 = sadd.s32 %s2337, %s2338
      %s2340 = smul.addr %s2339, 8
      %s2341 = scalar_lea.vmem %s0, %s2340
      %s2343 = scalar_lea.vmem %s2341, %s2329
      %v2344 = vld [vmem:[%s2343] ss:$0 sm:$0xff]
      %v2345 = vlaneseq
      %v2346 = vshrl.u32 %v2345, 7
      %v2347 = vstv %s2334
      %v2348 = vadd.s32 %v2346, %v2347
      %2349 = vset.pattern.permute.xlu0 %v2348
      %2350 = vperm.xlu0 %2349, %v2344
      %v2351 = vpop.permute.xlu0 %2350
      %s2352 = scalar_lea.vmem %s383, 328
      %2353 = vst [vmem:[%s2352] sm:$0xff] %v2351
      %s2354 = sadd.s32 1, %s347
      %s2355 = sadd.s32 1, %s349
      %s2356 = sadd.s32 %s390, 2
      %s2357 = sshrl.u32 %s2356, 3
      %p2358 = scmp.lt.s32.totalorder 2, %s2357
      %s2359 = scalar_select %p2358, 2, %s2357
      %s2360 = sand.u32 %s2356, 7
      %s2361 = sadd.s32 %s392, 8
      %s2362 = sshrl.u32 %s2361, 7
      %p2363 = scmp.lt.s32.totalorder 0, %s2362
      %s2364 = scalar_select %p2363, 0, %s2362
      %s2365 = sand.u32 %s2361, 127
      %s2366 = sadd.s32 %s2364, %s2359
      %s2367 = smul.addr %s2355, 3
      %s2368 = sadd.s32 %s2366, %s2367
      %s2369 = smul.addr %s2354, 12
      %s2370 = sadd.s32 %s2368, %s2369
      %s2371 = smul.addr %s2370, 8
      %s2372 = scalar_lea.vmem %s0, %s2371
      %s2374 = scalar_lea.vmem %s2372, %s2360
      %v2375 = vld [vmem:[%s2374] ss:$0 sm:$0xff]
      %v2376 = vlaneseq
      %v2377 = vshrl.u32 %v2376, 7
      %v2378 = vstv %s2365
      %v2379 = vadd.s32 %v2377, %v2378
      %2380 = vset.pattern.permute.xlu0 %v2379
      %2381 = vperm.xlu0 %2380, %v2375
      %v2382 = vpop.permute.xlu0 %2381
      %s2383 = scalar_lea.vmem %s383, 1480
      %2384 = vst [vmem:[%s2383] sm:$0xff] %v2382
      %s2385 = sadd.s32 2, %s349
      %s2386 = sadd.s32 %s390, 2
      %s2387 = sshrl.u32 %s2386, 3
      %p2388 = scmp.lt.s32.totalorder 2, %s2387
      %s2389 = scalar_select %p2388, 2, %s2387
      %s2390 = sand.u32 %s2386, 7
      %s2391 = sadd.s32 %s392, 8
      %s2392 = sshrl.u32 %s2391, 7
      %p2393 = scmp.lt.s32.totalorder 0, %s2392
      %s2394 = scalar_select %p2393, 0, %s2392
      %s2395 = sand.u32 %s2391, 127
      %s2396 = sadd.s32 %s2394, %s2389
      %s2397 = smul.addr %s2385, 3
      %s2398 = sadd.s32 %s2396, %s2397
      %s2399 = smul.addr %s347, 12
      %s2400 = sadd.s32 %s2398, %s2399
      %s2401 = smul.addr %s2400, 8
      %s2402 = scalar_lea.vmem %s0, %s2401
      %s2404 = scalar_lea.vmem %s2402, %s2390
      %v2405 = vld [vmem:[%s2404] ss:$0 sm:$0xff]
      %v2406 = vlaneseq
      %v2407 = vshrl.u32 %v2406, 7
      %v2408 = vstv %s2395
      %v2409 = vadd.s32 %v2407, %v2408
      %2410 = vset.pattern.permute.xlu0 %v2409
      %2411 = vperm.xlu0 %2410, %v2405
      %v2412 = vpop.permute.xlu0 %2411
      %s2413 = scalar_lea.vmem %s383, 616
      %2414 = vst [vmem:[%s2413] sm:$0xff] %v2412
      %s2415 = sadd.s32 1, %s347
      %s2416 = sadd.s32 2, %s349
      %s2417 = sadd.s32 %s390, 2
      %s2418 = sshrl.u32 %s2417, 3
      %p2419 = scmp.lt.s32.totalorder 2, %s2418
      %s2420 = scalar_select %p2419, 2, %s2418
      %s2421 = sand.u32 %s2417, 7
      %s2422 = sadd.s32 %s392, 8
      %s2423 = sshrl.u32 %s2422, 7
      %p2424 = scmp.lt.s32.totalorder 0, %s2423
      %s2425 = scalar_select %p2424, 0, %s2423
      %s2426 = sand.u32 %s2422, 127
      %s2427 = sadd.s32 %s2425, %s2420
      %s2428 = smul.addr %s2416, 3
      %s2429 = sadd.s32 %s2427, %s2428
      %s2430 = smul.addr %s2415, 12
      %s2431 = sadd.s32 %s2429, %s2430
      %s2432 = smul.addr %s2431, 8
      %s2433 = scalar_lea.vmem %s0, %s2432
      %s2435 = scalar_lea.vmem %s2433, %s2421
      %v2436 = vld [vmem:[%s2435] ss:$0 sm:$0xff]
      %v2437 = vlaneseq
      %v2438 = vshrl.u32 %v2437, 7
      %v2439 = vstv %s2426
      %v2440 = vadd.s32 %v2438, %v2439
      %2441 = vset.pattern.permute.xlu0 %v2440
      %2442 = vperm.xlu0 %2441, %v2436
      %v2443 = vpop.permute.xlu0 %2442
      %s2444 = scalar_lea.vmem %s383, 1768
      %2445 = vst [vmem:[%s2444] sm:$0xff] %v2443
      %s2446 = sadd.s32 3, %s349
      %s2447 = sadd.s32 %s390, 2
      %s2448 = sshrl.u32 %s2447, 3
      %p2449 = scmp.lt.s32.totalorder 2, %s2448
      %s2450 = scalar_select %p2449, 2, %s2448
      %s2451 = sand.u32 %s2447, 7
      %s2452 = sadd.s32 %s392, 8
      %s2453 = sshrl.u32 %s2452, 7
      %p2454 = scmp.lt.s32.totalorder 0, %s2453
      %s2455 = scalar_select %p2454, 0, %s2453
      %s2456 = sand.u32 %s2452, 127
      %s2457 = sadd.s32 %s2455, %s2450
      %s2458 = smul.addr %s2446, 3
      %s2459 = sadd.s32 %s2457, %s2458
      %s2460 = smul.addr %s347, 12
      %s2461 = sadd.s32 %s2459, %s2460
      %s2462 = smul.addr %s2461, 8
      %s2463 = scalar_lea.vmem %s0, %s2462
      %s2465 = scalar_lea.vmem %s2463, %s2451
      %v2466 = vld [vmem:[%s2465] ss:$0 sm:$0xff]
      %v2467 = vlaneseq
      %v2468 = vshrl.u32 %v2467, 7
      %v2469 = vstv %s2456
      %v2470 = vadd.s32 %v2468, %v2469
      %2471 = vset.pattern.permute.xlu0 %v2470
      %2472 = vperm.xlu0 %2471, %v2466
      %v2473 = vpop.permute.xlu0 %2472
      %s2474 = scalar_lea.vmem %s383, 904
      %2475 = vst [vmem:[%s2474] sm:$0xff] %v2473
      %s2476 = sadd.s32 1, %s347
      %s2477 = sadd.s32 3, %s349
      %s2478 = sadd.s32 %s390, 2
      %s2479 = sshrl.u32 %s2478, 3
      %p2480 = scmp.lt.s32.totalorder 2, %s2479
      %s2481 = scalar_select %p2480, 2, %s2479
      %s2482 = sand.u32 %s2478, 7
      %s2483 = sadd.s32 %s392, 8
      %s2484 = sshrl.u32 %s2483, 7
      %p2485 = scmp.lt.s32.totalorder 0, %s2484
      %s2486 = scalar_select %p2485, 0, %s2484
      %s2487 = sand.u32 %s2483, 127
      %s2488 = sadd.s32 %s2486, %s2481
      %s2489 = smul.addr %s2477, 3
      %s2490 = sadd.s32 %s2488, %s2489
      %s2491 = smul.addr %s2476, 12
      %s2492 = sadd.s32 %s2490, %s2491
      %s2493 = smul.addr %s2492, 8
      %s2494 = scalar_lea.vmem %s0, %s2493
      %s2496 = scalar_lea.vmem %s2494, %s2482
      %v2497 = vld [vmem:[%s2496] ss:$0 sm:$0xff]
      %v2498 = vlaneseq
      %v2499 = vshrl.u32 %v2498, 7
      %v2500 = vstv %s2487
      %v2501 = vadd.s32 %v2499, %v2500
      %2502 = vset.pattern.permute.xlu0 %v2501
      %2503 = vperm.xlu0 %2502, %v2497
      %v2504 = vpop.permute.xlu0 %2503
      %s2505 = scalar_lea.vmem %s383, 2056
      %2506 = vst [vmem:[%s2505] sm:$0xff] %v2504
      %s2507 = sadd.s32 %s390, 3
      %s2508 = sshrl.u32 %s2507, 3
      %p2509 = scmp.lt.s32.totalorder 2, %s2508
      %s2510 = scalar_select %p2509, 2, %s2508
      %s2511 = sand.u32 %s2507, 7
      %s2512 = sadd.s32 %s392, 8
      %s2513 = sshrl.u32 %s2512, 7
      %p2514 = scmp.lt.s32.totalorder 0, %s2513
      %s2515 = scalar_select %p2514, 0, %s2513
      %s2516 = sand.u32 %s2512, 127
      %s2517 = sadd.s32 %s2515, %s2510
      %s2518 = smul.addr %s349, 3
      %s2519 = sadd.s32 %s2517, %s2518
      %s2520 = smul.addr %s347, 12
      %s2521 = sadd.s32 %s2519, %s2520
      %s2522 = smul.addr %s2521, 8
      %s2523 = scalar_lea.vmem %s0, %s2522
      %s2525 = scalar_lea.vmem %s2523, %s2511
      %v2526 = vld [vmem:[%s2525] ss:$0 sm:$0xff]
      %v2527 = vlaneseq
      %v2528 = vshrl.u32 %v2527, 7
      %v2529 = vstv %s2516
      %v2530 = vadd.s32 %v2528, %v2529
      %2531 = vset.pattern.permute.xlu0 %v2530
      %2532 = vperm.xlu0 %2531, %v2526
      %v2533 = vpop.permute.xlu0 %2532
      %s2534 = scalar_lea.vmem %s383, 56
      %2535 = vst [vmem:[%s2534] sm:$0xff] %v2533
      %s2536 = sadd.s32 1, %s347
      %s2537 = sadd.s32 %s390, 3
      %s2538 = sshrl.u32 %s2537, 3
      %p2539 = scmp.lt.s32.totalorder 2, %s2538
      %s2540 = scalar_select %p2539, 2, %s2538
      %s2541 = sand.u32 %s2537, 7
      %s2542 = sadd.s32 %s392, 8
      %s2543 = sshrl.u32 %s2542, 7
      %p2544 = scmp.lt.s32.totalorder 0, %s2543
      %s2545 = scalar_select %p2544, 0, %s2543
      %s2546 = sand.u32 %s2542, 127
      %s2547 = sadd.s32 %s2545, %s2540
      %s2548 = smul.addr %s349, 3
      %s2549 = sadd.s32 %s2547, %s2548
      %s2550 = smul.addr %s2536, 12
      %s2551 = sadd.s32 %s2549, %s2550
      %s2552 = smul.addr %s2551, 8
      %s2553 = scalar_lea.vmem %s0, %s2552
      %s2555 = scalar_lea.vmem %s2553, %s2541
      %v2556 = vld [vmem:[%s2555] ss:$0 sm:$0xff]
      %v2557 = vlaneseq
      %v2558 = vshrl.u32 %v2557, 7
      %v2559 = vstv %s2546
      %v2560 = vadd.s32 %v2558, %v2559
      %2561 = vset.pattern.permute.xlu0 %v2560
      %2562 = vperm.xlu0 %2561, %v2556
      %v2563 = vpop.permute.xlu0 %2562
      %s2564 = scalar_lea.vmem %s383, 1208
      %2565 = vst [vmem:[%s2564] sm:$0xff] %v2563
      %s2566 = sadd.s32 1, %s349
      %s2567 = sadd.s32 %s390, 3
      %s2568 = sshrl.u32 %s2567, 3
      %p2569 = scmp.lt.s32.totalorder 2, %s2568
      %s2570 = scalar_select %p2569, 2, %s2568
      %s2571 = sand.u32 %s2567, 7
      %s2572 = sadd.s32 %s392, 8
      %s2573 = sshrl.u32 %s2572, 7
      %p2574 = scmp.lt.s32.totalorder 0, %s2573
      %s2575 = scalar_select %p2574, 0, %s2573
      %s2576 = sand.u32 %s2572, 127
      %s2577 = sadd.s32 %s2575, %s2570
      %s2578 = smul.addr %s2566, 3
      %s2579 = sadd.s32 %s2577, %s2578
      %s2580 = smul.addr %s347, 12
      %s2581 = sadd.s32 %s2579, %s2580
      %s2582 = smul.addr %s2581, 8
      %s2583 = scalar_lea.vmem %s0, %s2582
      %s2585 = scalar_lea.vmem %s2583, %s2571
      %v2586 = vld [vmem:[%s2585] ss:$0 sm:$0xff]
      %v2587 = vlaneseq
      %v2588 = vshrl.u32 %v2587, 7
      %v2589 = vstv %s2576
      %v2590 = vadd.s32 %v2588, %v2589
      %2591 = vset.pattern.permute.xlu0 %v2590
      %2592 = vperm.xlu0 %2591, %v2586
      %v2593 = vpop.permute.xlu0 %2592
      %s2594 = scalar_lea.vmem %s383, 344
      %2595 = vst [vmem:[%s2594] sm:$0xff] %v2593
      %s2596 = sadd.s32 1, %s347
      %s2597 = sadd.s32 1, %s349
      %s2598 = sadd.s32 %s390, 3
      %s2599 = sshrl.u32 %s2598, 3
      %p2600 = scmp.lt.s32.totalorder 2, %s2599
      %s2601 = scalar_select %p2600, 2, %s2599
      %s2602 = sand.u32 %s2598, 7
      %s2603 = sadd.s32 %s392, 8
      %s2604 = sshrl.u32 %s2603, 7
      %p2605 = scmp.lt.s32.totalorder 0, %s2604
      %s2606 = scalar_select %p2605, 0, %s2604
      %s2607 = sand.u32 %s2603, 127
      %s2608 = sadd.s32 %s2606, %s2601
      %s2609 = smul.addr %s2597, 3
      %s2610 = sadd.s32 %s2608, %s2609
      %s2611 = smul.addr %s2596, 12
      %s2612 = sadd.s32 %s2610, %s2611
      %s2613 = smul.addr %s2612, 8
      %s2614 = scalar_lea.vmem %s0, %s2613
      %s2616 = scalar_lea.vmem %s2614, %s2602
      %v2617 = vld [vmem:[%s2616] ss:$0 sm:$0xff]
      %v2618 = vlaneseq
      %v2619 = vshrl.u32 %v2618, 7
      %v2620 = vstv %s2607
      %v2621 = vadd.s32 %v2619, %v2620
      %2622 = vset.pattern.permute.xlu0 %v2621
      %2623 = vperm.xlu0 %2622, %v2617
      %v2624 = vpop.permute.xlu0 %2623
      %s2625 = scalar_lea.vmem %s383, 1496
      %2626 = vst [vmem:[%s2625] sm:$0xff] %v2624
      %s2627 = sadd.s32 2, %s349
      %s2628 = sadd.s32 %s390, 3
      %s2629 = sshrl.u32 %s2628, 3
      %p2630 = scmp.lt.s32.totalorder 2, %s2629
      %s2631 = scalar_select %p2630, 2, %s2629
      %s2632 = sand.u32 %s2628, 7
      %s2633 = sadd.s32 %s392, 8
      %s2634 = sshrl.u32 %s2633, 7
      %p2635 = scmp.lt.s32.totalorder 0, %s2634
      %s2636 = scalar_select %p2635, 0, %s2634
      %s2637 = sand.u32 %s2633, 127
      %s2638 = sadd.s32 %s2636, %s2631
      %s2639 = smul.addr %s2627, 3
      %s2640 = sadd.s32 %s2638, %s2639
      %s2641 = smul.addr %s347, 12
      %s2642 = sadd.s32 %s2640, %s2641
      %s2643 = smul.addr %s2642, 8
      %s2644 = scalar_lea.vmem %s0, %s2643
      %s2646 = scalar_lea.vmem %s2644, %s2632
      %v2647 = vld [vmem:[%s2646] ss:$0 sm:$0xff]
      %v2648 = vlaneseq
      %v2649 = vshrl.u32 %v2648, 7
      %v2650 = vstv %s2637
      %v2651 = vadd.s32 %v2649, %v2650
      %2652 = vset.pattern.permute.xlu0 %v2651
      %2653 = vperm.xlu0 %2652, %v2647
      %v2654 = vpop.permute.xlu0 %2653
      %s2655 = scalar_lea.vmem %s383, 632
      %2656 = vst [vmem:[%s2655] sm:$0xff] %v2654
      %s2657 = sadd.s32 1, %s347
      %s2658 = sadd.s32 2, %s349
      %s2659 = sadd.s32 %s390, 3
      %s2660 = sshrl.u32 %s2659, 3
      %p2661 = scmp.lt.s32.totalorder 2, %s2660
      %s2662 = scalar_select %p2661, 2, %s2660
      %s2663 = sand.u32 %s2659, 7
      %s2664 = sadd.s32 %s392, 8
      %s2665 = sshrl.u32 %s2664, 7
      %p2666 = scmp.lt.s32.totalorder 0, %s2665
      %s2667 = scalar_select %p2666, 0, %s2665
      %s2668 = sand.u32 %s2664, 127
      %s2669 = sadd.s32 %s2667, %s2662
      %s2670 = smul.addr %s2658, 3
      %s2671 = sadd.s32 %s2669, %s2670
      %s2672 = smul.addr %s2657, 12
      %s2673 = sadd.s32 %s2671, %s2672
      %s2674 = smul.addr %s2673, 8
      %s2675 = scalar_lea.vmem %s0, %s2674
      %s2677 = scalar_lea.vmem %s2675, %s2663
      %v2678 = vld [vmem:[%s2677] ss:$0 sm:$0xff]
      %v2679 = vlaneseq
      %v2680 = vshrl.u32 %v2679, 7
      %v2681 = vstv %s2668
      %v2682 = vadd.s32 %v2680, %v2681
      %2683 = vset.pattern.permute.xlu0 %v2682
      %2684 = vperm.xlu0 %2683, %v2678
      %v2685 = vpop.permute.xlu0 %2684
      %s2686 = scalar_lea.vmem %s383, 1784
      %2687 = vst [vmem:[%s2686] sm:$0xff] %v2685
      %s2688 = sadd.s32 3, %s349
      %s2689 = sadd.s32 %s390, 3
      %s2690 = sshrl.u32 %s2689, 3
      %p2691 = scmp.lt.s32.totalorder 2, %s2690
      %s2692 = scalar_select %p2691, 2, %s2690
      %s2693 = sand.u32 %s2689, 7
      %s2694 = sadd.s32 %s392, 8
      %s2695 = sshrl.u32 %s2694, 7
      %p2696 = scmp.lt.s32.totalorder 0, %s2695
      %s2697 = scalar_select %p2696, 0, %s2695
      %s2698 = sand.u32 %s2694, 127
      %s2699 = sadd.s32 %s2697, %s2692
      %s2700 = smul.addr %s2688, 3
      %s2701 = sadd.s32 %s2699, %s2700
      %s2702 = smul.addr %s347, 12
      %s2703 = sadd.s32 %s2701, %s2702
      %s2704 = smul.addr %s2703, 8
      %s2705 = scalar_lea.vmem %s0, %s2704
      %s2707 = scalar_lea.vmem %s2705, %s2693
      %v2708 = vld [vmem:[%s2707] ss:$0 sm:$0xff]
      %v2709 = vlaneseq
      %v2710 = vshrl.u32 %v2709, 7
      %v2711 = vstv %s2698
      %v2712 = vadd.s32 %v2710, %v2711
      %2713 = vset.pattern.permute.xlu0 %v2712
      %2714 = vperm.xlu0 %2713, %v2708
      %v2715 = vpop.permute.xlu0 %2714
      %s2716 = scalar_lea.vmem %s383, 920
      %2717 = vst [vmem:[%s2716] sm:$0xff] %v2715
      %s2718 = sadd.s32 1, %s347
      %s2719 = sadd.s32 3, %s349
      %s2720 = sadd.s32 %s390, 3
      %s2721 = sshrl.u32 %s2720, 3
      %p2722 = scmp.lt.s32.totalorder 2, %s2721
      %s2723 = scalar_select %p2722, 2, %s2721
      %s2724 = sand.u32 %s2720, 7
      %s2725 = sadd.s32 %s392, 8
      %s2726 = sshrl.u32 %s2725, 7
      %p2727 = scmp.lt.s32.totalorder 0, %s2726
      %s2728 = scalar_select %p2727, 0, %s2726
      %s2729 = sand.u32 %s2725, 127
      %s2730 = sadd.s32 %s2728, %s2723
      %s2731 = smul.addr %s2719, 3
      %s2732 = sadd.s32 %s2730, %s2731
      %s2733 = smul.addr %s2718, 12
      %s2734 = sadd.s32 %s2732, %s2733
      %s2735 = smul.addr %s2734, 8
      %s2736 = scalar_lea.vmem %s0, %s2735
      %s2738 = scalar_lea.vmem %s2736, %s2724
      %v2739 = vld [vmem:[%s2738] ss:$0 sm:$0xff]
      %v2740 = vlaneseq
      %v2741 = vshrl.u32 %v2740, 7
      %v2742 = vstv %s2729
      %v2743 = vadd.s32 %v2741, %v2742
      %2744 = vset.pattern.permute.xlu0 %v2743
      %2745 = vperm.xlu0 %2744, %v2739
      %v2746 = vpop.permute.xlu0 %2745
      %s2747 = scalar_lea.vmem %s383, 2072
      %2748 = vst [vmem:[%s2747] sm:$0xff] %v2746
      %s2749 = sadd.s32 %s390, 4
      %s2750 = sshrl.u32 %s2749, 3
      %p2751 = scmp.lt.s32.totalorder 2, %s2750
      %s2752 = scalar_select %p2751, 2, %s2750
      %s2753 = sand.u32 %s2749, 7
      %s2754 = sadd.s32 %s392, 8
      %s2755 = sshrl.u32 %s2754, 7
      %p2756 = scmp.lt.s32.totalorder 0, %s2755
      %s2757 = scalar_select %p2756, 0, %s2755
      %s2758 = sand.u32 %s2754, 127
      %s2759 = sadd.s32 %s2757, %s2752
      %s2760 = smul.addr %s349, 3
      %s2761 = sadd.s32 %s2759, %s2760
      %s2762 = smul.addr %s347, 12
      %s2763 = sadd.s32 %s2761, %s2762
      %s2764 = smul.addr %s2763, 8
      %s2765 = scalar_lea.vmem %s0, %s2764
      %s2767 = scalar_lea.vmem %s2765, %s2753
      %v2768 = vld [vmem:[%s2767] ss:$0 sm:$0xff]
      %v2769 = vlaneseq
      %v2770 = vshrl.u32 %v2769, 7
      %v2771 = vstv %s2758
      %v2772 = vadd.s32 %v2770, %v2771
      %2773 = vset.pattern.permute.xlu0 %v2772
      %2774 = vperm.xlu0 %2773, %v2768
      %v2775 = vpop.permute.xlu0 %2774
      %s2776 = scalar_lea.vmem %s383, 72
      %2777 = vst [vmem:[%s2776] sm:$0xff] %v2775
      %s2778 = sadd.s32 1, %s347
      %s2779 = sadd.s32 %s390, 4
      %s2780 = sshrl.u32 %s2779, 3
      %p2781 = scmp.lt.s32.totalorder 2, %s2780
      %s2782 = scalar_select %p2781, 2, %s2780
      %s2783 = sand.u32 %s2779, 7
      %s2784 = sadd.s32 %s392, 8
      %s2785 = sshrl.u32 %s2784, 7
      %p2786 = scmp.lt.s32.totalorder 0, %s2785
      %s2787 = scalar_select %p2786, 0, %s2785
      %s2788 = sand.u32 %s2784, 127
      %s2789 = sadd.s32 %s2787, %s2782
      %s2790 = smul.addr %s349, 3
      %s2791 = sadd.s32 %s2789, %s2790
      %s2792 = smul.addr %s2778, 12
      %s2793 = sadd.s32 %s2791, %s2792
      %s2794 = smul.addr %s2793, 8
      %s2795 = scalar_lea.vmem %s0, %s2794
      %s2797 = scalar_lea.vmem %s2795, %s2783
      %v2798 = vld [vmem:[%s2797] ss:$0 sm:$0xff]
      %v2799 = vlaneseq
      %v2800 = vshrl.u32 %v2799, 7
      %v2801 = vstv %s2788
      %v2802 = vadd.s32 %v2800, %v2801
      %2803 = vset.pattern.permute.xlu0 %v2802
      %2804 = vperm.xlu0 %2803, %v2798
      %v2805 = vpop.permute.xlu0 %2804
      %s2806 = scalar_lea.vmem %s383, 1224
      %2807 = vst [vmem:[%s2806] sm:$0xff] %v2805
      %s2808 = sadd.s32 1, %s349
      %s2809 = sadd.s32 %s390, 4
      %s2810 = sshrl.u32 %s2809, 3
      %p2811 = scmp.lt.s32.totalorder 2, %s2810
      %s2812 = scalar_select %p2811, 2, %s2810
      %s2813 = sand.u32 %s2809, 7
      %s2814 = sadd.s32 %s392, 8
      %s2815 = sshrl.u32 %s2814, 7
      %p2816 = scmp.lt.s32.totalorder 0, %s2815
      %s2817 = scalar_select %p2816, 0, %s2815
      %s2818 = sand.u32 %s2814, 127
      %s2819 = sadd.s32 %s2817, %s2812
      %s2820 = smul.addr %s2808, 3
      %s2821 = sadd.s32 %s2819, %s2820
      %s2822 = smul.addr %s347, 12
      %s2823 = sadd.s32 %s2821, %s2822
      %s2824 = smul.addr %s2823, 8
      %s2825 = scalar_lea.vmem %s0, %s2824
      %s2827 = scalar_lea.vmem %s2825, %s2813
      %v2828 = vld [vmem:[%s2827] ss:$0 sm:$0xff]
      %v2829 = vlaneseq
      %v2830 = vshrl.u32 %v2829, 7
      %v2831 = vstv %s2818
      %v2832 = vadd.s32 %v2830, %v2831
      %2833 = vset.pattern.permute.xlu0 %v2832
      %2834 = vperm.xlu0 %2833, %v2828
      %v2835 = vpop.permute.xlu0 %2834
      %s2836 = scalar_lea.vmem %s383, 360
      %2837 = vst [vmem:[%s2836] sm:$0xff] %v2835
      %s2838 = sadd.s32 1, %s347
      %s2839 = sadd.s32 1, %s349
      %s2840 = sadd.s32 %s390, 4
      %s2841 = sshrl.u32 %s2840, 3
      %p2842 = scmp.lt.s32.totalorder 2, %s2841
      %s2843 = scalar_select %p2842, 2, %s2841
      %s2844 = sand.u32 %s2840, 7
      %s2845 = sadd.s32 %s392, 8
      %s2846 = sshrl.u32 %s2845, 7
      %p2847 = scmp.lt.s32.totalorder 0, %s2846
      %s2848 = scalar_select %p2847, 0, %s2846
      %s2849 = sand.u32 %s2845, 127
      %s2850 = sadd.s32 %s2848, %s2843
      %s2851 = smul.addr %s2839, 3
      %s2852 = sadd.s32 %s2850, %s2851
      %s2853 = smul.addr %s2838, 12
      %s2854 = sadd.s32 %s2852, %s2853
      %s2855 = smul.addr %s2854, 8
      %s2856 = scalar_lea.vmem %s0, %s2855
      %s2858 = scalar_lea.vmem %s2856, %s2844
      %v2859 = vld [vmem:[%s2858] ss:$0 sm:$0xff]
      %v2860 = vlaneseq
      %v2861 = vshrl.u32 %v2860, 7
      %v2862 = vstv %s2849
      %v2863 = vadd.s32 %v2861, %v2862
      %2864 = vset.pattern.permute.xlu0 %v2863
      %2865 = vperm.xlu0 %2864, %v2859
      %v2866 = vpop.permute.xlu0 %2865
      %s2867 = scalar_lea.vmem %s383, 1512
      %2868 = vst [vmem:[%s2867] sm:$0xff] %v2866
      %s2869 = sadd.s32 2, %s349
      %s2870 = sadd.s32 %s390, 4
      %s2871 = sshrl.u32 %s2870, 3
      %p2872 = scmp.lt.s32.totalorder 2, %s2871
      %s2873 = scalar_select %p2872, 2, %s2871
      %s2874 = sand.u32 %s2870, 7
      %s2875 = sadd.s32 %s392, 8
      %s2876 = sshrl.u32 %s2875, 7
      %p2877 = scmp.lt.s32.totalorder 0, %s2876
      %s2878 = scalar_select %p2877, 0, %s2876
      %s2879 = sand.u32 %s2875, 127
      %s2880 = sadd.s32 %s2878, %s2873
      %s2881 = smul.addr %s2869, 3
      %s2882 = sadd.s32 %s2880, %s2881
      %s2883 = smul.addr %s347, 12
      %s2884 = sadd.s32 %s2882, %s2883
      %s2885 = smul.addr %s2884, 8
      %s2886 = scalar_lea.vmem %s0, %s2885
      %s2888 = scalar_lea.vmem %s2886, %s2874
      %v2889 = vld [vmem:[%s2888] ss:$0 sm:$0xff]
      %v2890 = vlaneseq
      %v2891 = vshrl.u32 %v2890, 7
      %v2892 = vstv %s2879
      %v2893 = vadd.s32 %v2891, %v2892
      %2894 = vset.pattern.permute.xlu0 %v2893
      %2895 = vperm.xlu0 %2894, %v2889
      %v2896 = vpop.permute.xlu0 %2895
      %s2897 = scalar_lea.vmem %s383, 648
      %2898 = vst [vmem:[%s2897] sm:$0xff] %v2896
      %s2899 = sadd.s32 1, %s347
      %s2900 = sadd.s32 2, %s349
      %s2901 = sadd.s32 %s390, 4
      %s2902 = sshrl.u32 %s2901, 3
      %p2903 = scmp.lt.s32.totalorder 2, %s2902
      %s2904 = scalar_select %p2903, 2, %s2902
      %s2905 = sand.u32 %s2901, 7
      %s2906 = sadd.s32 %s392, 8
      %s2907 = sshrl.u32 %s2906, 7
      %p2908 = scmp.lt.s32.totalorder 0, %s2907
      %s2909 = scalar_select %p2908, 0, %s2907
      %s2910 = sand.u32 %s2906, 127
      %s2911 = sadd.s32 %s2909, %s2904
      %s2912 = smul.addr %s2900, 3
      %s2913 = sadd.s32 %s2911, %s2912
      %s2914 = smul.addr %s2899, 12
      %s2915 = sadd.s32 %s2913, %s2914
      %s2916 = smul.addr %s2915, 8
      %s2917 = scalar_lea.vmem %s0, %s2916
      %s2919 = scalar_lea.vmem %s2917, %s2905
      %v2920 = vld [vmem:[%s2919] ss:$0 sm:$0xff]
      %v2921 = vlaneseq
      %v2922 = vshrl.u32 %v2921, 7
      %v2923 = vstv %s2910
      %v2924 = vadd.s32 %v2922, %v2923
      %2925 = vset.pattern.permute.xlu0 %v2924
      %2926 = vperm.xlu0 %2925, %v2920
      %v2927 = vpop.permute.xlu0 %2926
      %s2928 = scalar_lea.vmem %s383, 1800
      %2929 = vst [vmem:[%s2928] sm:$0xff] %v2927
      %s2930 = sadd.s32 3, %s349
      %s2931 = sadd.s32 %s390, 4
      %s2932 = sshrl.u32 %s2931, 3
      %p2933 = scmp.lt.s32.totalorder 2, %s2932
      %s2934 = scalar_select %p2933, 2, %s2932
      %s2935 = sand.u32 %s2931, 7
      %s2936 = sadd.s32 %s392, 8
      %s2937 = sshrl.u32 %s2936, 7
      %p2938 = scmp.lt.s32.totalorder 0, %s2937
      %s2939 = scalar_select %p2938, 0, %s2937
      %s2940 = sand.u32 %s2936, 127
      %s2941 = sadd.s32 %s2939, %s2934
      %s2942 = smul.addr %s2930, 3
      %s2943 = sadd.s32 %s2941, %s2942
      %s2944 = smul.addr %s347, 12
      %s2945 = sadd.s32 %s2943, %s2944
      %s2946 = smul.addr %s2945, 8
      %s2947 = scalar_lea.vmem %s0, %s2946
      %s2949 = scalar_lea.vmem %s2947, %s2935
      %v2950 = vld [vmem:[%s2949] ss:$0 sm:$0xff]
      %v2951 = vlaneseq
      %v2952 = vshrl.u32 %v2951, 7
      %v2953 = vstv %s2940
      %v2954 = vadd.s32 %v2952, %v2953
      %2955 = vset.pattern.permute.xlu0 %v2954
      %2956 = vperm.xlu0 %2955, %v2950
      %v2957 = vpop.permute.xlu0 %2956
      %s2958 = scalar_lea.vmem %s383, 936
      %2959 = vst [vmem:[%s2958] sm:$0xff] %v2957
      %s2960 = sadd.s32 1, %s347
      %s2961 = sadd.s32 3, %s349
      %s2962 = sadd.s32 %s390, 4
      %s2963 = sshrl.u32 %s2962, 3
      %p2964 = scmp.lt.s32.totalorder 2, %s2963
      %s2965 = scalar_select %p2964, 2, %s2963
      %s2966 = sand.u32 %s2962, 7
      %s2967 = sadd.s32 %s392, 8
      %s2968 = sshrl.u32 %s2967, 7
      %p2969 = scmp.lt.s32.totalorder 0, %s2968
      %s2970 = scalar_select %p2969, 0, %s2968
      %s2971 = sand.u32 %s2967, 127
      %s2972 = sadd.s32 %s2970, %s2965
      %s2973 = smul.addr %s2961, 3
      %s2974 = sadd.s32 %s2972, %s2973
      %s2975 = smul.addr %s2960, 12
      %s2976 = sadd.s32 %s2974, %s2975
      %s2977 = smul.addr %s2976, 8
      %s2978 = scalar_lea.vmem %s0, %s2977
      %s2980 = scalar_lea.vmem %s2978, %s2966
      %v2981 = vld [vmem:[%s2980] ss:$0 sm:$0xff]
      %v2982 = vlaneseq
      %v2983 = vshrl.u32 %v2982, 7
      %v2984 = vstv %s2971
      %v2985 = vadd.s32 %v2983, %v2984
      %2986 = vset.pattern.permute.xlu0 %v2985
      %2987 = vperm.xlu0 %2986, %v2981
      %v2988 = vpop.permute.xlu0 %2987
      %s2989 = scalar_lea.vmem %s383, 2088
      %2990 = vst [vmem:[%s2989] sm:$0xff] %v2988
      %s2991 = sadd.s32 %s390, 5
      %s2992 = sshrl.u32 %s2991, 3
      %p2993 = scmp.lt.s32.totalorder 2, %s2992
      %s2994 = scalar_select %p2993, 2, %s2992
      %s2995 = sand.u32 %s2991, 7
      %s2996 = sadd.s32 %s392, 8
      %s2997 = sshrl.u32 %s2996, 7
      %p2998 = scmp.lt.s32.totalorder 0, %s2997
      %s2999 = scalar_select %p2998, 0, %s2997
      %s3000 = sand.u32 %s2996, 127
      %s3001 = sadd.s32 %s2999, %s2994
      %s3002 = smul.addr %s349, 3
      %s3003 = sadd.s32 %s3001, %s3002
      %s3004 = smul.addr %s347, 12
      %s3005 = sadd.s32 %s3003, %s3004
      %s3006 = smul.addr %s3005, 8
      %s3007 = scalar_lea.vmem %s0, %s3006
      %s3009 = scalar_lea.vmem %s3007, %s2995
      %v3010 = vld [vmem:[%s3009] ss:$0 sm:$0xff]
      %v3011 = vlaneseq
      %v3012 = vshrl.u32 %v3011, 7
      %v3013 = vstv %s3000
      %v3014 = vadd.s32 %v3012, %v3013
      %3015 = vset.pattern.permute.xlu0 %v3014
      %3016 = vperm.xlu0 %3015, %v3010
      %v3017 = vpop.permute.xlu0 %3016
      %s3018 = scalar_lea.vmem %s383, 88
      %3019 = vst [vmem:[%s3018] sm:$0xff] %v3017
      %s3020 = sadd.s32 1, %s347
      %s3021 = sadd.s32 %s390, 5
      %s3022 = sshrl.u32 %s3021, 3
      %p3023 = scmp.lt.s32.totalorder 2, %s3022
      %s3024 = scalar_select %p3023, 2, %s3022
      %s3025 = sand.u32 %s3021, 7
      %s3026 = sadd.s32 %s392, 8
      %s3027 = sshrl.u32 %s3026, 7
      %p3028 = scmp.lt.s32.totalorder 0, %s3027
      %s3029 = scalar_select %p3028, 0, %s3027
      %s3030 = sand.u32 %s3026, 127
      %s3031 = sadd.s32 %s3029, %s3024
      %s3032 = smul.addr %s349, 3
      %s3033 = sadd.s32 %s3031, %s3032
      %s3034 = smul.addr %s3020, 12
      %s3035 = sadd.s32 %s3033, %s3034
      %s3036 = smul.addr %s3035, 8
      %s3037 = scalar_lea.vmem %s0, %s3036
      %s3039 = scalar_lea.vmem %s3037, %s3025
      %v3040 = vld [vmem:[%s3039] ss:$0 sm:$0xff]
      %v3041 = vlaneseq
      %v3042 = vshrl.u32 %v3041, 7
      %v3043 = vstv %s3030
      %v3044 = vadd.s32 %v3042, %v3043
      %3045 = vset.pattern.permute.xlu0 %v3044
      %3046 = vperm.xlu0 %3045, %v3040
      %v3047 = vpop.permute.xlu0 %3046
      %s3048 = scalar_lea.vmem %s383, 1240
      %3049 = vst [vmem:[%s3048] sm:$0xff] %v3047
      %s3050 = sadd.s32 1, %s349
      %s3051 = sadd.s32 %s390, 5
      %s3052 = sshrl.u32 %s3051, 3
      %p3053 = scmp.lt.s32.totalorder 2, %s3052
      %s3054 = scalar_select %p3053, 2, %s3052
      %s3055 = sand.u32 %s3051, 7
      %s3056 = sadd.s32 %s392, 8
      %s3057 = sshrl.u32 %s3056, 7
      %p3058 = scmp.lt.s32.totalorder 0, %s3057
      %s3059 = scalar_select %p3058, 0, %s3057
      %s3060 = sand.u32 %s3056, 127
      %s3061 = sadd.s32 %s3059, %s3054
      %s3062 = smul.addr %s3050, 3
      %s3063 = sadd.s32 %s3061, %s3062
      %s3064 = smul.addr %s347, 12
      %s3065 = sadd.s32 %s3063, %s3064
      %s3066 = smul.addr %s3065, 8
      %s3067 = scalar_lea.vmem %s0, %s3066
      %s3069 = scalar_lea.vmem %s3067, %s3055
      %v3070 = vld [vmem:[%s3069] ss:$0 sm:$0xff]
      %v3071 = vlaneseq
      %v3072 = vshrl.u32 %v3071, 7
      %v3073 = vstv %s3060
      %v3074 = vadd.s32 %v3072, %v3073
      %3075 = vset.pattern.permute.xlu0 %v3074
      %3076 = vperm.xlu0 %3075, %v3070
      %v3077 = vpop.permute.xlu0 %3076
      %s3078 = scalar_lea.vmem %s383, 376
      %3079 = vst [vmem:[%s3078] sm:$0xff] %v3077
      %s3080 = sadd.s32 1, %s347
      %s3081 = sadd.s32 1, %s349
      %s3082 = sadd.s32 %s390, 5
      %s3083 = sshrl.u32 %s3082, 3
      %p3084 = scmp.lt.s32.totalorder 2, %s3083
      %s3085 = scalar_select %p3084, 2, %s3083
      %s3086 = sand.u32 %s3082, 7
      %s3087 = sadd.s32 %s392, 8
      %s3088 = sshrl.u32 %s3087, 7
      %p3089 = scmp.lt.s32.totalorder 0, %s3088
      %s3090 = scalar_select %p3089, 0, %s3088
      %s3091 = sand.u32 %s3087, 127
      %s3092 = sadd.s32 %s3090, %s3085
      %s3093 = smul.addr %s3081, 3
      %s3094 = sadd.s32 %s3092, %s3093
      %s3095 = smul.addr %s3080, 12
      %s3096 = sadd.s32 %s3094, %s3095
      %s3097 = smul.addr %s3096, 8
      %s3098 = scalar_lea.vmem %s0, %s3097
      %s3100 = scalar_lea.vmem %s3098, %s3086
      %v3101 = vld [vmem:[%s3100] ss:$0 sm:$0xff]
      %v3102 = vlaneseq
      %v3103 = vshrl.u32 %v3102, 7
      %v3104 = vstv %s3091
      %v3105 = vadd.s32 %v3103, %v3104
      %3106 = vset.pattern.permute.xlu0 %v3105
      %3107 = vperm.xlu0 %3106, %v3101
      %v3108 = vpop.permute.xlu0 %3107
      %s3109 = scalar_lea.vmem %s383, 1528
      %3110 = vst [vmem:[%s3109] sm:$0xff] %v3108
      %s3111 = sadd.s32 2, %s349
      %s3112 = sadd.s32 %s390, 5
      %s3113 = sshrl.u32 %s3112, 3
      %p3114 = scmp.lt.s32.totalorder 2, %s3113
      %s3115 = scalar_select %p3114, 2, %s3113
      %s3116 = sand.u32 %s3112, 7
      %s3117 = sadd.s32 %s392, 8
      %s3118 = sshrl.u32 %s3117, 7
      %p3119 = scmp.lt.s32.totalorder 0, %s3118
      %s3120 = scalar_select %p3119, 0, %s3118
      %s3121 = sand.u32 %s3117, 127
      %s3122 = sadd.s32 %s3120, %s3115
      %s3123 = smul.addr %s3111, 3
      %s3124 = sadd.s32 %s3122, %s3123
      %s3125 = smul.addr %s347, 12
      %s3126 = sadd.s32 %s3124, %s3125
      %s3127 = smul.addr %s3126, 8
      %s3128 = scalar_lea.vmem %s0, %s3127
      %s3130 = scalar_lea.vmem %s3128, %s3116
      %v3131 = vld [vmem:[%s3130] ss:$0 sm:$0xff]
      %v3132 = vlaneseq
      %v3133 = vshrl.u32 %v3132, 7
      %v3134 = vstv %s3121
      %v3135 = vadd.s32 %v3133, %v3134
      %3136 = vset.pattern.permute.xlu0 %v3135
      %3137 = vperm.xlu0 %3136, %v3131
      %v3138 = vpop.permute.xlu0 %3137
      %s3139 = scalar_lea.vmem %s383, 664
      %3140 = vst [vmem:[%s3139] sm:$0xff] %v3138
      %s3141 = sadd.s32 1, %s347
      %s3142 = sadd.s32 2, %s349
      %s3143 = sadd.s32 %s390, 5
      %s3144 = sshrl.u32 %s3143, 3
      %p3145 = scmp.lt.s32.totalorder 2, %s3144
      %s3146 = scalar_select %p3145, 2, %s3144
      %s3147 = sand.u32 %s3143, 7
      %s3148 = sadd.s32 %s392, 8
      %s3149 = sshrl.u32 %s3148, 7
      %p3150 = scmp.lt.s32.totalorder 0, %s3149
      %s3151 = scalar_select %p3150, 0, %s3149
      %s3152 = sand.u32 %s3148, 127
      %s3153 = sadd.s32 %s3151, %s3146
      %s3154 = smul.addr %s3142, 3
      %s3155 = sadd.s32 %s3153, %s3154
      %s3156 = smul.addr %s3141, 12
      %s3157 = sadd.s32 %s3155, %s3156
      %s3158 = smul.addr %s3157, 8
      %s3159 = scalar_lea.vmem %s0, %s3158
      %s3161 = scalar_lea.vmem %s3159, %s3147
      %v3162 = vld [vmem:[%s3161] ss:$0 sm:$0xff]
      %v3163 = vlaneseq
      %v3164 = vshrl.u32 %v3163, 7
      %v3165 = vstv %s3152
      %v3166 = vadd.s32 %v3164, %v3165
      %3167 = vset.pattern.permute.xlu0 %v3166
      %3168 = vperm.xlu0 %3167, %v3162
      %v3169 = vpop.permute.xlu0 %3168
      %s3170 = scalar_lea.vmem %s383, 1816
      %3171 = vst [vmem:[%s3170] sm:$0xff] %v3169
      %s3172 = sadd.s32 3, %s349
      %s3173 = sadd.s32 %s390, 5
      %s3174 = sshrl.u32 %s3173, 3
      %p3175 = scmp.lt.s32.totalorder 2, %s3174
      %s3176 = scalar_select %p3175, 2, %s3174
      %s3177 = sand.u32 %s3173, 7
      %s3178 = sadd.s32 %s392, 8
      %s3179 = sshrl.u32 %s3178, 7
      %p3180 = scmp.lt.s32.totalorder 0, %s3179
      %s3181 = scalar_select %p3180, 0, %s3179
      %s3182 = sand.u32 %s3178, 127
      %s3183 = sadd.s32 %s3181, %s3176
      %s3184 = smul.addr %s3172, 3
      %s3185 = sadd.s32 %s3183, %s3184
      %s3186 = smul.addr %s347, 12
      %s3187 = sadd.s32 %s3185, %s3186
      %s3188 = smul.addr %s3187, 8
      %s3189 = scalar_lea.vmem %s0, %s3188
      %s3191 = scalar_lea.vmem %s3189, %s3177
      %v3192 = vld [vmem:[%s3191] ss:$0 sm:$0xff]
      %v3193 = vlaneseq
      %v3194 = vshrl.u32 %v3193, 7
      %v3195 = vstv %s3182
      %v3196 = vadd.s32 %v3194, %v3195
      %3197 = vset.pattern.permute.xlu0 %v3196
      %3198 = vperm.xlu0 %3197, %v3192
      %v3199 = vpop.permute.xlu0 %3198
      %s3200 = scalar_lea.vmem %s383, 952
      %3201 = vst [vmem:[%s3200] sm:$0xff] %v3199
      %s3202 = sadd.s32 1, %s347
      %s3203 = sadd.s32 3, %s349
      %s3204 = sadd.s32 %s390, 5
      %s3205 = sshrl.u32 %s3204, 3
      %p3206 = scmp.lt.s32.totalorder 2, %s3205
      %s3207 = scalar_select %p3206, 2, %s3205
      %s3208 = sand.u32 %s3204, 7
      %s3209 = sadd.s32 %s392, 8
      %s3210 = sshrl.u32 %s3209, 7
      %p3211 = scmp.lt.s32.totalorder 0, %s3210
      %s3212 = scalar_select %p3211, 0, %s3210
      %s3213 = sand.u32 %s3209, 127
      %s3214 = sadd.s32 %s3212, %s3207
      %s3215 = smul.addr %s3203, 3
      %s3216 = sadd.s32 %s3214, %s3215
      %s3217 = smul.addr %s3202, 12
      %s3218 = sadd.s32 %s3216, %s3217
      %s3219 = smul.addr %s3218, 8
      %s3220 = scalar_lea.vmem %s0, %s3219
      %s3222 = scalar_lea.vmem %s3220, %s3208
      %v3223 = vld [vmem:[%s3222] ss:$0 sm:$0xff]
      %v3224 = vlaneseq
      %v3225 = vshrl.u32 %v3224, 7
      %v3226 = vstv %s3213
      %v3227 = vadd.s32 %v3225, %v3226
      %3228 = vset.pattern.permute.xlu0 %v3227
      %3229 = vperm.xlu0 %3228, %v3223
      %v3230 = vpop.permute.xlu0 %3229
      %s3231 = scalar_lea.vmem %s383, 2104
      %3232 = vst [vmem:[%s3231] sm:$0xff] %v3230
      %s3233 = smul.u32 2, %s43
      %s3234 = smul.u32 4, %s44
      %s3235 = smul.u32 6, %s45
      %s3236 = smul.u32 2, %s46
      %p3237 = scmp.lt.s32.totalorder %s3233, 15
      %s3238 = scalar_select %p3237, %s3233, 15
      %p3239 = scmp.lt.s32.totalorder %s3234, 3
      %s3240 = scalar_select %p3239, %s3234, 3
      %p3241 = scmp.lt.s32.totalorder %s3235, 17
      %s3242 = scalar_select %p3241, %s3235, 17
      %p3243 = scmp.lt.s32.totalorder %s3236, 1
      %s3244 = scalar_select %p3243, %s3236, 1
      %p3245 = scmp.lt.s32.totalorder %s47, 0
      %s3246 = scalar_select %p3245, %s47, 0
      %s3247 = sadd.s32 %s3246, %s3244
      %s3248 = smul.addr %s3242, 2
      %s3249 = sadd.s32 %s3247, %s3248
      %s3250 = smul.addr %s3240, 36
      %s3251 = sadd.s32 %s3249, %s3250
      %s3252 = smul.addr %s3238, 144
      %s3253 = sadd.s32 %s3251, %s3252
      %s3254 = smul.addr %s3253, 8
      %s3255 = scalar_lea.vmem %s1, %s3254
      %s3256 = smul.u32 2, %s43
      %s3257 = smul.u32 4, %s44
      %s3258 = smul.u32 6, %s45
      %s3259 = smul.u32 2, %s46
    $region24: #{mul.26} parent=5 // pred_fallthru
      _
    %p3260 = scmp.le.s32.totalorder 10, %s3
    // Predicated region
    $region25: #{mul.26} parent=5 // pred_check
      %p3261 = pneg %p3260
    $region26: #{mul.26} parent=5 // pred_check_branch
      %3263 = sbr.rel (%p3261) target = $region28
    $region27: #{mul.26} parent=5 // pred_region
      %s3264 = ssub.s32 %s3, 10
      %s3265 = smul.u32 2, %s68
      %s3266 = smul.u32 4, %s69
      %s3267 = smul.u32 6, %s70
      %s3268 = smul.u32 2, %s71
      %p3269 = scmp.lt.s32.totalorder %s3265, 15
      %s3270 = scalar_select %p3269, %s3265, 15
      %p3271 = scmp.lt.s32.totalorder %s3266, 3
      %s3272 = scalar_select %p3271, %s3266, 3
      %p3273 = scmp.lt.s32.totalorder %s3267, 17
      %s3274 = scalar_select %p3273, %s3267, 17
      %p3275 = scmp.lt.s32.totalorder %s3268, 1
      %s3276 = scalar_select %p3275, %s3268, 1
      %p3277 = scmp.lt.s32.totalorder %s72, 0
      %s3278 = scalar_select %p3277, %s72, 0
      %s3279 = sadd.s32 %s3278, %s3276
      %s3280 = smul.addr %s3274, 2
      %s3281 = sadd.s32 %s3279, %s3280
      %s3282 = smul.addr %s3272, 36
      %s3283 = sadd.s32 %s3281, %s3282
      %s3284 = smul.addr %s3270, 144
      %s3285 = sadd.s32 %s3283, %s3284
      %s3286 = smul.addr %s3285, 8
      %s3287 = scalar_lea.vmem %s1, %s3286
    $region28: #{mul.26} parent=5 // pred_fallthru
      _
  $region6: #{mul.26} parent=0 // loop_footer
    %s7 = sadd.s32 1, %s3
  $region7: #{mul.26} parent=0 // loop_footer_branch
    %2 = sbr.rel target = $region3
  $region8: #{mul.26} parent=0 // loop_exit
    _

// kernel: dwconv2d_bn_forward.1
$region0: #{dwconv2d_bn_forward.1}
  #allocation0 [shape = 'u32[]', space=smem, size = 0x4, offset = 0x4, fixed_abs, tag = 'smem constant byte address 0x4 - core index']
  #allocation1 [shape = 'u32[72,128]{1,0:T(1,128)}', space=vmem, size = 0x9000, scoped, tag = 'internal scratch']
  #allocation2 [shape = 'f32[20,80]{1,0:T(8,128)}', space=vmem, size = 0x3000, scoped, tag = 'scratch operand']
  %s0 = inlined_call_operand.vmem [shape: f32[2,16,64], index: 0, kind: input, shape index: {}]
  %s1 = inlined_call_operand.vmem [shape: f32[9,64], index: 1, kind: input, shape index: {}]
  %s2 = inlined_call_operand.vmem [shape: f32[64,1152], index: 2, kind: input, shape index: {}]
  %s3 = inlined_call_operand.vmem [shape: f32[9,64], index: 3, kind: input, shape index: {}]
  %s4 = inlined_call_operand.vmem [shape: f32[64,128], index: 4, kind: input, shape index: {}]
  %s5 = inlined_call_operand.vmem [shape: f32[2,16,128], index: 5, kind: output, shape index: {}]
  %s6 = sld [smem:[#allocation0]]
  $region53: #{dwconv2d_bn_forward.1} parent=0
    _
  %s8 = ssub.s32 1, %s6
  %s9 = scalar_select 0, %s8, %s6
  loop: start=0, step=1, limit=4
  $region2: #{dwconv2d_bn_forward.1} parent=0 // loop_pre_header
    _
  $region3: #{dwconv2d_bn_forward.1} parent=0 // loop_header
    %s11 = sphi 0, %s15
    %p12 = scmp.ge.s32.totalorder %s11, 4
    %s21 = sphi 0, %s23
    %s24 = sphi 0, %s21
    %s25 = sphi 0, %s24
    %s41 = sphi 0, %s25
    %s45 = sphi 0, %s45
    %s47 = sphi 0, %s45
    %s48 = sphi 0, %s47
    %s62 = sphi 0, %s48
    %s66 = sphi 0, %s66
    %s68 = sphi 0, %s66
    %s69 = sphi 0, %s68
    %s83 = sphi 0, %s69
    %s87 = sphi 0, %s87
    %s89 = sphi 0, %s87
    %s90 = sphi 0, %s89
    %s104 = sphi 0, %s90
    %s108 = sphi 0, %s108
    %s110 = sphi 0, %s108
    %s111 = sphi 0, %s110
    %s125 = sphi 0, %s111
    %s131 = sphi 0, %s133
    %s134 = sphi 0, %s131
    %s135 = sphi 0, %s134
    %s151 = sphi 0, %s135
  $region4: #{dwconv2d_bn_forward.1} parent=0 // loop_header_branch
    %14 = sbr.rel (%p12) target = $region8
  $region5: #{dwconv2d_bn_forward.1} parent=0 // loop_body
    %s16 = ssub.s32 %s11, 1
    %s17 = ssub.s32 %s11, 2
    %s18 = sadd.s32 %s11, 1
    %s19 = ssub.s32 %s11, %s18
    %p20 = scmp.eq.s32.totalorder %s19, 0
    %s22 = sadd.s32 %s21, 1
    %s23 = scalar_select %p20, %s21, %s22
    %p26 = pneg %p20
    %p27 = scmp.eq.s32.totalorder %s11, 1
    %p28 = por %p26, %p27
    %p29 = scmp.ne.s32.totalorder %s21, %s24
    %p30 = scmp.eq.s32.totalorder %s11, 0
    %p31 = por %p29, %p30
    %p32 = scmp.ne.s32.totalorder %s21, %s24
    %p33 = scmp.eq.s32.totalorder %s16, 1
    %p34 = por %p32, %p33
    %p35 = scmp.ne.s32.totalorder %s24, %s25
    %p36 = scmp.eq.s32.totalorder %s16, 0
    %p37 = por %p35, %p36
    %p38 = scmp.ne.s32.totalorder %s24, %s25
    %p39 = scmp.eq.s32.totalorder %s17, 1
    %p40 = por %p38, %p39
    %p42 = scmp.ne.s32.totalorder %s25, %s41
    %p43 = scmp.eq.s32.totalorder %s17, 0
    %p44 = por %p42, %p43
    %s46 = sadd.s32 %s45, 1
    %p49 = scmp.eq.s32.totalorder %s11, 1
    %p50 = scmp.ne.s32.totalorder %s45, %s47
    %p51 = scmp.eq.s32.totalorder %s11, 0
    %p52 = por %p50, %p51
    %p53 = scmp.ne.s32.totalorder %s45, %s47
    %p54 = scmp.eq.s32.totalorder %s16, 1
    %p55 = por %p53, %p54
    %p56 = scmp.ne.s32.totalorder %s47, %s48
    %p57 = scmp.eq.s32.totalorder %s16, 0
    %p58 = por %p56, %p57
    %p59 = scmp.ne.s32.totalorder %s47, %s48
    %p60 = scmp.eq.s32.totalorder %s17, 1
    %p61 = por %p59, %p60
    %p63 = scmp.ne.s32.totalorder %s48, %s62
    %p64 = scmp.eq.s32.totalorder %s17, 0
    %p65 = por %p63, %p64
    %s67 = sadd.s32 %s66, 1
    %p70 = scmp.eq.s32.totalorder %s11, 1
    %p71 = scmp.ne.s32.totalorder %s66, %s68
    %p72 = scmp.eq.s32.totalorder %s11, 0
    %p73 = por %p71, %p72
    %p74 = scmp.ne.s32.totalorder %s66, %s68
    %p75 = scmp.eq.s32.totalorder %s16, 1
    %p76 = por %p74, %p75
    %p77 = scmp.ne.s32.totalorder %s68, %s69
    %p78 = scmp.eq.s32.totalorder %s16, 0
    %p79 = por %p77, %p78
    %p80 = scmp.ne.s32.totalorder %s68, %s69
    %p81 = scmp.eq.s32.totalorder %s17, 1
    %p82 = por %p80, %p81
    %p84 = scmp.ne.s32.totalorder %s69, %s83
    %p85 = scmp.eq.s32.totalorder %s17, 0
    %p86 = por %p84, %p85
    %s88 = sadd.s32 %s87, 1
    %p91 = scmp.eq.s32.totalorder %s11, 1
    %p92 = scmp.ne.s32.totalorder %s87, %s89
    %p93 = scmp.eq.s32.totalorder %s11, 0
    %p94 = por %p92, %p93
    %p95 = scmp.ne.s32.totalorder %s87, %s89
    %p96 = scmp.eq.s32.totalorder %s16, 1
    %p97 = por %p95, %p96
    %p98 = scmp.ne.s32.totalorder %s89, %s90
    %p99 = scmp.eq.s32.totalorder %s16, 0
    %p100 = por %p98, %p99
    %p101 = scmp.ne.s32.totalorder %s89, %s90
    %p102 = scmp.eq.s32.totalorder %s17, 1
    %p103 = por %p101, %p102
    %p105 = scmp.ne.s32.totalorder %s90, %s104
    %p106 = scmp.eq.s32.totalorder %s17, 0
    %p107 = por %p105, %p106
    %s109 = sadd.s32 %s108, 1
    %p112 = scmp.eq.s32.totalorder %s11, 1
    %p113 = scmp.ne.s32.totalorder %s108, %s110
    %p114 = scmp.eq.s32.totalorder %s11, 0
    %p115 = por %p113, %p114
    %p116 = scmp.ne.s32.totalorder %s108, %s110
    %p117 = scmp.eq.s32.totalorder %s16, 1
    %p118 = por %p116, %p117
    %p119 = scmp.ne.s32.totalorder %s110, %s111
    %p120 = scmp.eq.s32.totalorder %s16, 0
    %p121 = por %p119, %p120
    %p122 = scmp.ne.s32.totalorder %s110, %s111
    %p123 = scmp.eq.s32.totalorder %s17, 1
    %p124 = por %p122, %p123
    %p126 = scmp.ne.s32.totalorder %s111, %s125
    %p127 = scmp.eq.s32.totalorder %s17, 0
    %p128 = por %p126, %p127
    %s129 = ssub.s32 %s11, %s18
    %p130 = scmp.eq.s32.totalorder %s129, 0
    %s132 = sadd.s32 %s131, 1
    %s133 = scalar_select %p130, %s131, %s132
    %p136 = pneg %p130
    %p137 = scmp.eq.s32.totalorder %s11, 1
    %p138 = por %p136, %p137
    %p139 = scmp.ne.s32.totalorder %s131, %s134
    %p140 = scmp.eq.s32.totalorder %s11, 0
    %p141 = por %p139, %p140
    %p142 = scmp.ne.s32.totalorder %s131, %s134
    %p143 = scmp.eq.s32.totalorder %s16, 1
    %p144 = por %p142, %p143
    %p145 = scmp.ne.s32.totalorder %s134, %s135
    %p146 = scmp.eq.s32.totalorder %s16, 0
    %p147 = por %p145, %p146
    %p148 = scmp.ne.s32.totalorder %s134, %s135
    %p149 = scmp.eq.s32.totalorder %s17, 1
    %p150 = por %p148, %p149
    %p152 = scmp.ne.s32.totalorder %s135, %s151
    %p153 = scmp.eq.s32.totalorder %s17, 0
    %p154 = por %p152, %p153
    %p155 = scmp.le.s32.totalorder 1, %s11
    %p156 = scmp.lt.s32.totalorder %s11, 3
    %p157 = pnand %p155, %p156
    %p158 = pneg %p157
    // Predicated region
    $region9: #{dwconv2d_bn_forward.1} parent=5 // pred_check
      _
    $region10: #{dwconv2d_bn_forward.1} parent=5 // pred_check_branch
      %160 = sbr.rel (%p157) target = $region12
    $region11: #{dwconv2d_bn_forward.1} parent=5 // pred_region
      %s161 = ssub.s32 %s11, 1
      // Predicated region
      $region13: #{dwconv2d_bn_forward.1} parent=11 // pred_check
        %p162 = pneg %p58
      $region14: #{dwconv2d_bn_forward.1} parent=11 // pred_check_branch
        %164 = sbr.rel (%p162) target = $region16
      $region15: #{dwconv2d_bn_forward.1} parent=11 // pred_region
        _
      $region16: #{dwconv2d_bn_forward.1} parent=11 // pred_fallthru
        _
      // Predicated region
      $region17: #{dwconv2d_bn_forward.1} parent=11 // pred_check
        %p165 = pneg %p79
      $region18: #{dwconv2d_bn_forward.1} parent=11 // pred_check_branch
        %167 = sbr.rel (%p165) target = $region20
      $region19: #{dwconv2d_bn_forward.1} parent=11 // pred_region
        _
      $region20: #{dwconv2d_bn_forward.1} parent=11 // pred_fallthru
        _
      // Predicated region
      $region21: #{dwconv2d_bn_forward.1} parent=11 // pred_check
        %p168 = pneg %p100
      $region22: #{dwconv2d_bn_forward.1} parent=11 // pred_check_branch
        %170 = sbr.rel (%p168) target = $region24
      $region23: #{dwconv2d_bn_forward.1} parent=11 // pred_region
        _
      $region24: #{dwconv2d_bn_forward.1} parent=11 // pred_fallthru
        _
      // Predicated region
      $region25: #{dwconv2d_bn_forward.1} parent=11 // pred_check
        %p171 = pneg %p121
      $region26: #{dwconv2d_bn_forward.1} parent=11 // pred_check_branch
        %173 = sbr.rel (%p171) target = $region28
      $region27: #{dwconv2d_bn_forward.1} parent=11 // pred_region
        _
      $region28: #{dwconv2d_bn_forward.1} parent=11 // pred_fallthru
        _
    $region12: #{dwconv2d_bn_forward.1} parent=5 // pred_fallthru
      _
    %p174 = scmp.lt.s32.totalorder %s11, 2
    // Predicated region
    $region29: #{dwconv2d_bn_forward.1} parent=5 // pred_check
      %p175 = pneg %p174
    $region30: #{dwconv2d_bn_forward.1} parent=5 // pred_check_branch
      %177 = sbr.rel (%p175) target = $region32
    $region31: #{dwconv2d_bn_forward.1} parent=5 // pred_region
      // Predicated region
      $region33: #{dwconv2d_bn_forward.1} parent=31 // pred_check
        %p178 = pneg %p31
      $region34: #{dwconv2d_bn_forward.1} parent=31 // pred_check_branch
        %180 = sbr.rel (%p178) target = $region36
      $region35: #{dwconv2d_bn_forward.1} parent=31 // pred_region
        %p181 = scmp.lt.s32.totalorder %s11, 1
        %s182 = scalar_select %p181, %s11, 1
        %s183 = smul.addr %s182, 2
        %s184 = smul.addr %s183, 8
        %s185 = scalar_lea.vmem %s0, %s184
      $region36: #{dwconv2d_bn_forward.1} parent=31 // pred_fallthru
        _
    $region32: #{dwconv2d_bn_forward.1} parent=5 // pred_fallthru
      _
    %p186 = scmp.le.s32.totalorder 1, %s11
    %p187 = scmp.lt.s32.totalorder %s11, 3
    %p188 = pnand %p186, %p187
    %p189 = pneg %p188
    // Predicated region
    $region37: #{dwconv2d_bn_forward.1} parent=5 // pred_check
      _
    $region38: #{dwconv2d_bn_forward.1} parent=5 // pred_check_branch
      %191 = sbr.rel (%p188) target = $region40
    $region39: #{dwconv2d_bn_forward.1} parent=5 // pred_region
      %s192 = ssub.s32 %s11, 1
      %p193 = scmp.lt.s32.totalorder %s16, 1
      %s194 = scalar_select %p193, %s16, 1
      %s195 = smul.addr %s194, 2
      %s196 = smul.addr %s195, 8
      %s197 = scalar_lea.vmem %s0, %s196
      %p198 = pneg %p37
      %p199 = pneg %p34
      %p200 = pneg %p58
      %p201 = pneg %p55
      %p202 = pneg %p79
      %p203 = pneg %p76
      %p204 = pneg %p100
      %p205 = pneg %p97
      %p206 = pneg %p121
      %p207 = pneg %p118
      %p208 = pneg %p147
      %p209 = pneg %p144
      %p210 = scmp.lt.s32.totalorder %s16, 1
      %s211 = scalar_select %p210, %s16, 1
      %s212 = smul.addr %s211, 2
      %s213 = smul.addr %s212, 8
      %s214 = scalar_lea.vmem %s5, %s213
      %p215 = scmp.lt.s32.totalorder %s16, 1
      %s216 = scalar_select %p215, %s16, 1
      %s217 = smul.addr %s216, 2
      %s218 = smul.addr %s217, 8
      %s219 = scalar_lea.vmem %s0, %s218
      %p220 = scmp.lt.s32.totalorder %s16, 1
      %s221 = scalar_select %p220, %s16, 1
      %s222 = smul.addr %s221, 2
      %s223 = smul.addr %s222, 8
      %s224 = scalar_lea.vmem %s5, %s223
      %vm225 = vcmask 654336
      %226 = vst.msk [vmem:[#allocation2] sm:$0xff] %vm225, 0.0
      %227 = vst.msk [vmem:[#allocation2 + $0x8] sm:$0xff] %vm225, 0.0
      %vm228 = vcmask 650240
      %229 = vst.msk [vmem:[#allocation2 + $0x10] sm:$0xf] %vm228, 0.0
      %v230 = vld [vmem:[%s219] sm:$0xff]
      %v231 = vld [vmem:[%s219 + $0x8] sm:$0xff]
      %234 = vrot.lane.b32.xlu0 %v230, 8
      %v235 = vpop.permute.xlu0 %234
      %236 = vrot.lane.b32.xlu0 %v231, 8
      %v237 = vpop.permute.xlu0 %236
      %vm240 = vcmask 588864
      %241 = vst.msk [vmem:[#allocation2 + $0x2] sm:$0xff] %vm240, %v235
      %242 = vst.msk [vmem:[#allocation2 + $0xa] sm:$0xff] %vm240, %v237
      %v243 = vld [vmem:[%s1] sm:$0xff]
      %v244 = vld [vmem:[%s1 + $0x8] sm:$0x1]
      %v245 = vld [vmem:[%s3] sm:$0xff]
      %v246 = vld [vmem:[%s3 + $0x8] sm:$0x1]
      %v247 = vld [vmem:[#allocation2 + $0x1] sm:$0xff]
      %v248 = vld [vmem:[#allocation2 + $0x9] sm:$0xff]
      %v249 = vperm.slane %v243, 0
      %251 = vrot.lane.b32.xlu0 %v249, 4
      %v252 = vpop.permute.xlu0 %251
      %v254 = vmul.f32 %v247, %v252
      %v255 = vmul.f32 %v248, %v252
      %v256 = vadd.f32 %v254, 0.0
      %v257 = vadd.f32 %v255, 0.0
      %v258 = vperm.slane %v243, 1
      %260 = vrot.lane.b32.xlu0 %v258, 8
      %v261 = vpop.permute.xlu0 %260
      %v263 = vmul.f32 %v247, %v261
      %v264 = vmul.f32 %v248, %v261
      %267 = vrot.lane.b32.xlu0 %v263, 124
      %v268 = vpop.permute.xlu0 %267
      %269 = vrot.lane.b32.xlu0 %v264, 124
      %v270 = vpop.permute.xlu0 %269
      %v273 = vadd.f32 %v256, %v268
      %v274 = vadd.f32 %v257, %v270
      %v275 = vperm.slane %v243, 2
      %277 = vrot.lane.b32.xlu0 %v275, 12
      %v278 = vpop.permute.xlu0 %277
      %v280 = vmul.f32 %v247, %v278
      %v281 = vmul.f32 %v248, %v278
      %284 = vrot.lane.b32.xlu0 %v280, 120
      %v285 = vpop.permute.xlu0 %284
      %286 = vrot.lane.b32.xlu0 %v281, 120
      %v287 = vpop.permute.xlu0 %286
      %v290 = vadd.f32 %v273, %v285
      %v291 = vadd.f32 %v274, %v287
      %v292 = vld [vmem:[#allocation2 + $0x2] sm:$0xff]
      %v293 = vld [vmem:[#allocation2 + $0xa] sm:$0xff]
      %v294 = vperm.slane %v243, 3
      %296 = vrot.lane.b32.xlu0 %v294, 4
      %v297 = vpop.permute.xlu0 %296
      %v299 = vmul.f32 %v292, %v297
      %v300 = vmul.f32 %v293, %v297
      %v301 = vadd.f32 %v290, %v299
      %v302 = vadd.f32 %v291, %v300
      %v303 = vperm.slane %v243, 4
      %305 = vrot.lane.b32.xlu0 %v303, 8
      %v306 = vpop.permute.xlu0 %305
      %v308 = vmul.f32 %v292, %v306
      %v309 = vmul.f32 %v293, %v306
      %312 = vrot.lane.b32.xlu0 %v308, 124
      %v313 = vpop.permute.xlu0 %312
      %314 = vrot.lane.b32.xlu0 %v309, 124
      %v315 = vpop.permute.xlu0 %314
      %v318 = vadd.f32 %v301, %v313
      %v319 = vadd.f32 %v302, %v315
      %v320 = vperm.slane %v243, 5
      %322 = vrot.lane.b32.xlu0 %v320, 12
      %v323 = vpop.permute.xlu0 %322
      %v325 = vmul.f32 %v292, %v323
      %v326 = vmul.f32 %v293, %v323
      %329 = vrot.lane.b32.xlu0 %v325, 120
      %v330 = vpop.permute.xlu0 %329
      %331 = vrot.lane.b32.xlu0 %v326, 120
      %v332 = vpop.permute.xlu0 %331
      %v335 = vadd.f32 %v318, %v330
      %v336 = vadd.f32 %v319, %v332
      %v337 = vld [vmem:[#allocation2 + $0x3] sm:$0xff]
      %v338 = vld [vmem:[#allocation2 + $0xb] sm:$0xff]
      %v339 = vperm.slane %v243, 6
      %341 = vrot.lane.b32.xlu0 %v339, 4
      %v342 = vpop.permute.xlu0 %341
      %v344 = vmul.f32 %v337, %v342
      %v345 = vmul.f32 %v338, %v342
      %v346 = vadd.f32 %v335, %v344
      %v347 = vadd.f32 %v336, %v345
      %v348 = vperm.slane %v243, 7
      %350 = vrot.lane.b32.xlu0 %v348, 8
      %v351 = vpop.permute.xlu0 %350
      %v353 = vmul.f32 %v337, %v351
      %v354 = vmul.f32 %v338, %v351
      %357 = vrot.lane.b32.xlu0 %v353, 124
      %v358 = vpop.permute.xlu0 %357
      %359 = vrot.lane.b32.xlu0 %v354, 124
      %v360 = vpop.permute.xlu0 %359
      %v363 = vadd.f32 %v346, %v358
      %v364 = vadd.f32 %v347, %v360
      %v365 = vperm.slane %v244, 0
      %367 = vrot.lane.b32.xlu0 %v365, 12
      %v368 = vpop.permute.xlu0 %367
      %v370 = vmul.f32 %v337, %v368
      %v371 = vmul.f32 %v338, %v368
      %374 = vrot.lane.b32.xlu0 %v370, 120
      %v375 = vpop.permute.xlu0 %374
      %376 = vrot.lane.b32.xlu0 %v371, 120
      %v377 = vpop.permute.xlu0 %376
      %v380 = vadd.f32 %v363, %v375
      %v381 = vadd.f32 %v364, %v377
      %v382 = vld [vmem:[%s2] sm:$0xff]
      %v383 = vld [vmem:[%s2 + $0x8] sm:$0xff]
      %v384 = vld [vmem:[%s2 + $0x10] sm:$0xff]
      %v385 = vld [vmem:[%s2 + $0x18] sm:$0xff]
      %v386 = vld [vmem:[%s2 + $0x20] sm:$0xff]
      %v387 = vld [vmem:[%s2 + $0x28] sm:$0xff]
      %v388 = vld [vmem:[%s2 + $0x30] sm:$0xff]
      %v389 = vld [vmem:[%s2 + $0x38] sm:$0xff]
      %v390 = vld [vmem:[%s2 + $0x40] sm:$0xff]
      %v391 = vld [vmem:[%s2 + $0x48] sm:$0xff]
      %v392 = vld [vmem:[%s2 + $0x50] sm:$0xff]
      %v393 = vld [vmem:[%s2 + $0x58] sm:$0xff]
      %v394 = vld [vmem:[%s2 + $0x60] sm:$0xff]
      %v395 = vld [vmem:[%s2 + $0x68] sm:$0xff]
      %v396 = vld [vmem:[%s2 + $0x70] sm:$0xff]
      %v397 = vld [vmem:[%s2 + $0x78] sm:$0xff]
      %v398 = vld [vmem:[%s2 + $0x80] sm:$0xff]
      %v399 = vld [vmem:[%s2 + $0x88] sm:$0xff]
      %v400 = vld [vmem:[%s2 + $0x90] sm:$0xff]
      %v401 = vld [vmem:[%s2 + $0x98] sm:$0xff]
      %v402 = vld [vmem:[%s2 + $0xa0] sm:$0xff]
      %v403 = vld [vmem:[%s2 + $0xa8] sm:$0xff]
      %v404 = vld [vmem:[%s2 + $0xb0] sm:$0xff]
      %v405 = vld [vmem:[%s2 + $0xb8] sm:$0xff]
      %v406 = vld [vmem:[%s2 + $0xc0] sm:$0xff]
      %v407 = vld [vmem:[%s2 + $0xc8] sm:$0xff]
      %v408 = vld [vmem:[%s2 + $0xd0] sm:$0xff]
      %v409 = vld [vmem:[%s2 + $0xd8] sm:$0xff]
      %v410 = vld [vmem:[%s2 + $0xe0] sm:$0xff]
      %v411 = vld [vmem:[%s2 + $0xe8] sm:$0xff]
      %v412 = vld [vmem:[%s2 + $0xf0] sm:$0xff]
      %v413 = vld [vmem:[%s2 + $0xf8] sm:$0xff]
      %v414 = vld [vmem:[%s2 + $0x100] sm:$0xff]
      %v415 = vld [vmem:[%s2 + $0x108] sm:$0xff]
      %v416 = vld [vmem:[%s2 + $0x110] sm:$0xff]
      %v417 = vld [vmem:[%s2 + $0x118] sm:$0xff]
      %v418 = vld [vmem:[%s2 + $0x120] sm:$0xff]
      %v419 = vld [vmem:[%s2 + $0x128] sm:$0xff]
      %v420 = vld [vmem:[%s2 + $0x130] sm:$0xff]
      %v421 = vld [vmem:[%s2 + $0x138] sm:$0xff]
      %v422 = vld [vmem:[%s2 + $0x140] sm:$0xff]
      %v423 = vld [vmem:[%s2 + $0x148] sm:$0xff]
      %v424 = vld [vmem:[%s2 + $0x150] sm:$0xff]
      %v425 = vld [vmem:[%s2 + $0x158] sm:$0xff]
      %v426 = vld [vmem:[%s2 + $0x160] sm:$0xff]
      %v427 = vld [vmem:[%s2 + $0x168] sm:$0xff]
      %v428 = vld [vmem:[%s2 + $0x170] sm:$0xff]
      %v429 = vld [vmem:[%s2 + $0x178] sm:$0xff]
      %v430 = vld [vmem:[%s2 + $0x180] sm:$0xff]
      %v431 = vld [vmem:[%s2 + $0x188] sm:$0xff]
      %v432 = vld [vmem:[%s2 + $0x190] sm:$0xff]
      %v433 = vld [vmem:[%s2 + $0x198] sm:$0xff]
      %v434 = vld [vmem:[%s2 + $0x1a0] sm:$0xff]
      %v435 = vld [vmem:[%s2 + $0x1a8] sm:$0xff]
      %v436 = vld [vmem:[%s2 + $0x1b0] sm:$0xff]
      %v437 = vld [vmem:[%s2 + $0x1b8] sm:$0xff]
      %v438 = vld [vmem:[%s2 + $0x1c0] sm:$0xff]
      %v439 = vld [vmem:[%s2 + $0x1c8] sm:$0xff]
      %v440 = vld [vmem:[%s2 + $0x1d0] sm:$0xff]
      %v441 = vld [vmem:[%s2 + $0x1d8] sm:$0xff]
      %v442 = vld [vmem:[%s2 + $0x1e0] sm:$0xff]
      %v443 = vld [vmem:[%s2 + $0x1e8] sm:$0xff]
      %v444 = vld [vmem:[%s2 + $0x1f0] sm:$0xff]
      %v445 = vld [vmem:[%s2 + $0x1f8] sm:$0xff]
      %v446 = vld [vmem:[%s2 + $0x200] sm:$0xff]
      %v447 = vld [vmem:[%s2 + $0x208] sm:$0xff]
      %v448 = vld [vmem:[%s2 + $0x210] sm:$0xff]
      %v449 = vld [vmem:[%s2 + $0x218] sm:$0xff]
      %v450 = vld [vmem:[%s2 + $0x220] sm:$0xff]
      %v451 = vld [vmem:[%s2 + $0x228] sm:$0xff]
      %v452 = vld [vmem:[%s2 + $0x230] sm:$0xff]
      %v453 = vld [vmem:[%s2 + $0x238] sm:$0xff]
      %456 = vrot.lane.b32.xlu0 %v380, 124
      %v457 = vpop.permute.xlu0 %456
      %458 = vrot.lane.b32.xlu0 %v381, 124
      %v459 = vpop.permute.xlu0 %458
      %vm460 = vcmask 523264
      %v461 = vsel %vm460, %v457, 0
      %v463 = vsel %vm460, %v459, 0
      %465 = vmatpush.msra.mxu0 0.0
      %466 = vmatpush.msra.mxu0 0.0
      %467 = vmatpush.msra.mxu0 0.0
      %468 = vmatpush.msra.mxu0 0.0
      %469 = vmatpush.msra.mxu0 0.0
      %470 = vmatpush.msra.mxu0 0.0
      %471 = vmatpush.msra.mxu0 0.0
      %472 = vmatpush.msra.mxu0 0.0
      %473 = vmatpush.msra.mxu0 %v445
      %474 = vmatpush.msra.mxu0 %v436
      %475 = vmatpush.msra.mxu0 %v427
      %476 = vmatpush.msra.mxu0 %v418
      %477 = vmatpush.msra.mxu0 %v409
      %478 = vmatpush.msra.mxu0 %v400
      %479 = vmatpush.msra.mxu0 %v391
      %480 = vmatpush.msra.mxu0 %v382
      %481 = vmatmul.f32.gmra.mxu0 %v461
      %v482 = vpop.f32.mrf.mxu0
      %v483 = vadd.f32 0.0, %v482
      %484 = vmatmul.f32.gmra.mxu0 %v463
      %v485 = vpop.f32.mrf.mxu0
      %v486 = vadd.f32 0.0, %v485
      %487 = vdwg.mxu0
      %488 = vmatpush.msra.mxu0 0.0
      %489 = vmatpush.msra.mxu0 0.0
      %490 = vmatpush.msra.mxu0 0.0
      %491 = vmatpush.msra.mxu0 0.0
      %492 = vmatpush.msra.mxu0 0.0
      %493 = vmatpush.msra.mxu0 0.0
      %494 = vmatpush.msra.mxu0 0.0
      %495 = vmatpush.msra.mxu0 0.0
      %496 = vmatpush.msra.mxu0 %v446
      %497 = vmatpush.msra.mxu0 %v437
      %498 = vmatpush.msra.mxu0 %v428
      %499 = vmatpush.msra.mxu0 %v419
      %500 = vmatpush.msra.mxu0 %v410
      %501 = vmatpush.msra.mxu0 %v401
      %502 = vmatpush.msra.mxu0 %v392
      %503 = vmatpush.msra.mxu0 %v383
      %504 = vmatmul.f32.gmra.mxu0 %v461
      %v505 = vpop.f32.mrf.mxu0
      %v506 = vadd.f32 0.0, %v505
      %507 = vmatmul.f32.gmra.mxu0 %v463
      %v508 = vpop.f32.mrf.mxu0
      %v509 = vadd.f32 0.0, %v508
      %510 = vdwg.mxu0
      %511 = vmatpush.msra.mxu0 0.0
      %512 = vmatpush.msra.mxu0 0.0
      %513 = vmatpush.msra.mxu0 0.0
      %514 = vmatpush.msra.mxu0 0.0
      %515 = vmatpush.msra.mxu0 0.0
      %516 = vmatpush.msra.mxu0 0.0
      %517 = vmatpush.msra.mxu0 0.0
      %518 = vmatpush.msra.mxu0 0.0
      %519 = vmatpush.msra.mxu0 %v447
      %520 = vmatpush.msra.mxu0 %v438
      %521 = vmatpush.msra.mxu0 %v429
      %522 = vmatpush.msra.mxu0 %v420
      %523 = vmatpush.msra.mxu0 %v411
      %524 = vmatpush.msra.mxu0 %v402
      %525 = vmatpush.msra.mxu0 %v393
      %526 = vmatpush.msra.mxu0 %v384
      %527 = vmatmul.f32.gmra.mxu0 %v461
      %v528 = vpop.f32.mrf.mxu0
      %v529 = vadd.f32 0.0, %v528
      %530 = vmatmul.f32.gmra.mxu0 %v463
      %v531 = vpop.f32.mrf.mxu0
      %v532 = vadd.f32 0.0, %v531
      %533 = vdwg.mxu0
      %534 = vmatpush.msra.mxu0 0.0
      %535 = vmatpush.msra.mxu0 0.0
      %536 = vmatpush.msra.mxu0 0.0
      %537 = vmatpush.msra.mxu0 0.0
      %538 = vmatpush.msra.mxu0 0.0
      %539 = vmatpush.msra.mxu0 0.0
      %540 = vmatpush.msra.mxu0 0.0
      %541 = vmatpush.msra.mxu0 0.0
      %542 = vmatpush.msra.mxu0 %v448
      %543 = vmatpush.msra.mxu0 %v439
      %544 = vmatpush.msra.mxu0 %v430
      %545 = vmatpush.msra.mxu0 %v421
      %546 = vmatpush.msra.mxu0 %v412
      %547 = vmatpush.msra.mxu0 %v403
      %548 = vmatpush.msra.mxu0 %v394
      %549 = vmatpush.msra.mxu0 %v385
      %550 = vmatmul.f32.gmra.mxu0 %v461
      %v551 = vpop.f32.mrf.mxu0
      %v552 = vadd.f32 0.0, %v551
      %553 = vmatmul.f32.gmra.mxu0 %v463
      %v554 = vpop.f32.mrf.mxu0
      %v555 = vadd.f32 0.0, %v554
      %556 = vdwg.mxu0
      %557 = vmatpush.msra.mxu0 0.0
      %558 = vmatpush.msra.mxu0 0.0
      %559 = vmatpush.msra.mxu0 0.0
      %560 = vmatpush.msra.mxu0 0.0
      %561 = vmatpush.msra.mxu0 0.0
      %562 = vmatpush.msra.mxu0 0.0
      %563 = vmatpush.msra.mxu0 0.0
      %564 = vmatpush.msra.mxu0 0.0
      %565 = vmatpush.msra.mxu0 %v449
      %566 = vmatpush.msra.mxu0 %v440
      %567 = vmatpush.msra.mxu0 %v431
      %568 = vmatpush.msra.mxu0 %v422
      %569 = vmatpush.msra.mxu0 %v413
      %570 = vmatpush.msra.mxu0 %v404
      %571 = vmatpush.msra.mxu0 %v395
      %572 = vmatpush.msra.mxu0 %v386
      %573 = vmatmul.f32.gmra.mxu0 %v461
      %v574 = vpop.f32.mrf.mxu0
      %v575 = vadd.f32 0.0, %v574
      %576 = vmatmul.f32.gmra.mxu0 %v463
      %v577 = vpop.f32.mrf.mxu0
      %v578 = vadd.f32 0.0, %v577
      %579 = vdwg.mxu0
      %580 = vmatpush.msra.mxu0 0.0
      %581 = vmatpush.msra.mxu0 0.0
      %582 = vmatpush.msra.mxu0 0.0
      %583 = vmatpush.msra.mxu0 0.0
      %584 = vmatpush.msra.mxu0 0.0
      %585 = vmatpush.msra.mxu0 0.0
      %586 = vmatpush.msra.mxu0 0.0
      %587 = vmatpush.msra.mxu0 0.0
      %588 = vmatpush.msra.mxu0 %v450
      %589 = vmatpush.msra.mxu0 %v441
      %590 = vmatpush.msra.mxu0 %v432
      %591 = vmatpush.msra.mxu0 %v423
      %592 = vmatpush.msra.mxu0 %v414
      %593 = vmatpush.msra.mxu0 %v405
      %594 = vmatpush.msra.mxu0 %v396
      %595 = vmatpush.msra.mxu0 %v387
      %596 = vmatmul.f32.gmra.mxu0 %v461
      %v597 = vpop.f32.mrf.mxu0
      %v598 = vadd.f32 0.0, %v597
      %599 = vmatmul.f32.gmra.mxu0 %v463
      %v600 = vpop.f32.mrf.mxu0
      %v601 = vadd.f32 0.0, %v600
      %602 = vdwg.mxu0
      %603 = vmatpush.msra.mxu0 0.0
      %604 = vmatpush.msra.mxu0 0.0
      %605 = vmatpush.msra.mxu0 0.0
      %606 = vmatpush.msra.mxu0 0.0
      %607 = vmatpush.msra.mxu0 0.0
      %608 = vmatpush.msra.mxu0 0.0
      %609 = vmatpush.msra.mxu0 0.0
      %610 = vmatpush.msra.mxu0 0.0
      %611 = vmatpush.msra.mxu0 %v451
      %612 = vmatpush.msra.mxu0 %v442
      %613 = vmatpush.msra.mxu0 %v433
      %614 = vmatpush.msra.mxu0 %v424
      %615 = vmatpush.msra.mxu0 %v415
      %616 = vmatpush.msra.mxu0 %v406
      %617 = vmatpush.msra.mxu0 %v397
      %618 = vmatpush.msra.mxu0 %v388
      %619 = vmatmul.f32.gmra.mxu0 %v461
      %v620 = vpop.f32.mrf.mxu0
      %v621 = vadd.f32 0.0, %v620
      %622 = vmatmul.f32.gmra.mxu0 %v463
      %v623 = vpop.f32.mrf.mxu0
      %v624 = vadd.f32 0.0, %v623
      %625 = vdwg.mxu0
      %626 = vmatpush.msra.mxu0 0.0
      %627 = vmatpush.msra.mxu0 0.0
      %628 = vmatpush.msra.mxu0 0.0
      %629 = vmatpush.msra.mxu0 0.0
      %630 = vmatpush.msra.mxu0 0.0
      %631 = vmatpush.msra.mxu0 0.0
      %632 = vmatpush.msra.mxu0 0.0
      %633 = vmatpush.msra.mxu0 0.0
      %634 = vmatpush.msra.mxu0 %v452
      %635 = vmatpush.msra.mxu0 %v443
      %636 = vmatpush.msra.mxu0 %v434
      %637 = vmatpush.msra.mxu0 %v425
      %638 = vmatpush.msra.mxu0 %v416
      %639 = vmatpush.msra.mxu0 %v407
      %640 = vmatpush.msra.mxu0 %v398
      %641 = vmatpush.msra.mxu0 %v389
      %642 = vmatmul.f32.gmra.mxu0 %v461
      %v643 = vpop.f32.mrf.mxu0
      %v644 = vadd.f32 0.0, %v643
      %645 = vmatmul.f32.gmra.mxu0 %v463
      %v646 = vpop.f32.mrf.mxu0
      %v647 = vadd.f32 0.0, %v646
      %648 = vdwg.mxu0
      %649 = vmatpush.msra.mxu0 0.0
      %650 = vmatpush.msra.mxu0 0.0
      %651 = vmatpush.msra.mxu0 0.0
      %652 = vmatpush.msra.mxu0 0.0
      %653 = vmatpush.msra.mxu0 0.0
      %654 = vmatpush.msra.mxu0 0.0
      %655 = vmatpush.msra.mxu0 0.0
      %656 = vmatpush.msra.mxu0 0.0
      %657 = vmatpush.msra.mxu0 %v453
      %658 = vmatpush.msra.mxu0 %v444
      %659 = vmatpush.msra.mxu0 %v435
      %660 = vmatpush.msra.mxu0 %v426
      %661 = vmatpush.msra.mxu0 %v417
      %662 = vmatpush.msra.mxu0 %v408
      %663 = vmatpush.msra.mxu0 %v399
      %664 = vmatpush.msra.mxu0 %v390
      %665 = vmatmul.f32.gmra.mxu0 %v461
      %v666 = vpop.f32.mrf.mxu0
      %v667 = vadd.f32 0.0, %v666
      %668 = vmatmul.f32.gmra.mxu0 %v463
      %v669 = vpop.f32.mrf.mxu0
      %v670 = vadd.f32 0.0, %v669
      %671 = vdwg.mxu0
      %v672 = vmax.f32 %v483, -1.0
      %v673 = vmax.f32 %v506, -1.0
      %v674 = vmax.f32 %v529, -1.0
      %v675 = vmax.f32 %v552, -1.0
      %v676 = vmax.f32 %v575, -1.0
      %v677 = vmax.f32 %v598, -1.0
      %v678 = vmax.f32 %v621, -1.0
      %v679 = vmax.f32 %v644, -1.0
      %v680 = vmax.f32 %v667, -1.0
      %v681 = vmax.f32 %v486, -1.0
      %v682 = vmax.f32 %v509, -1.0
      %v683 = vmax.f32 %v532, -1.0
      %v684 = vmax.f32 %v555, -1.0
      %v685 = vmax.f32 %v578, -1.0
      %v686 = vmax.f32 %v601, -1.0
      %v687 = vmax.f32 %v624, -1.0
      %v688 = vmax.f32 %v647, -1.0
      %v689 = vmax.f32 %v670, -1.0
      %v690 = vmin.f32 %v672, 1.0
      %v691 = vmin.f32 %v673, 1.0
      %v692 = vmin.f32 %v674, 1.0
      %v693 = vmin.f32 %v675, 1.0
      %v694 = vmin.f32 %v676, 1.0
      %v695 = vmin.f32 %v677, 1.0
      %v696 = vmin.f32 %v678, 1.0
      %v697 = vmin.f32 %v679, 1.0
      %v698 = vmin.f32 %v680, 1.0
      %v699 = vmin.f32 %v681, 1.0
      %v700 = vmin.f32 %v682, 1.0
      %v701 = vmin.f32 %v683, 1.0
      %v702 = vmin.f32 %v684, 1.0
      %v703 = vmin.f32 %v685, 1.0
      %v704 = vmin.f32 %v686, 1.0
      %v705 = vmin.f32 %v687, 1.0
      %v706 = vmin.f32 %v688, 1.0
      %v707 = vmin.f32 %v689, 1.0
      %v708 = vsub.f32 0.0, %v690
      %v709 = vsub.f32 0.0, %v699
      %v710 = vmax.f32 %v708, 0.0
      %v711 = vmax.f32 %v709, 0.0
      %v712 = vmax.f32 %v690, 0.0
      %v713 = vmax.f32 %v699, 0.0
      %v714 = vsub.f32 1.0, %v710
      %v715 = vsub.f32 1.0, %v711
      %v716 = vsub.f32 %v714, %v712
      %v717 = vsub.f32 %v715, %v713
      %v718 = vld [vmem:[#allocation2] sm:$0xff]
      %v719 = vld [vmem:[#allocation2 + $0x8] sm:$0xff]
      %v720 = vmul.f32 %v710, %v718
      %v721 = vmul.f32 %v711, %v719
      %v722 = vmul.f32 %v716, %v247
      %v723 = vmul.f32 %v717, %v248
      %v724 = vadd.f32 %v720, %v722
      %v725 = vadd.f32 %v721, %v723
      %v726 = vmul.f32 %v712, %v292
      %v727 = vmul.f32 %v713, %v293
      %v728 = vadd.f32 %v724, %v726
      %v729 = vadd.f32 %v725, %v727
      %732 = vrot.lane.b32.xlu0 %v728, 64
      %v733 = vpop.permute.xlu0 %732
      %734 = vrot.lane.b32.xlu0 %v729, 64
      %v735 = vpop.permute.xlu0 %734
      %v738 = vmul.f32 %v710, %v733
      %v739 = vmul.f32 %v711, %v735
      %v740 = vadd.f32 %v738, 0.0
      %v741 = vadd.f32 %v739, 0.0
      %744 = vrot.lane.b32.xlu0 %v718, 124
      %v745 = vpop.permute.xlu0 %744
      %746 = vrot.lane.b32.xlu0 %v719, 124
      %v747 = vpop.permute.xlu0 %746
      %v750 = vmul.f32 %v710, %v745
      %v751 = vmul.f32 %v711, %v747
      %754 = vrot.lane.b32.xlu0 %v247, 124
      %v755 = vpop.permute.xlu0 %754
      %756 = vrot.lane.b32.xlu0 %v248, 124
      %v757 = vpop.permute.xlu0 %756
      %v760 = vmul.f32 %v716, %v755
      %v761 = vmul.f32 %v717, %v757
      %v762 = vadd.f32 %v750, %v760
      %v763 = vadd.f32 %v751, %v761
      %766 = vrot.lane.b32.xlu0 %v292, 124
      %v767 = vpop.permute.xlu0 %766
      %768 = vrot.lane.b32.xlu0 %v293, 124
      %v769 = vpop.permute.xlu0 %768
      %v772 = vmul.f32 %v712, %v767
      %v773 = vmul.f32 %v713, %v769
      %v774 = vadd.f32 %v762, %v772
      %v775 = vadd.f32 %v763, %v773
      %778 = vrot.lane.b32.xlu0 %v774, 64
      %v779 = vpop.permute.xlu0 %778
      %780 = vrot.lane.b32.xlu0 %v775, 64
      %v781 = vpop.permute.xlu0 %780
      %v784 = vmul.f32 %v716, %v779
      %v785 = vmul.f32 %v717, %v781
      %v786 = vadd.f32 %v740, %v784
      %v787 = vadd.f32 %v741, %v785
      %788 = vrot.lane.b32.xlu0 %v718, 120
      %v789 = vpop.permute.xlu0 %788
      %790 = vrot.lane.b32.xlu0 %v719, 120
      %v791 = vpop.permute.xlu0 %790
      %v794 = vmul.f32 %v710, %v789
      %v795 = vmul.f32 %v711, %v791
      %796 = vrot.lane.b32.xlu0 %v247, 120
      %v797 = vpop.permute.xlu0 %796
      %798 = vrot.lane.b32.xlu0 %v248, 120
      %v799 = vpop.permute.xlu0 %798
      %v802 = vmul.f32 %v716, %v797
      %v803 = vmul.f32 %v717, %v799
      %v804 = vadd.f32 %v794, %v802
      %v805 = vadd.f32 %v795, %v803
      %806 = vrot.lane.b32.xlu0 %v292, 120
      %v807 = vpop.permute.xlu0 %806
      %808 = vrot.lane.b32.xlu0 %v293, 120
      %v809 = vpop.permute.xlu0 %808
      %v812 = vmul.f32 %v712, %v807
      %v813 = vmul.f32 %v713, %v809
      %v814 = vadd.f32 %v804, %v812
      %v815 = vadd.f32 %v805, %v813
      %818 = vrot.lane.b32.xlu0 %v814, 64
      %v819 = vpop.permute.xlu0 %818
      %820 = vrot.lane.b32.xlu0 %v815, 64
      %v821 = vpop.permute.xlu0 %820
      %v824 = vmul.f32 %v712, %v819
      %v825 = vmul.f32 %v713, %v821
      %v826 = vadd.f32 %v786, %v824
      %v827 = vadd.f32 %v787, %v825
      %v828 = vperm.slane %v245, 0
      %830 = vrot.lane.b32.xlu0 %v828, 64
      %v831 = vpop.permute.xlu0 %830
      %v833 = vmul.f32 %v826, %v831
      %v834 = vmul.f32 %v827, %v831
      %v835 = vadd.f32 %v833, 0.0
      %v836 = vadd.f32 %v834, 0.0
      %v837 = vsub.f32 0.0, %v691
      %v838 = vsub.f32 0.0, %v700
      %v839 = vmax.f32 %v837, 0.0
      %v840 = vmax.f32 %v838, 0.0
      %v841 = vmax.f32 %v691, 0.0
      %v842 = vmax.f32 %v700, 0.0
      %v843 = vsub.f32 1.0, %v839
      %v844 = vsub.f32 1.0, %v840
      %v845 = vsub.f32 %v843, %v841
      %v846 = vsub.f32 %v844, %v842
      %v847 = vmul.f32 %v839, %v745
      %v848 = vmul.f32 %v840, %v747
      %v849 = vmul.f32 %v845, %v755
      %v850 = vmul.f32 %v846, %v757
      %v851 = vadd.f32 %v847, %v849
      %v852 = vadd.f32 %v848, %v850
      %v853 = vmul.f32 %v841, %v767
      %v854 = vmul.f32 %v842, %v769
      %v855 = vadd.f32 %v851, %v853
      %v856 = vadd.f32 %v852, %v854
      %859 = vrot.lane.b32.xlu0 %v855, 64
      %v860 = vpop.permute.xlu0 %859
      %861 = vrot.lane.b32.xlu0 %v856, 64
      %v862 = vpop.permute.xlu0 %861
      %v865 = vmul.f32 %v839, %v860
      %v866 = vmul.f32 %v840, %v862
      %v867 = vadd.f32 %v865, 0.0
      %v868 = vadd.f32 %v866, 0.0
      %v869 = vmul.f32 %v839, %v789
      %v870 = vmul.f32 %v840, %v791
      %v871 = vmul.f32 %v845, %v797
      %v872 = vmul.f32 %v846, %v799
      %v873 = vadd.f32 %v869, %v871
      %v874 = vadd.f32 %v870, %v872
      %v875 = vmul.f32 %v841, %v807
      %v876 = vmul.f32 %v842, %v809
      %v877 = vadd.f32 %v873, %v875
      %v878 = vadd.f32 %v874, %v876
      %881 = vrot.lane.b32.xlu0 %v877, 64
      %v882 = vpop.permute.xlu0 %881
      %883 = vrot.lane.b32.xlu0 %v878, 64
      %v884 = vpop.permute.xlu0 %883
      %v887 = vmul.f32 %v845, %v882
      %v888 = vmul.f32 %v846, %v884
      %v889 = vadd.f32 %v867, %v887
      %v890 = vadd.f32 %v868, %v888
      %891 = vrot.lane.b32.xlu0 %v718, 116
      %v892 = vpop.permute.xlu0 %891
      %893 = vrot.lane.b32.xlu0 %v719, 116
      %v894 = vpop.permute.xlu0 %893
      %v897 = vmul.f32 %v839, %v892
      %v898 = vmul.f32 %v840, %v894
      %899 = vrot.lane.b32.xlu0 %v247, 116
      %v900 = vpop.permute.xlu0 %899
      %901 = vrot.lane.b32.xlu0 %v248, 116
      %v902 = vpop.permute.xlu0 %901
      %v905 = vmul.f32 %v845, %v900
      %v906 = vmul.f32 %v846, %v902
      %v907 = vadd.f32 %v897, %v905
      %v908 = vadd.f32 %v898, %v906
      %909 = vrot.lane.b32.xlu0 %v292, 116
      %v910 = vpop.permute.xlu0 %909
      %911 = vrot.lane.b32.xlu0 %v293, 116
      %v912 = vpop.permute.xlu0 %911
      %v915 = vmul.f32 %v841, %v910
      %v916 = vmul.f32 %v842, %v912
      %v917 = vadd.f32 %v907, %v915
      %v918 = vadd.f32 %v908, %v916
      %921 = vrot.lane.b32.xlu0 %v917, 64
      %v922 = vpop.permute.xlu0 %921
      %923 = vrot.lane.b32.xlu0 %v918, 64
      %v924 = vpop.permute.xlu0 %923
      %v927 = vmul.f32 %v841, %v922
      %v928 = vmul.f32 %v842, %v924
      %v929 = vadd.f32 %v889, %v927
      %v930 = vadd.f32 %v890, %v928
      %v931 = vperm.slane %v245, 1
      %933 = vrot.lane.b32.xlu0 %v931, 64
      %v934 = vpop.permute.xlu0 %933
      %v936 = vmul.f32 %v929, %v934
      %v937 = vmul.f32 %v930, %v934
      %v938 = vadd.f32 %v835, %v936
      %v939 = vadd.f32 %v836, %v937
      %v940 = vsub.f32 0.0, %v692
      %v941 = vsub.f32 0.0, %v701
      %v942 = vmax.f32 %v940, 0.0
      %v943 = vmax.f32 %v941, 0.0
      %v944 = vmax.f32 %v692, 0.0
      %v945 = vmax.f32 %v701, 0.0
      %v946 = vsub.f32 1.0, %v942
      %v947 = vsub.f32 1.0, %v943
      %v948 = vsub.f32 %v946, %v944
      %v949 = vsub.f32 %v947, %v945
      %v950 = vmul.f32 %v942, %v789
      %v951 = vmul.f32 %v943, %v791
      %v952 = vmul.f32 %v948, %v797
      %v953 = vmul.f32 %v949, %v799
      %v954 = vadd.f32 %v950, %v952
      %v955 = vadd.f32 %v951, %v953
      %v956 = vmul.f32 %v944, %v807
      %v957 = vmul.f32 %v945, %v809
      %v958 = vadd.f32 %v954, %v956
      %v959 = vadd.f32 %v955, %v957
      %962 = vrot.lane.b32.xlu0 %v958, 64
      %v963 = vpop.permute.xlu0 %962
      %964 = vrot.lane.b32.xlu0 %v959, 64
      %v965 = vpop.permute.xlu0 %964
      %v968 = vmul.f32 %v942, %v963
      %v969 = vmul.f32 %v943, %v965
      %v970 = vadd.f32 %v968, 0.0
      %v971 = vadd.f32 %v969, 0.0
      %v972 = vmul.f32 %v942, %v892
      %v973 = vmul.f32 %v943, %v894
      %v974 = vmul.f32 %v948, %v900
      %v975 = vmul.f32 %v949, %v902
      %v976 = vadd.f32 %v972, %v974
      %v977 = vadd.f32 %v973, %v975
      %v978 = vmul.f32 %v944, %v910
      %v979 = vmul.f32 %v945, %v912
      %v980 = vadd.f32 %v976, %v978
      %v981 = vadd.f32 %v977, %v979
      %984 = vrot.lane.b32.xlu0 %v980, 64
      %v985 = vpop.permute.xlu0 %984
      %986 = vrot.lane.b32.xlu0 %v981, 64
      %v987 = vpop.permute.xlu0 %986
      %v990 = vmul.f32 %v948, %v985
      %v991 = vmul.f32 %v949, %v987
      %v992 = vadd.f32 %v970, %v990
      %v993 = vadd.f32 %v971, %v991
      %994 = vrot.lane.b32.xlu0 %v718, 112
      %v995 = vpop.permute.xlu0 %994
      %996 = vrot.lane.b32.xlu0 %v719, 112
      %v997 = vpop.permute.xlu0 %996
      %v1000 = vmul.f32 %v942, %v995
      %v1001 = vmul.f32 %v943, %v997
      %1002 = vrot.lane.b32.xlu0 %v247, 112
      %v1003 = vpop.permute.xlu0 %1002
      %1004 = vrot.lane.b32.xlu0 %v248, 112
      %v1005 = vpop.permute.xlu0 %1004
      %v1008 = vmul.f32 %v948, %v1003
      %v1009 = vmul.f32 %v949, %v1005
      %v1010 = vadd.f32 %v1000, %v1008
      %v1011 = vadd.f32 %v1001, %v1009
      %1012 = vrot.lane.b32.xlu0 %v292, 112
      %v1013 = vpop.permute.xlu0 %1012
      %1014 = vrot.lane.b32.xlu0 %v293, 112
      %v1015 = vpop.permute.xlu0 %1014
      %v1018 = vmul.f32 %v944, %v1013
      %v1019 = vmul.f32 %v945, %v1015
      %v1020 = vadd.f32 %v1010, %v1018
      %v1021 = vadd.f32 %v1011, %v1019
      %1024 = vrot.lane.b32.xlu0 %v1020, 64
      %v1025 = vpop.permute.xlu0 %1024
      %1026 = vrot.lane.b32.xlu0 %v1021, 64
      %v1027 = vpop.permute.xlu0 %1026
      %v1030 = vmul.f32 %v944, %v1025
      %v1031 = vmul.f32 %v945, %v1027
      %v1032 = vadd.f32 %v992, %v1030
      %v1033 = vadd.f32 %v993, %v1031
      %v1034 = vperm.slane %v245, 2
      %1036 = vrot.lane.b32.xlu0 %v1034, 64
      %v1037 = vpop.permute.xlu0 %1036
      %v1039 = vmul.f32 %v1032, %v1037
      %v1040 = vmul.f32 %v1033, %v1037
      %v1041 = vadd.f32 %v938, %v1039
      %v1042 = vadd.f32 %v939, %v1040
      %v1043 = vsub.f32 0.0, %v693
      %v1044 = vsub.f32 0.0, %v702
      %v1045 = vmax.f32 %v1043, 0.0
      %v1046 = vmax.f32 %v1044, 0.0
      %v1047 = vmax.f32 %v693, 0.0
      %v1048 = vmax.f32 %v702, 0.0
      %v1049 = vsub.f32 1.0, %v1045
      %v1050 = vsub.f32 1.0, %v1046
      %v1051 = vsub.f32 %v1049, %v1047
      %v1052 = vsub.f32 %v1050, %v1048
      %v1053 = vmul.f32 %v1045, %v247
      %v1054 = vmul.f32 %v1046, %v248
      %v1055 = vmul.f32 %v1051, %v292
      %v1056 = vmul.f32 %v1052, %v293
      %v1057 = vadd.f32 %v1053, %v1055
      %v1058 = vadd.f32 %v1054, %v1056
      %v1059 = vmul.f32 %v1047, %v337
      %v1060 = vmul.f32 %v1048, %v338
      %v1061 = vadd.f32 %v1057, %v1059
      %v1062 = vadd.f32 %v1058, %v1060
      %1065 = vrot.lane.b32.xlu0 %v1061, 64
      %v1066 = vpop.permute.xlu0 %1065
      %1067 = vrot.lane.b32.xlu0 %v1062, 64
      %v1068 = vpop.permute.xlu0 %1067
      %v1071 = vmul.f32 %v1045, %v1066
      %v1072 = vmul.f32 %v1046, %v1068
      %v1073 = vadd.f32 %v1071, 0.0
      %v1074 = vadd.f32 %v1072, 0.0
      %v1075 = vmul.f32 %v1045, %v755
      %v1076 = vmul.f32 %v1046, %v757
      %v1077 = vmul.f32 %v1051, %v767
      %v1078 = vmul.f32 %v1052, %v769
      %v1079 = vadd.f32 %v1075, %v1077
      %v1080 = vadd.f32 %v1076, %v1078
      %1083 = vrot.lane.b32.xlu0 %v337, 124
      %v1084 = vpop.permute.xlu0 %1083
      %1085 = vrot.lane.b32.xlu0 %v338, 124
      %v1086 = vpop.permute.xlu0 %1085
      %v1089 = vmul.f32 %v1047, %v1084
      %v1090 = vmul.f32 %v1048, %v1086
      %v1091 = vadd.f32 %v1079, %v1089
      %v1092 = vadd.f32 %v1080, %v1090
      %1095 = vrot.lane.b32.xlu0 %v1091, 64
      %v1096 = vpop.permute.xlu0 %1095
      %1097 = vrot.lane.b32.xlu0 %v1092, 64
      %v1098 = vpop.permute.xlu0 %1097
      %v1101 = vmul.f32 %v1051, %v1096
      %v1102 = vmul.f32 %v1052, %v1098
      %v1103 = vadd.f32 %v1073, %v1101
      %v1104 = vadd.f32 %v1074, %v1102
      %v1105 = vmul.f32 %v1045, %v797
      %v1106 = vmul.f32 %v1046, %v799
      %v1107 = vmul.f32 %v1051, %v807
      %v1108 = vmul.f32 %v1052, %v809
      %v1109 = vadd.f32 %v1105, %v1107
      %v1110 = vadd.f32 %v1106, %v1108
      %1111 = vrot.lane.b32.xlu0 %v337, 120
      %v1112 = vpop.permute.xlu0 %1111
      %1113 = vrot.lane.b32.xlu0 %v338, 120
      %v1114 = vpop.permute.xlu0 %1113
      %v1117 = vmul.f32 %v1047, %v1112
      %v1118 = vmul.f32 %v1048, %v1114
      %v1119 = vadd.f32 %v1109, %v1117
      %v1120 = vadd.f32 %v1110, %v1118
      %1123 = vrot.lane.b32.xlu0 %v1119, 64
      %v1124 = vpop.permute.xlu0 %1123
      %1125 = vrot.lane.b32.xlu0 %v1120, 64
      %v1126 = vpop.permute.xlu0 %1125
      %v1129 = vmul.f32 %v1047, %v1124
      %v1130 = vmul.f32 %v1048, %v1126
      %v1131 = vadd.f32 %v1103, %v1129
      %v1132 = vadd.f32 %v1104, %v1130
      %v1133 = vperm.slane %v245, 3
      %1135 = vrot.lane.b32.xlu0 %v1133, 64
      %v1136 = vpop.permute.xlu0 %1135
      %v1138 = vmul.f32 %v1131, %v1136
      %v1139 = vmul.f32 %v1132, %v1136
      %v1140 = vadd.f32 %v1041, %v1138
      %v1141 = vadd.f32 %v1042, %v1139
      %v1142 = vsub.f32 0.0, %v694
      %v1143 = vsub.f32 0.0, %v703
      %v1144 = vmax.f32 %v1142, 0.0
      %v1145 = vmax.f32 %v1143, 0.0
      %v1146 = vmax.f32 %v694, 0.0
      %v1147 = vmax.f32 %v703, 0.0
      %v1148 = vsub.f32 1.0, %v1144
      %v1149 = vsub.f32 1.0, %v1145
      %v1150 = vsub.f32 %v1148, %v1146
      %v1151 = vsub.f32 %v1149, %v1147
      %v1152 = vmul.f32 %v1144, %v755
      %v1153 = vmul.f32 %v1145, %v757
      %v1154 = vmul.f32 %v1150, %v767
      %v1155 = vmul.f32 %v1151, %v769
      %v1156 = vadd.f32 %v1152, %v1154
      %v1157 = vadd.f32 %v1153, %v1155
      %v1158 = vmul.f32 %v1146, %v1084
      %v1159 = vmul.f32 %v1147, %v1086
      %v1160 = vadd.f32 %v1156, %v1158
      %v1161 = vadd.f32 %v1157, %v1159
      %1164 = vrot.lane.b32.xlu0 %v1160, 64
      %v1165 = vpop.permute.xlu0 %1164
      %1166 = vrot.lane.b32.xlu0 %v1161, 64
      %v1167 = vpop.permute.xlu0 %1166
      %v1170 = vmul.f32 %v1144, %v1165
      %v1171 = vmul.f32 %v1145, %v1167
      %v1172 = vadd.f32 %v1170, 0.0
      %v1173 = vadd.f32 %v1171, 0.0
      %v1174 = vmul.f32 %v1144, %v797
      %v1175 = vmul.f32 %v1145, %v799
      %v1176 = vmul.f32 %v1150, %v807
      %v1177 = vmul.f32 %v1151, %v809
      %v1178 = vadd.f32 %v1174, %v1176
      %v1179 = vadd.f32 %v1175, %v1177
      %v1180 = vmul.f32 %v1146, %v1112
      %v1181 = vmul.f32 %v1147, %v1114
      %v1182 = vadd.f32 %v1178, %v1180
      %v1183 = vadd.f32 %v1179, %v1181
      %1186 = vrot.lane.b32.xlu0 %v1182, 64
      %v1187 = vpop.permute.xlu0 %1186
      %1188 = vrot.lane.b32.xlu0 %v1183, 64
      %v1189 = vpop.permute.xlu0 %1188
      %v1192 = vmul.f32 %v1150, %v1187
      %v1193 = vmul.f32 %v1151, %v1189
      %v1194 = vadd.f32 %v1172, %v1192
      %v1195 = vadd.f32 %v1173, %v1193
      %v1196 = vmul.f32 %v1144, %v900
      %v1197 = vmul.f32 %v1145, %v902
      %v1198 = vmul.f32 %v1150, %v910
      %v1199 = vmul.f32 %v1151, %v912
      %v1200 = vadd.f32 %v1196, %v1198
      %v1201 = vadd.f32 %v1197, %v1199
      %1202 = vrot.lane.b32.xlu0 %v337, 116
      %v1203 = vpop.permute.xlu0 %1202
      %1204 = vrot.lane.b32.xlu0 %v338, 116
      %v1205 = vpop.permute.xlu0 %1204
      %v1208 = vmul.f32 %v1146, %v1203
      %v1209 = vmul.f32 %v1147, %v1205
      %v1210 = vadd.f32 %v1200, %v1208
      %v1211 = vadd.f32 %v1201, %v1209
      %1214 = vrot.lane.b32.xlu0 %v1210, 64
      %v1215 = vpop.permute.xlu0 %1214
      %1216 = vrot.lane.b32.xlu0 %v1211, 64
      %v1217 = vpop.permute.xlu0 %1216
      %v1220 = vmul.f32 %v1146, %v1215
      %v1221 = vmul.f32 %v1147, %v1217
      %v1222 = vadd.f32 %v1194, %v1220
      %v1223 = vadd.f32 %v1195, %v1221
      %v1224 = vperm.slane %v245, 4
      %1226 = vrot.lane.b32.xlu0 %v1224, 64
      %v1227 = vpop.permute.xlu0 %1226
      %v1229 = vmul.f32 %v1222, %v1227
      %v1230 = vmul.f32 %v1223, %v1227
      %v1231 = vadd.f32 %v1140, %v1229
      %v1232 = vadd.f32 %v1141, %v1230
      %v1233 = vsub.f32 0.0, %v695
      %v1234 = vsub.f32 0.0, %v704
      %v1235 = vmax.f32 %v1233, 0.0
      %v1236 = vmax.f32 %v1234, 0.0
      %v1237 = vmax.f32 %v695, 0.0
      %v1238 = vmax.f32 %v704, 0.0
      %v1239 = vsub.f32 1.0, %v1235
      %v1240 = vsub.f32 1.0, %v1236
      %v1241 = vsub.f32 %v1239, %v1237
      %v1242 = vsub.f32 %v1240, %v1238
      %v1243 = vmul.f32 %v1235, %v797
      %v1244 = vmul.f32 %v1236, %v799
      %v1245 = vmul.f32 %v1241, %v807
      %v1246 = vmul.f32 %v1242, %v809
      %v1247 = vadd.f32 %v1243, %v1245
      %v1248 = vadd.f32 %v1244, %v1246
      %v1249 = vmul.f32 %v1237, %v1112
      %v1250 = vmul.f32 %v1238, %v1114
      %v1251 = vadd.f32 %v1247, %v1249
      %v1252 = vadd.f32 %v1248, %v1250
      %1255 = vrot.lane.b32.xlu0 %v1251, 64
      %v1256 = vpop.permute.xlu0 %1255
      %1257 = vrot.lane.b32.xlu0 %v1252, 64
      %v1258 = vpop.permute.xlu0 %1257
      %v1261 = vmul.f32 %v1235, %v1256
      %v1262 = vmul.f32 %v1236, %v1258
      %v1263 = vadd.f32 %v1261, 0.0
      %v1264 = vadd.f32 %v1262, 0.0
      %v1265 = vmul.f32 %v1235, %v900
      %v1266 = vmul.f32 %v1236, %v902
      %v1267 = vmul.f32 %v1241, %v910
      %v1268 = vmul.f32 %v1242, %v912
      %v1269 = vadd.f32 %v1265, %v1267
      %v1270 = vadd.f32 %v1266, %v1268
      %v1271 = vmul.f32 %v1237, %v1203
      %v1272 = vmul.f32 %v1238, %v1205
      %v1273 = vadd.f32 %v1269, %v1271
      %v1274 = vadd.f32 %v1270, %v1272
      %1277 = vrot.lane.b32.xlu0 %v1273, 64
      %v1278 = vpop.permute.xlu0 %1277
      %1279 = vrot.lane.b32.xlu0 %v1274, 64
      %v1280 = vpop.permute.xlu0 %1279
      %v1283 = vmul.f32 %v1241, %v1278
      %v1284 = vmul.f32 %v1242, %v1280
      %v1285 = vadd.f32 %v1263, %v1283
      %v1286 = vadd.f32 %v1264, %v1284
      %v1287 = vmul.f32 %v1235, %v1003
      %v1288 = vmul.f32 %v1236, %v1005
      %v1289 = vmul.f32 %v1241, %v1013
      %v1290 = vmul.f32 %v1242, %v1015
      %v1291 = vadd.f32 %v1287, %v1289
      %v1292 = vadd.f32 %v1288, %v1290
      %1293 = vrot.lane.b32.xlu0 %v337, 112
      %v1294 = vpop.permute.xlu0 %1293
      %1295 = vrot.lane.b32.xlu0 %v338, 112
      %v1296 = vpop.permute.xlu0 %1295
      %v1299 = vmul.f32 %v1237, %v1294
      %v1300 = vmul.f32 %v1238, %v1296
      %v1301 = vadd.f32 %v1291, %v1299
      %v1302 = vadd.f32 %v1292, %v1300
      %1305 = vrot.lane.b32.xlu0 %v1301, 64
      %v1306 = vpop.permute.xlu0 %1305
      %1307 = vrot.lane.b32.xlu0 %v1302, 64
      %v1308 = vpop.permute.xlu0 %1307
      %v1311 = vmul.f32 %v1237, %v1306
      %v1312 = vmul.f32 %v1238, %v1308
      %v1313 = vadd.f32 %v1285, %v1311
      %v1314 = vadd.f32 %v1286, %v1312
      %v1315 = vperm.slane %v245, 5
      %1317 = vrot.lane.b32.xlu0 %v1315, 64
      %v1318 = vpop.permute.xlu0 %1317
      %v1320 = vmul.f32 %v1313, %v1318
      %v1321 = vmul.f32 %v1314, %v1318
      %v1322 = vadd.f32 %v1231, %v1320
      %v1323 = vadd.f32 %v1232, %v1321
      %v1324 = vsub.f32 0.0, %v696
      %v1325 = vsub.f32 0.0, %v705
      %v1326 = vmax.f32 %v1324, 0.0
      %v1327 = vmax.f32 %v1325, 0.0
      %v1328 = vmax.f32 %v696, 0.0
      %v1329 = vmax.f32 %v705, 0.0
      %v1330 = vsub.f32 1.0, %v1326
      %v1331 = vsub.f32 1.0, %v1327
      %v1332 = vsub.f32 %v1330, %v1328
      %v1333 = vsub.f32 %v1331, %v1329
      %v1334 = vmul.f32 %v1326, %v292
      %v1335 = vmul.f32 %v1327, %v293
      %v1336 = vmul.f32 %v1332, %v337
      %v1337 = vmul.f32 %v1333, %v338
      %v1338 = vadd.f32 %v1334, %v1336
      %v1339 = vadd.f32 %v1335, %v1337
      %v1340 = vld [vmem:[#allocation2 + $0x4] sm:$0xff]
      %v1341 = vld [vmem:[#allocation2 + $0xc] sm:$0xff]
      %v1342 = vmul.f32 %v1328, %v1340
      %v1343 = vmul.f32 %v1329, %v1341
      %v1344 = vadd.f32 %v1338, %v1342
      %v1345 = vadd.f32 %v1339, %v1343
      %1348 = vrot.lane.b32.xlu0 %v1344, 64
      %v1349 = vpop.permute.xlu0 %1348
      %1350 = vrot.lane.b32.xlu0 %v1345, 64
      %v1351 = vpop.permute.xlu0 %1350
      %v1354 = vmul.f32 %v1326, %v1349
      %v1355 = vmul.f32 %v1327, %v1351
      %v1356 = vadd.f32 %v1354, 0.0
      %v1357 = vadd.f32 %v1355, 0.0
      %v1358 = vmul.f32 %v1326, %v767
      %v1359 = vmul.f32 %v1327, %v769
      %v1360 = vmul.f32 %v1332, %v1084
      %v1361 = vmul.f32 %v1333, %v1086
      %v1362 = vadd.f32 %v1358, %v1360
      %v1363 = vadd.f32 %v1359, %v1361
      %1366 = vrot.lane.b32.xlu0 %v1340, 124
      %v1367 = vpop.permute.xlu0 %1366
      %1368 = vrot.lane.b32.xlu0 %v1341, 124
      %v1369 = vpop.permute.xlu0 %1368
      %v1372 = vmul.f32 %v1328, %v1367
      %v1373 = vmul.f32 %v1329, %v1369
      %v1374 = vadd.f32 %v1362, %v1372
      %v1375 = vadd.f32 %v1363, %v1373
      %1378 = vrot.lane.b32.xlu0 %v1374, 64
      %v1379 = vpop.permute.xlu0 %1378
      %1380 = vrot.lane.b32.xlu0 %v1375, 64
      %v1381 = vpop.permute.xlu0 %1380
      %v1384 = vmul.f32 %v1332, %v1379
      %v1385 = vmul.f32 %v1333, %v1381
      %v1386 = vadd.f32 %v1356, %v1384
      %v1387 = vadd.f32 %v1357, %v1385
      %v1388 = vmul.f32 %v1326, %v807
      %v1389 = vmul.f32 %v1327, %v809
      %v1390 = vmul.f32 %v1332, %v1112
      %v1391 = vmul.f32 %v1333, %v1114
      %v1392 = vadd.f32 %v1388, %v1390
      %v1393 = vadd.f32 %v1389, %v1391
      %1394 = vrot.lane.b32.xlu0 %v1340, 120
      %v1395 = vpop.permute.xlu0 %1394
      %1396 = vrot.lane.b32.xlu0 %v1341, 120
      %v1397 = vpop.permute.xlu0 %1396
      %v1400 = vmul.f32 %v1328, %v1395
      %v1401 = vmul.f32 %v1329, %v1397
      %v1402 = vadd.f32 %v1392, %v1400
      %v1403 = vadd.f32 %v1393, %v1401
      %1406 = vrot.lane.b32.xlu0 %v1402, 64
      %v1407 = vpop.permute.xlu0 %1406
      %1408 = vrot.lane.b32.xlu0 %v1403, 64
      %v1409 = vpop.permute.xlu0 %1408
      %v1412 = vmul.f32 %v1328, %v1407
      %v1413 = vmul.f32 %v1329, %v1409
      %v1414 = vadd.f32 %v1386, %v1412
      %v1415 = vadd.f32 %v1387, %v1413
      %v1416 = vperm.slane %v245, 6
      %1418 = vrot.lane.b32.xlu0 %v1416, 64
      %v1419 = vpop.permute.xlu0 %1418
      %v1421 = vmul.f32 %v1414, %v1419
      %v1422 = vmul.f32 %v1415, %v1419
      %v1423 = vadd.f32 %v1322, %v1421
      %v1424 = vadd.f32 %v1323, %v1422
      %v1425 = vsub.f32 0.0, %v697
      %v1426 = vsub.f32 0.0, %v706
      %v1427 = vmax.f32 %v1425, 0.0
      %v1428 = vmax.f32 %v1426, 0.0
      %v1429 = vmax.f32 %v697, 0.0
      %v1430 = vmax.f32 %v706, 0.0
      %v1431 = vsub.f32 1.0, %v1427
      %v1432 = vsub.f32 1.0, %v1428
      %v1433 = vsub.f32 %v1431, %v1429
      %v1434 = vsub.f32 %v1432, %v1430
      %v1435 = vmul.f32 %v1427, %v767
      %v1436 = vmul.f32 %v1428, %v769
      %v1437 = vmul.f32 %v1433, %v1084
      %v1438 = vmul.f32 %v1434, %v1086
      %v1439 = vadd.f32 %v1435, %v1437
      %v1440 = vadd.f32 %v1436, %v1438
      %v1441 = vmul.f32 %v1429, %v1367
      %v1442 = vmul.f32 %v1430, %v1369
      %v1443 = vadd.f32 %v1439, %v1441
      %v1444 = vadd.f32 %v1440, %v1442
      %1447 = vrot.lane.b32.xlu0 %v1443, 64
      %v1448 = vpop.permute.xlu0 %1447
      %1449 = vrot.lane.b32.xlu0 %v1444, 64
      %v1450 = vpop.permute.xlu0 %1449
      %v1453 = vmul.f32 %v1427, %v1448
      %v1454 = vmul.f32 %v1428, %v1450
      %v1455 = vadd.f32 %v1453, 0.0
      %v1456 = vadd.f32 %v1454, 0.0
      %v1457 = vmul.f32 %v1427, %v807
      %v1458 = vmul.f32 %v1428, %v809
      %v1459 = vmul.f32 %v1433, %v1112
      %v1460 = vmul.f32 %v1434, %v1114
      %v1461 = vadd.f32 %v1457, %v1459
      %v1462 = vadd.f32 %v1458, %v1460
      %v1463 = vmul.f32 %v1429, %v1395
      %v1464 = vmul.f32 %v1430, %v1397
      %v1465 = vadd.f32 %v1461, %v1463
      %v1466 = vadd.f32 %v1462, %v1464
      %1469 = vrot.lane.b32.xlu0 %v1465, 64
      %v1470 = vpop.permute.xlu0 %1469
      %1471 = vrot.lane.b32.xlu0 %v1466, 64
      %v1472 = vpop.permute.xlu0 %1471
      %v1475 = vmul.f32 %v1433, %v1470
      %v1476 = vmul.f32 %v1434, %v1472
      %v1477 = vadd.f32 %v1455, %v1475
      %v1478 = vadd.f32 %v1456, %v1476
      %v1479 = vmul.f32 %v1427, %v910
      %v1480 = vmul.f32 %v1428, %v912
      %v1481 = vmul.f32 %v1433, %v1203
      %v1482 = vmul.f32 %v1434, %v1205
      %v1483 = vadd.f32 %v1479, %v1481
      %v1484 = vadd.f32 %v1480, %v1482
      %1485 = vrot.lane.b32.xlu0 %v1340, 116
      %v1486 = vpop.permute.xlu0 %1485
      %1487 = vrot.lane.b32.xlu0 %v1341, 116
      %v1488 = vpop.permute.xlu0 %1487
      %v1491 = vmul.f32 %v1429, %v1486
      %v1492 = vmul.f32 %v1430, %v1488
      %v1493 = vadd.f32 %v1483, %v1491
      %v1494 = vadd.f32 %v1484, %v1492
      %1497 = vrot.lane.b32.xlu0 %v1493, 64
      %v1498 = vpop.permute.xlu0 %1497
      %1499 = vrot.lane.b32.xlu0 %v1494, 64
      %v1500 = vpop.permute.xlu0 %1499
      %v1503 = vmul.f32 %v1429, %v1498
      %v1504 = vmul.f32 %v1430, %v1500
      %v1505 = vadd.f32 %v1477, %v1503
      %v1506 = vadd.f32 %v1478, %v1504
      %v1507 = vperm.slane %v245, 7
      %1509 = vrot.lane.b32.xlu0 %v1507, 64
      %v1510 = vpop.permute.xlu0 %1509
      %v1512 = vmul.f32 %v1505, %v1510
      %v1513 = vmul.f32 %v1506, %v1510
      %v1514 = vadd.f32 %v1423, %v1512
      %v1515 = vadd.f32 %v1424, %v1513
      %v1516 = vsub.f32 0.0, %v698
      %v1517 = vsub.f32 0.0, %v707
      %v1518 = vmax.f32 %v1516, 0.0
      %v1519 = vmax.f32 %v1517, 0.0
      %v1520 = vmax.f32 %v698, 0.0
      %v1521 = vmax.f32 %v707, 0.0
      %v1522 = vsub.f32 1.0, %v1518
      %v1523 = vsub.f32 1.0, %v1519
      %v1524 = vsub.f32 %v1522, %v1520
      %v1525 = vsub.f32 %v1523, %v1521
      %v1526 = vmul.f32 %v1518, %v807
      %v1527 = vmul.f32 %v1519, %v809
      %v1528 = vmul.f32 %v1524, %v1112
      %v1529 = vmul.f32 %v1525, %v1114
      %v1530 = vadd.f32 %v1526, %v1528
      %v1531 = vadd.f32 %v1527, %v1529
      %v1532 = vmul.f32 %v1520, %v1395
      %v1533 = vmul.f32 %v1521, %v1397
      %v1534 = vadd.f32 %v1530, %v1532
      %v1535 = vadd.f32 %v1531, %v1533
      %1538 = vrot.lane.b32.xlu0 %v1534, 64
      %v1539 = vpop.permute.xlu0 %1538
      %1540 = vrot.lane.b32.xlu0 %v1535, 64
      %v1541 = vpop.permute.xlu0 %1540
      %v1544 = vmul.f32 %v1518, %v1539
      %v1545 = vmul.f32 %v1519, %v1541
      %v1546 = vadd.f32 %v1544, 0.0
      %v1547 = vadd.f32 %v1545, 0.0
      %v1548 = vmul.f32 %v1518, %v910
      %v1549 = vmul.f32 %v1519, %v912
      %v1550 = vmul.f32 %v1524, %v1203
      %v1551 = vmul.f32 %v1525, %v1205
      %v1552 = vadd.f32 %v1548, %v1550
      %v1553 = vadd.f32 %v1549, %v1551
      %v1554 = vmul.f32 %v1520, %v1486
      %v1555 = vmul.f32 %v1521, %v1488
      %v1556 = vadd.f32 %v1552, %v1554
      %v1557 = vadd.f32 %v1553, %v1555
      %1560 = vrot.lane.b32.xlu0 %v1556, 64
      %v1561 = vpop.permute.xlu0 %1560
      %1562 = vrot.lane.b32.xlu0 %v1557, 64
      %v1563 = vpop.permute.xlu0 %1562
      %v1566 = vmul.f32 %v1524, %v1561
      %v1567 = vmul.f32 %v1525, %v1563
      %v1568 = vadd.f32 %v1546, %v1566
      %v1569 = vadd.f32 %v1547, %v1567
      %v1570 = vmul.f32 %v1518, %v1013
      %v1571 = vmul.f32 %v1519, %v1015
      %v1572 = vmul.f32 %v1524, %v1294
      %v1573 = vmul.f32 %v1525, %v1296
      %v1574 = vadd.f32 %v1570, %v1572
      %v1575 = vadd.f32 %v1571, %v1573
      %1576 = vrot.lane.b32.xlu0 %v1340, 112
      %v1577 = vpop.permute.xlu0 %1576
      %1578 = vrot.lane.b32.xlu0 %v1341, 112
      %v1579 = vpop.permute.xlu0 %1578
      %v1582 = vmul.f32 %v1520, %v1577
      %v1583 = vmul.f32 %v1521, %v1579
      %v1584 = vadd.f32 %v1574, %v1582
      %v1585 = vadd.f32 %v1575, %v1583
      %1588 = vrot.lane.b32.xlu0 %v1584, 64
      %v1589 = vpop.permute.xlu0 %1588
      %1590 = vrot.lane.b32.xlu0 %v1585, 64
      %v1591 = vpop.permute.xlu0 %1590
      %v1594 = vmul.f32 %v1520, %v1589
      %v1595 = vmul.f32 %v1521, %v1591
      %v1596 = vadd.f32 %v1568, %v1594
      %v1597 = vadd.f32 %v1569, %v1595
      %v1598 = vperm.slane %v246, 0
      %1600 = vrot.lane.b32.xlu0 %v1598, 64
      %v1601 = vpop.permute.xlu0 %1600
      %v1603 = vmul.f32 %v1596, %v1601
      %v1604 = vmul.f32 %v1597, %v1601
      %v1605 = vadd.f32 %v1514, %v1603
      %v1606 = vadd.f32 %v1515, %v1604
      %v1607 = vld [vmem:[%s4] sm:$0xff]
      %v1608 = vld [vmem:[%s4 + $0x8] sm:$0xff]
      %v1609 = vld [vmem:[%s4 + $0x10] sm:$0xff]
      %v1610 = vld [vmem:[%s4 + $0x18] sm:$0xff]
      %v1611 = vld [vmem:[%s4 + $0x20] sm:$0xff]
      %v1612 = vld [vmem:[%s4 + $0x28] sm:$0xff]
      %v1613 = vld [vmem:[%s4 + $0x30] sm:$0xff]
      %v1614 = vld [vmem:[%s4 + $0x38] sm:$0xff]
      %1617 = vrot.lane.b32.xlu0 %v1605, 64
      %v1618 = vpop.permute.xlu0 %1617
      %1619 = vrot.lane.b32.xlu0 %v1606, 64
      %v1620 = vpop.permute.xlu0 %1619
      %v1621 = vsel %vm460, %v1618, 0
      %v1623 = vsel %vm460, %v1620, 0
      %1625 = vmatpush.msra.mxu0 0.0
      %1626 = vmatpush.msra.mxu0 0.0
      %1627 = vmatpush.msra.mxu0 0.0
      %1628 = vmatpush.msra.mxu0 0.0
      %1629 = vmatpush.msra.mxu0 0.0
      %1630 = vmatpush.msra.mxu0 0.0
      %1631 = vmatpush.msra.mxu0 0.0
      %1632 = vmatpush.msra.mxu0 0.0
      %1633 = vmatpush.msra.mxu0 %v1614
      %1634 = vmatpush.msra.mxu0 %v1613
      %1635 = vmatpush.msra.mxu0 %v1612
      %1636 = vmatpush.msra.mxu0 %v1611
      %1637 = vmatpush.msra.mxu0 %v1610
      %1638 = vmatpush.msra.mxu0 %v1609
      %1639 = vmatpush.msra.mxu0 %v1608
      %1640 = vmatpush.msra.mxu0 %v1607
      %1641 = vmatmul.f32.gmra.mxu0 %v1621
      %v1642 = vpop.f32.mrf.mxu0
      %v1643 = vadd.f32 0.0, %v1642
      %1644 = vmatmul.f32.gmra.mxu0 %v1623
      %v1645 = vpop.f32.mrf.mxu0
      %v1646 = vadd.f32 0.0, %v1645
      %1647 = vdwg.mxu0
      %v1648 = vadd.f32 %v1643, 3.0
      %v1649 = vadd.f32 %v1646, 3.0
      %v1650 = vmax.f32 %v1648, 0.0
      %v1651 = vmax.f32 %v1649, 0.0
      %v1652 = vmin.f32 %v1650, 6.0
      %v1653 = vmin.f32 %v1651, 6.0
      %v1654 = vmul.f32 %v1643, %v1652
      %v1655 = vmul.f32 %v1646, %v1653
      %v1656 = vmul.f32 %v1654, 0.16666667
      %v1657 = vmul.f32 %v1655, 0.16666667
      %1658 = vst [vmem:[%s224] sm:$0xff] %v1656
      %1659 = vst [vmem:[%s224 + $0x8] sm:$0xff] %v1657
      %p1660 = scmp.lt.s32.totalorder %s16, 1
      %s1661 = scalar_select %p1660, %s16, 1
      %s1662 = smul.addr %s1661, 2
      %s1663 = smul.addr %s1662, 8
      %s1664 = scalar_lea.vmem %s5, %s1663
      // Predicated region
      $region41: #{dwconv2d_bn_forward.1} parent=39 // pred_check
        %p1665 = pneg %p144
      $region42: #{dwconv2d_bn_forward.1} parent=39 // pred_check_branch
        %1667 = sbr.rel (%p1665) target = $region44
      $region43: #{dwconv2d_bn_forward.1} parent=39 // pred_region
        _
      $region44: #{dwconv2d_bn_forward.1} parent=39 // pred_fallthru
        _
    $region40: #{dwconv2d_bn_forward.1} parent=5 // pred_fallthru
      _
    %p1668 = scmp.le.s32.totalorder 2, %s11
    // Predicated region
    $region45: #{dwconv2d_bn_forward.1} parent=5 // pred_check
      %p1669 = pneg %p1668
    $region46: #{dwconv2d_bn_forward.1} parent=5 // pred_check_branch
      %1671 = sbr.rel (%p1669) target = $region48
    $region47: #{dwconv2d_bn_forward.1} parent=5 // pred_region
      %s1672 = ssub.s32 %s11, 2
      // Predicated region
      $region49: #{dwconv2d_bn_forward.1} parent=47 // pred_check
        %p1673 = pneg %p150
      $region50: #{dwconv2d_bn_forward.1} parent=47 // pred_check_branch
        %1675 = sbr.rel (%p1673) target = $region52
      $region51: #{dwconv2d_bn_forward.1} parent=47 // pred_region
        %p1676 = scmp.lt.s32.totalorder %s17, 1
        %s1677 = scalar_select %p1676, %s17, 1
        %s1678 = smul.addr %s1677, 2
        %s1679 = smul.addr %s1678, 8
        %s1680 = scalar_lea.vmem %s5, %s1679
      $region52: #{dwconv2d_bn_forward.1} parent=47 // pred_fallthru
        _
    $region48: #{dwconv2d_bn_forward.1} parent=5 // pred_fallthru
      _
  $region6: #{dwconv2d_bn_forward.1} parent=0 // loop_footer
    %s15 = sadd.s32 1, %s11
  $region7: #{dwconv2d_bn_forward.1} parent=0 // loop_footer_branch
    %10 = sbr.rel target = $region3
  $region8: #{dwconv2d_bn_forward.1} parent=0 // loop_exit
    _

</llo_original>
